<compile_context>
chip_gen: v7x
topology: tpu7x:2x2x1
jax: 0.10.0
libtpu: 0.0.40
codegen_flags: <defaults>
</compile_context>

<pallas_src>
import jax
import jax.numpy as jnp
from jax.experimental import pallas as pl
from jax.experimental.pallas import tpu as pltpu

HIDDEN_PAD = 128      # lane width
IN_FEATURES = 768
_MAX_TB = 4096        # default batch tile (rows)
_MIN_TB = 512         # below this the per-step overhead dominates


def _nnue_kernel(x_ref, w1_ref, b1_ref, w2_ref, b2_ref, w3_ref, o_ref):
    # x arrives as int8 {0,1}; upcast on the VPU so only 1 B/feature crossed HBM.
    x = x_ref[...].astype(jnp.bfloat16)                                   # (TB, 768) bf16

    # fc1 (bf16 x bf16 -> f32 acc) + clipped ReLU; lane-dense 128-wide hidden.
    h1 = jnp.dot(x, w1_ref[...], preferred_element_type=jnp.float32)     # (TB, 128) f32
    h1 = jnp.clip(h1 + b1_ref[...], 0.0, 127.0)

    # fc2 + clipped ReLU (padded column 8 becomes the constant-one bias unit).
    h2 = jnp.dot(h1.astype(jnp.bfloat16), w2_ref[...],
                 preferred_element_type=jnp.float32)                      # (TB, 128) f32
    h2 = jnp.clip(h2 + b2_ref[...], 0.0, 127.0)

    # fc3 (b3 carried by W3 row 8 via the constant-one unit).
    out = jnp.dot(h2.astype(jnp.bfloat16), w3_ref[...],
                  preferred_element_type=jnp.float32)                     # (TB, 1) f32
    o_ref[...] = out.astype(o_ref.dtype)


def pad_params(w1, b1, w2, b2, w3, b3, feature_scale=1.0):
    """Pad the 8-wide hidden layers to 128 lanes, fold the feature scale into W1,
    store weights in bf16 (MXU-native), and fold b3 into a constant-one unit.

    Weight layout is (in, out), i.e. y = x @ W + b (PyTorch W.T).
    """
    H = HIDDEN_PAD
    w1s = (w1 * jnp.float32(feature_scale)).astype(jnp.bfloat16)
    w1p = jnp.zeros((IN_FEATURES, H), jnp.bfloat16).at[:, :8].set(w1s)
    b1p = jnp.zeros((1, H), jnp.float32).at[:, :8].set(b1.astype(jnp.float32))
    # fc2: real 8x8 block; column 8 has zero weights + bias 1 -> h2[:, 8] == clip(1) == 1.
    w2p = jnp.zeros((H, H), jnp.bfloat16).at[:8, :8].set(w2.astype(jnp.bfloat16))
    b2p = (jnp.zeros((1, H), jnp.float32)
           .at[:, :8].set(b2.astype(jnp.float32))
           .at[0, 8].set(1.0))
    # fc3: real weights in rows 0..7, b3 in row 8 (multiplied by the constant-one unit).
    w3p = (jnp.zeros((H, 1), jnp.bfloat16)
           .at[:8, :].set(w3.astype(jnp.bfloat16))
           .at[8, 0].set(b3[0, 0].astype(jnp.bfloat16)))
    return w1p, b1p, w2p, b2p, w3p


def _pick_tile(batch):
    """Default batch tile: as large as possible, but keep >= 4 grid steps so both
    v7x TensorCores get >= 2 tiles each (megacore sharding of the 'parallel' axis)."""
    tb = _MAX_TB
    while tb > _MIN_TB and pl.cdiv(batch, tb) < 4:
        tb //= 2
    return min(tb, batch)


def _vmem_limit_bytes(tb, d_in, h):
    """Explicit scoped-VMEM budget so large tiles never rely on the per-gen default."""
    need = (
        2 * tb * d_in * 1      # x int8 double-buffer (pipeline)
        + tb * d_in * 2        # in-kernel bf16 upcast of x
        + 4 * tb * h * 4       # h1/h2 f32 (+ bias/clip temporaries)
        + 2 * tb * h * 2       # h1/h2 bf16 casts feeding the MXU
        + 2 * tb * 128 * 4     # (tb, 1) f32 out block is lane-padded to 128, double-buffered
        + (2 << 20)            # weights, biases, semaphores, misc
    )
    need = int(need * 1.25)    # headroom for compiler temporaries
    return max(32 << 20, min(need, 48 << 20))   # 48 MiB cap is safe on v7x (64 MiB VMEM)


def nnue_forward(x, w1p, b1p, w2p, b2p, w3p, *, tb=None):
    """x: (B, 768) int8 features in {0, 1} (feature scale folded into W1 by pad_params).
    Returns (B, 1) float32."""
    B, D = x.shape
    assert D == IN_FEATURES
    assert x.dtype == jnp.int8, "features must be int8 with the scale folded into W1"
    H = w1p.shape[1]

    tb = _pick_tile(B) if tb is None else min(tb, B)
    if tb < B:
        assert tb % 32 == 0, "batch tile must be a multiple of 32 (int8 sublane packing)"
    grid = (pl.cdiv(B, tb),)
    # Ragged last tile (B % tb != 0) is handled by Pallas: OOB input rows read
    # garbage (finite, no NaN-producing ops) and OOB output stores are masked.

    # Logical (unpadded) cost; the kernel is HBM-read-bound on x.
    flops = 2 * B * (D * 8 + 8 * 8 + 8)
    bytes_accessed = (
        B * D * 1                      # x (int8)
        + B * 4                        # output (f32)
        + w1p.size * 2                 # W1 (bf16, resident)
        + (w2p.size + w3p.size) * 2    # W2 / W3 (bf16)
        + (b1p.size + b2p.size) * 4    # biases (f32)
    )

    return pl.pallas_call(
        _nnue_kernel,
        out_shape=jax.ShapeDtypeStruct((B, 1), jnp.float32),
        grid=grid,
        in_specs=[
            pl.BlockSpec((tb, D), lambda i: (i, 0)),   # x  (batch-tiled, int8)
            pl.BlockSpec((D, H), lambda i: (0, 0)),    # W1 padded (768, 128) bf16 (scale folded)
            pl.BlockSpec((1, H), lambda i: (0, 0)),    # b1 padded (1, 128) f32
            pl.BlockSpec((H, H), lambda i: (0, 0)),    # W2 padded (128, 128) bf16
            pl.BlockSpec((1, H), lambda i: (0, 0)),    # b2 padded (+ const-one unit) f32
            pl.BlockSpec((H, 1), lambda i: (0, 0)),    # W3 padded (128, 1) bf16 (row 8 = b3)
        ],
        out_specs=pl.BlockSpec((tb, 1), lambda i: (i, 0)),
        compiler_params=pltpu.CompilerParams(
            dimension_semantics=("parallel",),
            vmem_limit_bytes=_vmem_limit_bytes(tb, D, H),
        ),
        cost_estimate=pl.CostEstimate(
            flops=flops, transcendentals=0, bytes_accessed=bytes_accessed
        ),
    )(x, w1p, b1p, w2p, b2p, w3p)


def init_params(key):
    """Deterministic init mimicking nn.Linear's U(-1/sqrt(fan_in), 1/sqrt(fan_in))."""
    ks = jax.random.split(key, 6)

    def linear(kw, kb, fan_in, fan_out):
        bound = 1.0 / jnp.sqrt(jnp.float32(fan_in))
        w = jax.random.uniform(kw, (fan_in, fan_out), jnp.float32, -bound, bound)
        b = jax.random.uniform(kb, (1, fan_out), jnp.float32, -bound, bound)
        return w, b

    w1, b1 = linear(ks[0], ks[1], IN_FEATURES, 8)
    w2, b2 = linear(ks[2], ks[3], 8, 8)
    w3, b3 = linear(ks[4], ks[5], 8, 1)
    return w1, b1, w2, b2, w3, b3


def reference_forward(x_i8, w1, b1, w2, b2, w3, b3, feature_scale):
    """f32 reference of the original module, applying the same bf16 quantization
    the kernel uses (so the comparison isolates kernel/tiling correctness)."""
    bf = lambda a: a.astype(jnp.bfloat16).astype(jnp.float32)
    clip = lambda v: jnp.clip(v, 0.0, 127.0)
    xf = x_i8.astype(jnp.float32)                      # {0, 1}; scale folded into W1
    h = clip(xf @ bf(w1 * jnp.float32(feature_scale)) + b1)
    h = clip(bf(h) @ bf(w2) + b2)
    return bf(h) @ bf(w3) + bf(b3)


if __name__ == "__main__":
    key = jax.random.PRNGKey(0)
    k_params, k_x = jax.random.split(key)

    w1, b1, w2, b2, w3, b3 = init_params(k_params)
    FEATURE_SCALE = 64.0
    w1p, b1p, w2p, b2p, w3p = pad_params(w1, b1, w2, b2, w3, b3,
                                         feature_scale=FEATURE_SCALE)

    # NNUE-style sparse binary features, stored as int8 {0, 1}; the 64.0 feature
    # scale is folded into W1 so the HBM stream is 1 B/feature.
    B = 2048
    x_i8 = (jax.random.uniform(k_x, (B, IN_FEATURES), jnp.float32) < 0.05).astype(jnp.int8)

    out = nnue_forward(x_i8, w1p, b1p, w2p, b2p, w3p)   # default tiling heuristic
    out = jax.block_until_ready(out)

    ref = reference_forward(x_i8, w1, b1, w2, b2, w3, b3, FEATURE_SCALE)
    assert out.shape == (B, 1)
    max_err = float(jnp.max(jnp.abs(out - ref)))
    assert jnp.allclose(out, ref, atol=5e-3, rtol=1e-3), max_err
    print("KERNEL_OK")
</pallas_src>

<mosaic_0001>
module attributes {stable_mosaic.version = 11 : i64} {
  func.func @_nnue_kernel(%arg0: i32, %arg1: memref<512x768xi8, #tpu.memory_space<vmem>>, %arg2: memref<768x128xbf16, #tpu.memory_space<vmem>>, %arg3: memref<1x128xf32, #tpu.memory_space<vmem>>, %arg4: memref<128x128xbf16, #tpu.memory_space<vmem>>, %arg5: memref<1x128xf32, #tpu.memory_space<vmem>>, %arg6: memref<128x1xbf16, #tpu.memory_space<vmem>>, %arg7: memref<512x1xf32, #tpu.memory_space<vmem>>) attributes {dimension_semantics = [#tpu.dimension_semantics<parallel>], iteration_bounds = array<i64: 4>, scalar_prefetch = 0 : i64, scratch_operands = 0 : i64, tpu.core_type = #tpu.core_type<tc>, window_params = [{transform_indices = @transform_0, window_bounds = array<i64: 512, 768>}, {pipeline_mode = #tpu.pipeline_mode<synchronous>, transform_indices = @transform_1, window_bounds = array<i64: 768, 128>}, {pipeline_mode = #tpu.pipeline_mode<synchronous>, transform_indices = @transform_2, window_bounds = array<i64: 1, 128>}, {pipeline_mode = #tpu.pipeline_mode<synchronous>, transform_indices = @transform_3, window_bounds = array<i64: 128, 128>}, {pipeline_mode = #tpu.pipeline_mode<synchronous>, transform_indices = @transform_4, window_bounds = array<i64: 1, 128>}, {pipeline_mode = #tpu.pipeline_mode<synchronous>, transform_indices = @transform_5, window_bounds = array<i64: 128, 1>}, {transform_indices = @transform_6, window_bounds = array<i64: 512, 1>}]} {
    %c0 = arith.constant 0 : index
    %c0_0 = arith.constant 0 : index
    %0 = vector.load %arg1[%c0, %c0_0] : memref<512x768xi8, #tpu.memory_space<vmem>>, vector<512x768xi8>
    %1 = arith.sitofp %0 : vector<512x768xi8> to vector<512x768xbf16>
    %c0_1 = arith.constant 0 : index
    %c0_2 = arith.constant 0 : index
    %2 = vector.load %arg2[%c0_1, %c0_2] : memref<768x128xbf16, #tpu.memory_space<vmem>>, vector<768x128xbf16>
    %cst = arith.constant dense<0.000000e+00> : vector<512x128xf32>
    %3 = tpu.matmul %1, %2, %cst {dimension_numbers = #tpu.dot_dimension_numbers<[1], [0], [0], [1], [0, 0, 1, 1], [], []>} : vector<512x768xbf16>, vector<768x128xbf16>, vector<512x128xf32> -> vector<512x128xf32>
    %c0_3 = arith.constant 0 : index
    %c0_4 = arith.constant 0 : index
    %4 = vector.load %arg3[%c0_3, %c0_4] : memref<1x128xf32, #tpu.memory_space<vmem>>, vector<1x128xf32>
    %5 = vector.broadcast %4 : vector<1x128xf32> to vector<512x128xf32>
    %6 = arith.addf %3, %5 : vector<512x128xf32>
    %cst_5 = arith.constant 0.000000e+00 : f32
    %cst_6 = arith.constant 1.270000e+02 : f32
    %7 = vector.broadcast %cst_5 : f32 to vector<512x128xf32>
    %8 = arith.maximumf %7, %6 : vector<512x128xf32>
    %9 = vector.broadcast %cst_6 : f32 to vector<512x128xf32>
    %10 = arith.minimumf %9, %8 : vector<512x128xf32>
    %11 = arith.truncf %10 : vector<512x128xf32> to vector<512x128xbf16>
    %c0_7 = arith.constant 0 : index
    %c0_8 = arith.constant 0 : index
    %12 = vector.load %arg4[%c0_7, %c0_8] : memref<128x128xbf16, #tpu.memory_space<vmem>>, vector<128x128xbf16>
    %cst_9 = arith.constant dense<0.000000e+00> : vector<512x128xf32>
    %13 = tpu.matmul %11, %12, %cst_9 {dimension_numbers = #tpu.dot_dimension_numbers<[1], [0], [0], [1], [0, 0, 1, 1], [], []>} : vector<512x128xbf16>, vector<128x128xbf16>, vector<512x128xf32> -> vector<512x128xf32>
    %c0_10 = arith.constant 0 : index
    %c0_11 = arith.constant 0 : index
    %14 = vector.load %arg5[%c0_10, %c0_11] : memref<1x128xf32, #tpu.memory_space<vmem>>, vector<1x128xf32>
    %15 = vector.broadcast %14 : vector<1x128xf32> to vector<512x128xf32>
    %16 = arith.addf %13, %15 : vector<512x128xf32>
    %cst_12 = arith.constant 0.000000e+00 : f32
    %cst_13 = arith.constant 1.270000e+02 : f32
    %17 = vector.broadcast %cst_12 : f32 to vector<512x128xf32>
    %18 = arith.maximumf %17, %16 : vector<512x128xf32>
    %19 = vector.broadcast %cst_13 : f32 to vector<512x128xf32>
    %20 = arith.minimumf %19, %18 : vector<512x128xf32>
    %21 = arith.truncf %20 : vector<512x128xf32> to vector<512x128xbf16>
    %c0_14 = arith.constant 0 : index
    %c0_15 = arith.constant 0 : index
    %22 = vector.load %arg6[%c0_14, %c0_15] : memref<128x1xbf16, #tpu.memory_space<vmem>>, vector<128x1xbf16>
    %cst_16 = arith.constant dense<0.000000e+00> : vector<512x1xf32>
    %23 = tpu.matmul %21, %22, %cst_16 {dimension_numbers = #tpu.dot_dimension_numbers<[1], [0], [0], [1], [0, 0, 1, 1], [], []>} : vector<512x128xbf16>, vector<128x1xbf16>, vector<512x1xf32> -> vector<512x1xf32>
    %c0_17 = arith.constant 0 : index
    %c0_18 = arith.constant 0 : index
    %24 = vector.load %arg7[%c0_17, %c0_18] : memref<512x1xf32, #tpu.memory_space<vmem>>, vector<512x1xf32>
    tpu.vector_store %arg7[%c0_17, %c0_18], %23 {strides = array<i32>} : memref<512x1xf32, #tpu.memory_space<vmem>>, vector<512x1xf32>,
    return
  }
  func.func @transform_0(%arg0: i32) -> (i32, i32) {
    %c0_i32 = arith.constant 0 : i32
    %c0_i32_0 = arith.constant 0 : i32
    return %arg0, %c0_i32 : i32, i32
  }
  func.func @transform_1(%arg0: i32) -> (i32, i32) {
    %c0_i32 = arith.constant 0 : i32
    %c0_i32_0 = arith.constant 0 : i32
    %c0_i32_1 = arith.constant 0 : i32
    return %c0_i32, %c0_i32_0 : i32, i32
  }
  func.func @transform_2(%arg0: i32) -> (i32, i32) {
    %c0_i32 = arith.constant 0 : i32
    %c0_i32_0 = arith.constant 0 : i32
    %c0_i32_1 = arith.constant 0 : i32
    return %c0_i32, %c0_i32_0 : i32, i32
  }
  func.func @transform_3(%arg0: i32) -> (i32, i32) {
    %c0_i32 = arith.constant 0 : i32
    %c0_i32_0 = arith.constant 0 : i32
    %c0_i32_1 = arith.constant 0 : i32
    return %c0_i32, %c0_i32_0 : i32, i32
  }
  func.func @transform_4(%arg0: i32) -> (i32, i32) {
    %c0_i32 = arith.constant 0 : i32
    %c0_i32_0 = arith.constant 0 : i32
    %c0_i32_1 = arith.constant 0 : i32
    return %c0_i32, %c0_i32_0 : i32, i32
  }
  func.func @transform_5(%arg0: i32) -> (i32, i32) {
    %c0_i32 = arith.constant 0 : i32
    %c0_i32_0 = arith.constant 0 : i32
    %c0_i32_1 = arith.constant 0 : i32
    return %c0_i32, %c0_i32_0 : i32, i32
  }
  func.func @transform_6(%arg0: i32) -> (i32, i32) {
    %c0_i32 = arith.constant 0 : i32
    %c0_i32_0 = arith.constant 0 : i32
    return %arg0, %c0_i32 : i32, i32
  }
}

</mosaic_0001>

<llo_original>
// kernel: tpu_custom_call.1
$region0: #{tpu_custom_call.1}
  #allocation0 [shape = 'u32[]', space=smem, size = 0x4, offset = 0x4, fixed_abs, tag = 'smem constant byte address 0x4 - core index']
  #allocation1 [shape = 'u32[144,128]{1,0:T(1,128)}', space=vmem, size = 0x12000, scoped, tag = 'internal scratch']
  %s0 = inlined_call_operand.hbm [shape: s8[2048,768], index: 0, kind: input, shape index: {}]
  %s1 = inlined_call_operand.hbm [shape: bf16[768,128], index: 1, kind: input, shape index: {}]
  %s2 = inlined_call_operand.hbm [shape: f32[1,128], index: 2, kind: input, shape index: {}]
  %s3 = inlined_call_operand.hbm [shape: bf16[128,128], index: 3, kind: input, shape index: {}]
  %s4 = inlined_call_operand.hbm [shape: f32[1,128], index: 4, kind: input, shape index: {}]
  %s5 = inlined_call_operand.vmem [shape: bf16[128,1], index: 5, kind: input, shape index: {}]
  %s6 = inlined_call_operand.vmem [shape: f32[2048,1], index: 6, kind: output, shape index: {}]
  %s7 = sld [smem:[#allocation0]]
  $region77: #{tpu_custom_call.1} parent=0
    _
  %s9 = ssub.s32 1, %s7
  %s10 = scalar_select 0, %s9, %s7
  $region1: #{tpu_custom_call.1} parent=0
    #allocation2 [shape = 'u8[786432]{0}', space=vmem, size = 0xc0000, scoped, tag = 'input window, operand 0']
    #allocation3 [shape = 's32[2]{0}', space=sflag, size = 0x8, scoped, tag = 'scoped memory for tpu_custom_call.1']
    #allocation4 [shape = 'u8[196608]{0}', space=vmem, size = 0x30000, scoped, tag = 'input window, operand 1, single buffered']
    #allocation5 [shape = 's32[1]{0}', space=sflag, size = 0x4, scoped, tag = 'scoped memory for tpu_custom_call.1']
    #allocation6 [shape = 'u8[512]{0}', space=vmem, size = 0x400, scoped, tag = 'input window, operand 2, single buffered']
    #allocation7 [shape = 'u8[32768]{0}', space=vmem, size = 0x8000, scoped, tag = 'input window, operand 3, single buffered']
    #allocation8 [shape = 's32[1]{0}', space=sflag, size = 0x4, scoped, tag = 'scoped memory for tpu_custom_call.1']
    #allocation9 [shape = 'u8[512]{0}', space=vmem, size = 0x400, scoped, tag = 'input window, operand 4, single buffered']
    %11 = vsyncpa [#allocation3], 0
    %s12 = scalar_lea.sflag [#allocation3], 1
    %13 = vsyncpa %s12, 0
    %14 = vsyncpa [#allocation5], 0
    %15 = vsyncpa [#allocation8], 0
    loop: start=0, step=1, limit=6
    $region2: #{tpu_custom_call.1} parent=1 // loop_pre_header
      _
    $region3: #{tpu_custom_call.1} parent=1 // loop_header
      %s17 = sphi 0, %s21
      %p18 = scmp.ge.s32.totalorder %s17, 6
      %s27 = sphi 0, %s29
      %s30 = sphi 0, %s27
      %s31 = sphi 0, %s30
      %s47 = sphi 0, %s31
      %s51 = sphi 0, %s51
      %s53 = sphi 0, %s51
      %s54 = sphi 0, %s53
      %s68 = sphi 0, %s54
      %s72 = sphi 0, %s72
      %s74 = sphi 0, %s72
      %s75 = sphi 0, %s74
      %s89 = sphi 0, %s75
      %s93 = sphi 0, %s93
      %s95 = sphi 0, %s93
      %s96 = sphi 0, %s95
      %s110 = sphi 0, %s96
      %s114 = sphi 0, %s114
      %s116 = sphi 0, %s114
      %s117 = sphi 0, %s116
      %s131 = sphi 0, %s117
      %s135 = sphi 0, %s135
      %s137 = sphi 0, %s135
      %s138 = sphi 0, %s137
      %s152 = sphi 0, %s138
      %s158 = sphi 0, %s160
      %s161 = sphi 0, %s158
      %s162 = sphi 0, %s161
      %s178 = sphi 0, %s162
    $region4: #{tpu_custom_call.1} parent=1 // loop_header_branch
      %20 = sbr.rel (%p18) target = $region8
    $region5: #{tpu_custom_call.1} parent=1 // loop_body
      %s22 = ssub.s32 %s17, 1
      %s23 = ssub.s32 %s17, 2
      %s24 = sadd.s32 %s17, 1
      %s25 = ssub.s32 %s17, %s24
      %p26 = scmp.eq.s32.totalorder %s25, 0
      %s28 = sadd.s32 %s27, 1
      %s29 = scalar_select %p26, %s27, %s28
      %p32 = pneg %p26
      %p33 = scmp.eq.s32.totalorder %s17, 3
      %p34 = por %p32, %p33
      %p35 = scmp.ne.s32.totalorder %s27, %s30
      %p36 = scmp.eq.s32.totalorder %s17, 0
      %p37 = por %p35, %p36
      %p38 = scmp.ne.s32.totalorder %s27, %s30
      %p39 = scmp.eq.s32.totalorder %s22, 3
      %p40 = por %p38, %p39
      %p41 = scmp.ne.s32.totalorder %s30, %s31
      %p42 = scmp.eq.s32.totalorder %s22, 0
      %p43 = por %p41, %p42
      %p44 = scmp.ne.s32.totalorder %s30, %s31
      %p45 = scmp.eq.s32.totalorder %s23, 3
      %p46 = por %p44, %p45
      %p48 = scmp.ne.s32.totalorder %s31, %s47
      %p49 = scmp.eq.s32.totalorder %s23, 0
      %p50 = por %p48, %p49
      %s52 = sadd.s32 %s51, 1
      %p55 = scmp.eq.s32.totalorder %s17, 3
      %p56 = scmp.ne.s32.totalorder %s51, %s53
      %p57 = scmp.eq.s32.totalorder %s17, 0
      %p58 = por %p56, %p57
      %p59 = scmp.ne.s32.totalorder %s51, %s53
      %p60 = scmp.eq.s32.totalorder %s22, 3
      %p61 = por %p59, %p60
      %p62 = scmp.ne.s32.totalorder %s53, %s54
      %p63 = scmp.eq.s32.totalorder %s22, 0
      %p64 = por %p62, %p63
      %p65 = scmp.ne.s32.totalorder %s53, %s54
      %p66 = scmp.eq.s32.totalorder %s23, 3
      %p67 = por %p65, %p66
      %p69 = scmp.ne.s32.totalorder %s54, %s68
      %p70 = scmp.eq.s32.totalorder %s23, 0
      %p71 = por %p69, %p70
      %s73 = sadd.s32 %s72, 1
      %p76 = scmp.eq.s32.totalorder %s17, 3
      %p77 = scmp.ne.s32.totalorder %s72, %s74
      %p78 = scmp.eq.s32.totalorder %s17, 0
      %p79 = por %p77, %p78
      %p80 = scmp.ne.s32.totalorder %s72, %s74
      %p81 = scmp.eq.s32.totalorder %s22, 3
      %p82 = por %p80, %p81
      %p83 = scmp.ne.s32.totalorder %s74, %s75
      %p84 = scmp.eq.s32.totalorder %s22, 0
      %p85 = por %p83, %p84
      %p86 = scmp.ne.s32.totalorder %s74, %s75
      %p87 = scmp.eq.s32.totalorder %s23, 3
      %p88 = por %p86, %p87
      %p90 = scmp.ne.s32.totalorder %s75, %s89
      %p91 = scmp.eq.s32.totalorder %s23, 0
      %p92 = por %p90, %p91
      %s94 = sadd.s32 %s93, 1
      %p97 = scmp.eq.s32.totalorder %s17, 3
      %p98 = scmp.ne.s32.totalorder %s93, %s95
      %p99 = scmp.eq.s32.totalorder %s17, 0
      %p100 = por %p98, %p99
      %p101 = scmp.ne.s32.totalorder %s93, %s95
      %p102 = scmp.eq.s32.totalorder %s22, 3
      %p103 = por %p101, %p102
      %p104 = scmp.ne.s32.totalorder %s95, %s96
      %p105 = scmp.eq.s32.totalorder %s22, 0
      %p106 = por %p104, %p105
      %p107 = scmp.ne.s32.totalorder %s95, %s96
      %p108 = scmp.eq.s32.totalorder %s23, 3
      %p109 = por %p107, %p108
      %p111 = scmp.ne.s32.totalorder %s96, %s110
      %p112 = scmp.eq.s32.totalorder %s23, 0
      %p113 = por %p111, %p112
      %s115 = sadd.s32 %s114, 1
      %p118 = scmp.eq.s32.totalorder %s17, 3
      %p119 = scmp.ne.s32.totalorder %s114, %s116
      %p120 = scmp.eq.s32.totalorder %s17, 0
      %p121 = por %p119, %p120
      %p122 = scmp.ne.s32.totalorder %s114, %s116
      %p123 = scmp.eq.s32.totalorder %s22, 3
      %p124 = por %p122, %p123
      %p125 = scmp.ne.s32.totalorder %s116, %s117
      %p126 = scmp.eq.s32.totalorder %s22, 0
      %p127 = por %p125, %p126
      %p128 = scmp.ne.s32.totalorder %s116, %s117
      %p129 = scmp.eq.s32.totalorder %s23, 3
      %p130 = por %p128, %p129
      %p132 = scmp.ne.s32.totalorder %s117, %s131
      %p133 = scmp.eq.s32.totalorder %s23, 0
      %p134 = por %p132, %p133
      %s136 = sadd.s32 %s135, 1
      %p139 = scmp.eq.s32.totalorder %s17, 3
      %p140 = scmp.ne.s32.totalorder %s135, %s137
      %p141 = scmp.eq.s32.totalorder %s17, 0
      %p142 = por %p140, %p141
      %p143 = scmp.ne.s32.totalorder %s135, %s137
      %p144 = scmp.eq.s32.totalorder %s22, 3
      %p145 = por %p143, %p144
      %p146 = scmp.ne.s32.totalorder %s137, %s138
      %p147 = scmp.eq.s32.totalorder %s22, 0
      %p148 = por %p146, %p147
      %p149 = scmp.ne.s32.totalorder %s137, %s138
      %p150 = scmp.eq.s32.totalorder %s23, 3
      %p151 = por %p149, %p150
      %p153 = scmp.ne.s32.totalorder %s138, %s152
      %p154 = scmp.eq.s32.totalorder %s23, 0
      %p155 = por %p153, %p154
      %s156 = ssub.s32 %s17, %s24
      %p157 = scmp.eq.s32.totalorder %s156, 0
      %s159 = sadd.s32 %s158, 1
      %s160 = scalar_select %p157, %s158, %s159
      %p163 = pneg %p157
      %p164 = scmp.eq.s32.totalorder %s17, 3
      %p165 = por %p163, %p164
      %p166 = scmp.ne.s32.totalorder %s158, %s161
      %p167 = scmp.eq.s32.totalorder %s17, 0
      %p168 = por %p166, %p167
      %p169 = scmp.ne.s32.totalorder %s158, %s161
      %p170 = scmp.eq.s32.totalorder %s22, 3
      %p171 = por %p169, %p170
      %p172 = scmp.ne.s32.totalorder %s161, %s162
      %p173 = scmp.eq.s32.totalorder %s22, 0
      %p174 = por %p172, %p173
      %p175 = scmp.ne.s32.totalorder %s161, %s162
      %p176 = scmp.eq.s32.totalorder %s23, 3
      %p177 = por %p175, %p176
      %p179 = scmp.ne.s32.totalorder %s162, %s178
      %p180 = scmp.eq.s32.totalorder %s23, 0
      %p181 = por %p179, %p180
      %p182 = scmp.le.s32.totalorder 1, %s17
      %p183 = scmp.lt.s32.totalorder %s17, 5
      %p184 = pnand %p182, %p183
      %p185 = pneg %p184
      // Predicated region
      $region9: #{tpu_custom_call.1} parent=5 // pred_check
        _
      $region10: #{tpu_custom_call.1} parent=5 // pred_check_branch
        %187 = sbr.rel (%p184) target = $region12
      $region11: #{tpu_custom_call.1} parent=5 // pred_region
        %s188 = ssub.s32 %s17, 1
        // Predicated region
        $region13: #{tpu_custom_call.1} parent=11 // pred_check
          %p189 = pneg %p64
        $region14: #{tpu_custom_call.1} parent=11 // pred_check_branch
          %191 = sbr.rel (%p189) target = $region16
        $region15: #{tpu_custom_call.1} parent=11 // pred_region
          %s193 = ssub.s32 6144, 6144
          %194 = vsyncadd [#allocation5], %s193
          %s195 = sshll.u32 [#allocation4], 4
          %s196 = int_to_ptr.vmem [resolvable:$true] %s195
          %201 = dma.hbm_to_vmem [thread:$0]  %s1, 6144, %s196, [#allocation5], 64, 64, 4
        $region16: #{tpu_custom_call.1} parent=11 // pred_fallthru
          _
        // Predicated region
        $region17: #{tpu_custom_call.1} parent=11 // pred_check
          %p202 = pneg %p85
        $region18: #{tpu_custom_call.1} parent=11 // pred_check_branch
          %204 = sbr.rel (%p202) target = $region20
        $region19: #{tpu_custom_call.1} parent=11 // pred_region
          %s206 = ssub.s32 16, 16
          %207 = vsyncadd [#allocation5], %s206
          %s209 = sshll.u32 [#allocation6], 4
          %s210 = int_to_ptr.vmem [resolvable:$true] %s209
          %212 = dma.hbm_to_vmem [thread:$0]  %s2, 16, %s210, [#allocation5]
        $region20: #{tpu_custom_call.1} parent=11 // pred_fallthru
          _
        // Predicated region
        $region21: #{tpu_custom_call.1} parent=11 // pred_check
          %p213 = pneg %p106
        $region22: #{tpu_custom_call.1} parent=11 // pred_check_branch
          %215 = sbr.rel (%p213) target = $region24
        $region23: #{tpu_custom_call.1} parent=11 // pred_region
          %s217 = ssub.s32 1024, 1024
          %218 = vsyncadd [#allocation8], %s217
          %s219 = sshll.u32 [#allocation7], 4
          %s220 = int_to_ptr.vmem [resolvable:$true] %s219
          %225 = dma.hbm_to_vmem [thread:$0]  %s3, 1024, %s220, [#allocation8], 64, 64, 4
        $region24: #{tpu_custom_call.1} parent=11 // pred_fallthru
          _
        // Predicated region
        $region25: #{tpu_custom_call.1} parent=11 // pred_check
          %p226 = pneg %p127
        $region26: #{tpu_custom_call.1} parent=11 // pred_check_branch
          %228 = sbr.rel (%p226) target = $region28
        $region27: #{tpu_custom_call.1} parent=11 // pred_region
          %s230 = ssub.s32 16, 16
          %231 = vsyncadd [#allocation8], %s230
          %s233 = sshll.u32 [#allocation9], 4
          %s234 = int_to_ptr.vmem [resolvable:$true] %s233
          %236 = dma.hbm_to_vmem [thread:$0]  %s4, 16, %s234, [#allocation8]
        $region28: #{tpu_custom_call.1} parent=11 // pred_fallthru
          _
        // Predicated region
        $region29: #{tpu_custom_call.1} parent=11 // pred_check
          %p237 = pneg %p148
        $region30: #{tpu_custom_call.1} parent=11 // pred_check_branch
          %239 = sbr.rel (%p237) target = $region32
        $region31: #{tpu_custom_call.1} parent=11 // pred_region
          _
        $region32: #{tpu_custom_call.1} parent=11 // pred_fallthru
          _
      $region12: #{tpu_custom_call.1} parent=5 // pred_fallthru
        _
      %p240 = scmp.lt.s32.totalorder %s17, 4
      // Predicated region
      $region33: #{tpu_custom_call.1} parent=5 // pred_check
        %p241 = pneg %p240
      $region34: #{tpu_custom_call.1} parent=5 // pred_check_branch
        %243 = sbr.rel (%p241) target = $region36
      $region35: #{tpu_custom_call.1} parent=5 // pred_region
        // Predicated region
        $region37: #{tpu_custom_call.1} parent=35 // pred_check
          %p244 = pneg %p37
        $region38: #{tpu_custom_call.1} parent=35 // pred_check_branch
          %246 = sbr.rel (%p244) target = $region40
        $region39: #{tpu_custom_call.1} parent=35 // pred_region
          %s247 = sand.u32 %s27, 1
          %s248 = scalar_lea.sflag [#allocation3], %s247
          %s249 = sand.u32 %s27, 1
          %s250 = smul.addr %s249, 768
          %s251 = scalar_lea.vmem [#allocation2], %s250
          %s252 = smul.u32 16, %s17
          %s254 = ssub.s32 12288, 12288
          %255 = vsyncadd %s248, %s254
          %s256 = smul.addr %s252, 6
          %s257 = smul.addr %s256, 128
          %s258 = scalar_lea.hbm %s0, %s257
          %s259 = sshll.u32 %s251, 4
          %s260 = int_to_ptr.vmem [resolvable:$true] %s259
          %265 = dma.hbm_to_vmem [thread:$0]  %s258, 12288, %s260, %s248, 768, 768, 48
        $region40: #{tpu_custom_call.1} parent=35 // pred_fallthru
          _
      $region36: #{tpu_custom_call.1} parent=5 // pred_fallthru
        _
      %p266 = scmp.le.s32.totalorder 1, %s17
      %p267 = scmp.lt.s32.totalorder %s17, 5
      %p268 = pnand %p266, %p267
      %p269 = pneg %p268
      // Predicated region
      $region41: #{tpu_custom_call.1} parent=5 // pred_check
        _
      $region42: #{tpu_custom_call.1} parent=5 // pred_check_branch
        %271 = sbr.rel (%p268) target = $region44
      $region43: #{tpu_custom_call.1} parent=5 // pred_region
        %s272 = ssub.s32 %s17, 1
        %s273 = sand.u32 %s30, 1
        %s274 = scalar_lea.sflag [#allocation3], %s273
        %s275 = sand.u32 %s30, 1
        %s276 = smul.addr %s275, 768
        %s277 = scalar_lea.vmem [#allocation2], %s276
        // Predicated region
        $region45: #{tpu_custom_call.1} parent=43 // pred_check
          %p278 = pneg %p43
        $region46: #{tpu_custom_call.1} parent=43 // pred_check_branch
          %280 = sbr.rel (%p278) target = $region48
        $region47: #{tpu_custom_call.1} parent=43 // pred_region
          %281 = dma.done %s274, 12288
        $region48: #{tpu_custom_call.1} parent=43 // pred_fallthru
          _
        // Predicated region
        $region49: #{tpu_custom_call.1} parent=43 // pred_check
          %p282 = pneg %p64
        $region50: #{tpu_custom_call.1} parent=43 // pred_check_branch
          %284 = sbr.rel (%p282) target = $region52
        $region51: #{tpu_custom_call.1} parent=43 // pred_region
          %285 = dma.done [#allocation5], 6144
        $region52: #{tpu_custom_call.1} parent=43 // pred_fallthru
          _
        // Predicated region
        $region53: #{tpu_custom_call.1} parent=43 // pred_check
          %p286 = pneg %p85
        $region54: #{tpu_custom_call.1} parent=43 // pred_check_branch
          %288 = sbr.rel (%p286) target = $region56
        $region55: #{tpu_custom_call.1} parent=43 // pred_region
          %289 = dma.done [#allocation5], 16
        $region56: #{tpu_custom_call.1} parent=43 // pred_fallthru
          _
        // Predicated region
        $region57: #{tpu_custom_call.1} parent=43 // pred_check
          %p290 = pneg %p106
        $region58: #{tpu_custom_call.1} parent=43 // pred_check_branch
          %292 = sbr.rel (%p290) target = $region60
        $region59: #{tpu_custom_call.1} parent=43 // pred_region
          %293 = dma.done [#allocation8], 1024
        $region60: #{tpu_custom_call.1} parent=43 // pred_fallthru
          _
        // Predicated region
        $region61: #{tpu_custom_call.1} parent=43 // pred_check
          %p294 = pneg %p127
        $region62: #{tpu_custom_call.1} parent=43 // pred_check_branch
          %296 = sbr.rel (%p294) target = $region64
        $region63: #{tpu_custom_call.1} parent=43 // pred_region
          %297 = dma.done [#allocation8], 16
        $region64: #{tpu_custom_call.1} parent=43 // pred_fallthru
          _
        %s298 = sand.u32 %s30, 1
        %s299 = scalar_lea.sflag [#allocation3], %s298
        %s300 = sand.u32 %s30, 1
        %s301 = smul.addr %s300, 768
        %s302 = scalar_lea.vmem [#allocation2], %s301
        %p303 = pneg %p43
        %p304 = pneg %p40
        %p305 = pneg %p64
        %p306 = pneg %p61
        %p307 = pneg %p85
        %p308 = pneg %p82
        %p309 = pneg %p106
        %p310 = pneg %p103
        %p311 = pneg %p127
        %p312 = pneg %p124
        %p313 = pneg %p148
        %p314 = pneg %p145
        %p315 = pneg %p174
        %p316 = pneg %p171
        %s317 = smul.u32 64, %s22
        %p318 = scmp.lt.s32.totalorder %s317, 255
        %s319 = scalar_select %p318, %s317, 255
        %s320 = smul.addr %s319, 8
        %s321 = scalar_lea.vmem %s6, %s320
        %s322 = smul.u32 16, %s22
        %s323 = smul.u32 64, %s22
        %p324 = scmp.lt.s32.totalorder %s323, 255
        %s325 = scalar_select %p324, %s323, 255
        %s326 = smul.addr %s325, 8
        %s327 = scalar_lea.vmem %s6, %s326
        %s328 = smul.u32 64, %s22
        %v330 = vld [vmem:[%s277] sm:$0xff]
        %v331 = vld [vmem:[%s277 + $0x8] sm:$0xff]
        %v332 = vld [vmem:[%s277 + $0x10] sm:$0xff]
        %v333 = vld [vmem:[%s277 + $0x18] sm:$0xff]
        %v334 = vld [vmem:[%s277 + $0x20] sm:$0xff]
        %v335 = vld [vmem:[%s277 + $0x28] sm:$0xff]
        %v336 = vld [vmem:[%s277 + $0x30] sm:$0xff]
        %v337 = vld [vmem:[%s277 + $0x38] sm:$0xff]
        %v338 = vld [vmem:[%s277 + $0x40] sm:$0xff]
        %v339 = vld [vmem:[%s277 + $0x48] sm:$0xff]
        %v340 = vld [vmem:[%s277 + $0x50] sm:$0xff]
        %v341 = vld [vmem:[%s277 + $0x58] sm:$0xff]
        %v342 = vld [vmem:[%s277 + $0x60] sm:$0xff]
        %v343 = vld [vmem:[%s277 + $0x68] sm:$0xff]
        %v344 = vld [vmem:[%s277 + $0x70] sm:$0xff]
        %v345 = vld [vmem:[%s277 + $0x78] sm:$0xff]
        %v346 = vld [vmem:[%s277 + $0x80] sm:$0xff]
        %v347 = vld [vmem:[%s277 + $0x88] sm:$0xff]
        %v348 = vld [vmem:[%s277 + $0x90] sm:$0xff]
        %v349 = vld [vmem:[%s277 + $0x98] sm:$0xff]
        %v350 = vld [vmem:[%s277 + $0xa0] sm:$0xff]
        %v351 = vld [vmem:[%s277 + $0xa8] sm:$0xff]
        %v352 = vld [vmem:[%s277 + $0xb0] sm:$0xff]
        %v353 = vld [vmem:[%s277 + $0xb8] sm:$0xff]
        %v354 = vld [vmem:[%s277 + $0xc0] sm:$0xff]
        %v355 = vld [vmem:[%s277 + $0xc8] sm:$0xff]
        %v356 = vld [vmem:[%s277 + $0xd0] sm:$0xff]
        %v357 = vld [vmem:[%s277 + $0xd8] sm:$0xff]
        %v358 = vld [vmem:[%s277 + $0xe0] sm:$0xff]
        %v359 = vld [vmem:[%s277 + $0xe8] sm:$0xff]
        %v360 = vld [vmem:[%s277 + $0xf0] sm:$0xff]
        %v361 = vld [vmem:[%s277 + $0xf8] sm:$0xff]
        %v362 = vld [vmem:[%s277 + $0x100] sm:$0xff]
        %v363 = vld [vmem:[%s277 + $0x108] sm:$0xff]
        %v364 = vld [vmem:[%s277 + $0x110] sm:$0xff]
        %v365 = vld [vmem:[%s277 + $0x118] sm:$0xff]
        %v366 = vld [vmem:[%s277 + $0x120] sm:$0xff]
        %v367 = vld [vmem:[%s277 + $0x128] sm:$0xff]
        %v368 = vld [vmem:[%s277 + $0x130] sm:$0xff]
        %v369 = vld [vmem:[%s277 + $0x138] sm:$0xff]
        %v370 = vld [vmem:[%s277 + $0x140] sm:$0xff]
        %v371 = vld [vmem:[%s277 + $0x148] sm:$0xff]
        %v372 = vld [vmem:[%s277 + $0x150] sm:$0xff]
        %v373 = vld [vmem:[%s277 + $0x158] sm:$0xff]
        %v374 = vld [vmem:[%s277 + $0x160] sm:$0xff]
        %v375 = vld [vmem:[%s277 + $0x168] sm:$0xff]
        %v376 = vld [vmem:[%s277 + $0x170] sm:$0xff]
        %v377 = vld [vmem:[%s277 + $0x178] sm:$0xff]
        %v378 = vld [vmem:[%s277 + $0x180] sm:$0xff]
        %v379 = vld [vmem:[%s277 + $0x188] sm:$0xff]
        %v380 = vld [vmem:[%s277 + $0x190] sm:$0xff]
        %v381 = vld [vmem:[%s277 + $0x198] sm:$0xff]
        %v382 = vld [vmem:[%s277 + $0x1a0] sm:$0xff]
        %v383 = vld [vmem:[%s277 + $0x1a8] sm:$0xff]
        %v384 = vld [vmem:[%s277 + $0x1b0] sm:$0xff]
        %v385 = vld [vmem:[%s277 + $0x1b8] sm:$0xff]
        %v386 = vld [vmem:[%s277 + $0x1c0] sm:$0xff]
        %v387 = vld [vmem:[%s277 + $0x1c8] sm:$0xff]
        %v388 = vld [vmem:[%s277 + $0x1d0] sm:$0xff]
        %v389 = vld [vmem:[%s277 + $0x1d8] sm:$0xff]
        %v390 = vld [vmem:[%s277 + $0x1e0] sm:$0xff]
        %v391 = vld [vmem:[%s277 + $0x1e8] sm:$0xff]
        %v392 = vld [vmem:[%s277 + $0x1f0] sm:$0xff]
        %v393 = vld [vmem:[%s277 + $0x1f8] sm:$0xff]
        %v394 = vld [vmem:[%s277 + $0x200] sm:$0xff]
        %v395 = vld [vmem:[%s277 + $0x208] sm:$0xff]
        %v396 = vld [vmem:[%s277 + $0x210] sm:$0xff]
        %v397 = vld [vmem:[%s277 + $0x218] sm:$0xff]
        %v398 = vld [vmem:[%s277 + $0x220] sm:$0xff]
        %v399 = vld [vmem:[%s277 + $0x228] sm:$0xff]
        %v400 = vld [vmem:[%s277 + $0x230] sm:$0xff]
        %v401 = vld [vmem:[%s277 + $0x238] sm:$0xff]
        %v402 = vld [vmem:[%s277 + $0x240] sm:$0xff]
        %v403 = vld [vmem:[%s277 + $0x248] sm:$0xff]
        %v404 = vld [vmem:[%s277 + $0x250] sm:$0xff]
        %v405 = vld [vmem:[%s277 + $0x258] sm:$0xff]
        %v406 = vld [vmem:[%s277 + $0x260] sm:$0xff]
        %v407 = vld [vmem:[%s277 + $0x268] sm:$0xff]
        %v408 = vld [vmem:[%s277 + $0x270] sm:$0xff]
        %v409 = vld [vmem:[%s277 + $0x278] sm:$0xff]
        %v410 = vld [vmem:[%s277 + $0x280] sm:$0xff]
        %v411 = vld [vmem:[%s277 + $0x288] sm:$0xff]
        %v412 = vld [vmem:[%s277 + $0x290] sm:$0xff]
        %v413 = vld [vmem:[%s277 + $0x298] sm:$0xff]
        %v414 = vld [vmem:[%s277 + $0x2a0] sm:$0xff]
        %v415 = vld [vmem:[%s277 + $0x2a8] sm:$0xff]
        %v416 = vld [vmem:[%s277 + $0x2b0] sm:$0xff]
        %v417 = vld [vmem:[%s277 + $0x2b8] sm:$0xff]
        %v418 = vld [vmem:[%s277 + $0x2c0] sm:$0xff]
        %v419 = vld [vmem:[%s277 + $0x2c8] sm:$0xff]
        %v420 = vld [vmem:[%s277 + $0x2d0] sm:$0xff]
        %v421 = vld [vmem:[%s277 + $0x2d8] sm:$0xff]
        %v422 = vld [vmem:[%s277 + $0x2e0] sm:$0xff]
        %v423 = vld [vmem:[%s277 + $0x2e8] sm:$0xff]
        %v424 = vld [vmem:[%s277 + $0x2f0] sm:$0xff]
        %v425 = vld [vmem:[%s277 + $0x2f8] sm:$0xff]
        %v426 = vunpack.c.l.s8.bf16 %v330
        %v427 = vunpack.c.l.s8.bf16 %v331
        %v428 = vunpack.c.l.s8.bf16 %v332
        %v429 = vunpack.c.l.s8.bf16 %v333
        %v430 = vunpack.c.l.s8.bf16 %v334
        %v431 = vunpack.c.l.s8.bf16 %v335
        %v432 = vunpack.c.h.s8.bf16 %v330
        %v433 = vunpack.c.h.s8.bf16 %v331
        %v434 = vunpack.c.h.s8.bf16 %v332
        %v435 = vunpack.c.h.s8.bf16 %v333
        %v436 = vunpack.c.h.s8.bf16 %v334
        %v437 = vunpack.c.h.s8.bf16 %v335
        %v438 = vunpack.c.l.s8.bf16 %v336
        %v439 = vunpack.c.l.s8.bf16 %v337
        %v440 = vunpack.c.l.s8.bf16 %v338
        %v441 = vunpack.c.l.s8.bf16 %v339
        %v442 = vunpack.c.l.s8.bf16 %v340
        %v443 = vunpack.c.l.s8.bf16 %v341
        %v444 = vunpack.c.h.s8.bf16 %v336
        %v445 = vunpack.c.h.s8.bf16 %v337
        %v446 = vunpack.c.h.s8.bf16 %v338
        %v447 = vunpack.c.h.s8.bf16 %v339
        %v448 = vunpack.c.h.s8.bf16 %v340
        %v449 = vunpack.c.h.s8.bf16 %v341
        %v450 = vunpack.c.l.s8.bf16 %v342
        %v451 = vunpack.c.l.s8.bf16 %v343
        %v452 = vunpack.c.l.s8.bf16 %v344
        %v453 = vunpack.c.l.s8.bf16 %v345
        %v454 = vunpack.c.l.s8.bf16 %v346
        %v455 = vunpack.c.l.s8.bf16 %v347
        %v456 = vunpack.c.h.s8.bf16 %v342
        %v457 = vunpack.c.h.s8.bf16 %v343
        %v458 = vunpack.c.h.s8.bf16 %v344
        %v459 = vunpack.c.h.s8.bf16 %v345
        %v460 = vunpack.c.h.s8.bf16 %v346
        %v461 = vunpack.c.h.s8.bf16 %v347
        %v462 = vunpack.c.l.s8.bf16 %v348
        %v463 = vunpack.c.l.s8.bf16 %v349
        %v464 = vunpack.c.l.s8.bf16 %v350
        %v465 = vunpack.c.l.s8.bf16 %v351
        %v466 = vunpack.c.l.s8.bf16 %v352
        %v467 = vunpack.c.l.s8.bf16 %v353
        %v468 = vunpack.c.h.s8.bf16 %v348
        %v469 = vunpack.c.h.s8.bf16 %v349
        %v470 = vunpack.c.h.s8.bf16 %v350
        %v471 = vunpack.c.h.s8.bf16 %v351
        %v472 = vunpack.c.h.s8.bf16 %v352
        %v473 = vunpack.c.h.s8.bf16 %v353
        %v474 = vunpack.c.l.s8.bf16 %v354
        %v475 = vunpack.c.l.s8.bf16 %v355
        %v476 = vunpack.c.l.s8.bf16 %v356
        %v477 = vunpack.c.l.s8.bf16 %v357
        %v478 = vunpack.c.l.s8.bf16 %v358
        %v479 = vunpack.c.l.s8.bf16 %v359
        %v480 = vunpack.c.h.s8.bf16 %v354
        %v481 = vunpack.c.h.s8.bf16 %v355
        %v482 = vunpack.c.h.s8.bf16 %v356
        %v483 = vunpack.c.h.s8.bf16 %v357
        %v484 = vunpack.c.h.s8.bf16 %v358
        %v485 = vunpack.c.h.s8.bf16 %v359
        %v486 = vunpack.c.l.s8.bf16 %v360
        %v487 = vunpack.c.l.s8.bf16 %v361
        %v488 = vunpack.c.l.s8.bf16 %v362
        %v489 = vunpack.c.l.s8.bf16 %v363
        %v490 = vunpack.c.l.s8.bf16 %v364
        %v491 = vunpack.c.l.s8.bf16 %v365
        %v492 = vunpack.c.h.s8.bf16 %v360
        %v493 = vunpack.c.h.s8.bf16 %v361
        %v494 = vunpack.c.h.s8.bf16 %v362
        %v495 = vunpack.c.h.s8.bf16 %v363
        %v496 = vunpack.c.h.s8.bf16 %v364
        %v497 = vunpack.c.h.s8.bf16 %v365
        %v498 = vunpack.c.l.s8.bf16 %v366
        %v499 = vunpack.c.l.s8.bf16 %v367
        %v500 = vunpack.c.l.s8.bf16 %v368
        %v501 = vunpack.c.l.s8.bf16 %v369
        %v502 = vunpack.c.l.s8.bf16 %v370
        %v503 = vunpack.c.l.s8.bf16 %v371
        %v504 = vunpack.c.h.s8.bf16 %v366
        %v505 = vunpack.c.h.s8.bf16 %v367
        %v506 = vunpack.c.h.s8.bf16 %v368
        %v507 = vunpack.c.h.s8.bf16 %v369
        %v508 = vunpack.c.h.s8.bf16 %v370
        %v509 = vunpack.c.h.s8.bf16 %v371
        %v510 = vunpack.c.l.s8.bf16 %v372
        %v511 = vunpack.c.l.s8.bf16 %v373
        %v512 = vunpack.c.l.s8.bf16 %v374
        %v513 = vunpack.c.l.s8.bf16 %v375
        %v514 = vunpack.c.l.s8.bf16 %v376
        %v515 = vunpack.c.l.s8.bf16 %v377
        %v516 = vunpack.c.h.s8.bf16 %v372
        %v517 = vunpack.c.h.s8.bf16 %v373
        %v518 = vunpack.c.h.s8.bf16 %v374
        %v519 = vunpack.c.h.s8.bf16 %v375
        %v520 = vunpack.c.h.s8.bf16 %v376
        %v521 = vunpack.c.h.s8.bf16 %v377
        %v522 = vunpack.c.l.s8.bf16 %v378
        %v523 = vunpack.c.l.s8.bf16 %v379
        %v524 = vunpack.c.l.s8.bf16 %v380
        %v525 = vunpack.c.l.s8.bf16 %v381
        %v526 = vunpack.c.l.s8.bf16 %v382
        %v527 = vunpack.c.l.s8.bf16 %v383
        %v528 = vunpack.c.h.s8.bf16 %v378
        %v529 = vunpack.c.h.s8.bf16 %v379
        %v530 = vunpack.c.h.s8.bf16 %v380
        %v531 = vunpack.c.h.s8.bf16 %v381
        %v532 = vunpack.c.h.s8.bf16 %v382
        %v533 = vunpack.c.h.s8.bf16 %v383
        %v534 = vunpack.c.l.s8.bf16 %v384
        %v535 = vunpack.c.l.s8.bf16 %v385
        %v536 = vunpack.c.l.s8.bf16 %v386
        %v537 = vunpack.c.l.s8.bf16 %v387
        %v538 = vunpack.c.l.s8.bf16 %v388
        %v539 = vunpack.c.l.s8.bf16 %v389
        %v540 = vunpack.c.h.s8.bf16 %v384
        %v541 = vunpack.c.h.s8.bf16 %v385
        %v542 = vunpack.c.h.s8.bf16 %v386
        %v543 = vunpack.c.h.s8.bf16 %v387
        %v544 = vunpack.c.h.s8.bf16 %v388
        %v545 = vunpack.c.h.s8.bf16 %v389
        %v546 = vunpack.c.l.s8.bf16 %v390
        %v547 = vunpack.c.l.s8.bf16 %v391
        %v548 = vunpack.c.l.s8.bf16 %v392
        %v549 = vunpack.c.l.s8.bf16 %v393
        %v550 = vunpack.c.l.s8.bf16 %v394
        %v551 = vunpack.c.l.s8.bf16 %v395
        %v552 = vunpack.c.h.s8.bf16 %v390
        %v553 = vunpack.c.h.s8.bf16 %v391
        %v554 = vunpack.c.h.s8.bf16 %v392
        %v555 = vunpack.c.h.s8.bf16 %v393
        %v556 = vunpack.c.h.s8.bf16 %v394
        %v557 = vunpack.c.h.s8.bf16 %v395
        %v558 = vunpack.c.l.s8.bf16 %v396
        %v559 = vunpack.c.l.s8.bf16 %v397
        %v560 = vunpack.c.l.s8.bf16 %v398
        %v561 = vunpack.c.l.s8.bf16 %v399
        %v562 = vunpack.c.l.s8.bf16 %v400
        %v563 = vunpack.c.l.s8.bf16 %v401
        %v564 = vunpack.c.h.s8.bf16 %v396
        %v565 = vunpack.c.h.s8.bf16 %v397
        %v566 = vunpack.c.h.s8.bf16 %v398
        %v567 = vunpack.c.h.s8.bf16 %v399
        %v568 = vunpack.c.h.s8.bf16 %v400
        %v569 = vunpack.c.h.s8.bf16 %v401
        %v570 = vunpack.c.l.s8.bf16 %v402
        %v571 = vunpack.c.l.s8.bf16 %v403
        %v572 = vunpack.c.l.s8.bf16 %v404
        %v573 = vunpack.c.l.s8.bf16 %v405
        %v574 = vunpack.c.l.s8.bf16 %v406
        %v575 = vunpack.c.l.s8.bf16 %v407
        %v576 = vunpack.c.h.s8.bf16 %v402
        %v577 = vunpack.c.h.s8.bf16 %v403
        %v578 = vunpack.c.h.s8.bf16 %v404
        %v579 = vunpack.c.h.s8.bf16 %v405
        %v580 = vunpack.c.h.s8.bf16 %v406
        %v581 = vunpack.c.h.s8.bf16 %v407
        %v582 = vunpack.c.l.s8.bf16 %v408
        %v583 = vunpack.c.l.s8.bf16 %v409
        %v584 = vunpack.c.l.s8.bf16 %v410
        %v585 = vunpack.c.l.s8.bf16 %v411
        %v586 = vunpack.c.l.s8.bf16 %v412
        %v587 = vunpack.c.l.s8.bf16 %v413
        %v588 = vunpack.c.h.s8.bf16 %v408
        %v589 = vunpack.c.h.s8.bf16 %v409
        %v590 = vunpack.c.h.s8.bf16 %v410
        %v591 = vunpack.c.h.s8.bf16 %v411
        %v592 = vunpack.c.h.s8.bf16 %v412
        %v593 = vunpack.c.h.s8.bf16 %v413
        %v594 = vunpack.c.l.s8.bf16 %v414
        %v595 = vunpack.c.l.s8.bf16 %v415
        %v596 = vunpack.c.l.s8.bf16 %v416
        %v597 = vunpack.c.l.s8.bf16 %v417
        %v598 = vunpack.c.l.s8.bf16 %v418
        %v599 = vunpack.c.l.s8.bf16 %v419
        %v600 = vunpack.c.h.s8.bf16 %v414
        %v601 = vunpack.c.h.s8.bf16 %v415
        %v602 = vunpack.c.h.s8.bf16 %v416
        %v603 = vunpack.c.h.s8.bf16 %v417
        %v604 = vunpack.c.h.s8.bf16 %v418
        %v605 = vunpack.c.h.s8.bf16 %v419
        %v606 = vunpack.c.l.s8.bf16 %v420
        %v607 = vunpack.c.l.s8.bf16 %v421
        %v608 = vunpack.c.l.s8.bf16 %v422
        %v609 = vunpack.c.l.s8.bf16 %v423
        %v610 = vunpack.c.l.s8.bf16 %v424
        %v611 = vunpack.c.l.s8.bf16 %v425
        %v612 = vunpack.c.h.s8.bf16 %v420
        %v613 = vunpack.c.h.s8.bf16 %v421
        %v614 = vunpack.c.h.s8.bf16 %v422
        %v615 = vunpack.c.h.s8.bf16 %v423
        %v616 = vunpack.c.h.s8.bf16 %v424
        %v617 = vunpack.c.h.s8.bf16 %v425
        %v618 = vld [vmem:[#allocation4] sm:$0xf]
        %v619 = vld [vmem:[#allocation4 + $0x4] sm:$0xf]
        %v620 = vld [vmem:[#allocation4 + $0x8] sm:$0xf]
        %v621 = vld [vmem:[#allocation4 + $0xc] sm:$0xf]
        %v622 = vld [vmem:[#allocation4 + $0x10] sm:$0xf]
        %v623 = vld [vmem:[#allocation4 + $0x14] sm:$0xf]
        %v624 = vld [vmem:[#allocation4 + $0x18] sm:$0xf]
        %v625 = vld [vmem:[#allocation4 + $0x1c] sm:$0xf]
        %v626 = vld [vmem:[#allocation4 + $0x20] sm:$0xf]
        %v627 = vld [vmem:[#allocation4 + $0x24] sm:$0xf]
        %v628 = vld [vmem:[#allocation4 + $0x28] sm:$0xf]
        %v629 = vld [vmem:[#allocation4 + $0x2c] sm:$0xf]
        %v630 = vld [vmem:[#allocation4 + $0x30] sm:$0xf]
        %v631 = vld [vmem:[#allocation4 + $0x34] sm:$0xf]
        %v632 = vld [vmem:[#allocation4 + $0x38] sm:$0xf]
        %v633 = vld [vmem:[#allocation4 + $0x3c] sm:$0xf]
        %v634 = vld [vmem:[#allocation4 + $0x40] sm:$0xf]
        %v635 = vld [vmem:[#allocation4 + $0x44] sm:$0xf]
        %v636 = vld [vmem:[#allocation4 + $0x48] sm:$0xf]
        %v637 = vld [vmem:[#allocation4 + $0x4c] sm:$0xf]
        %v638 = vld [vmem:[#allocation4 + $0x50] sm:$0xf]
        %v639 = vld [vmem:[#allocation4 + $0x54] sm:$0xf]
        %v640 = vld [vmem:[#allocation4 + $0x58] sm:$0xf]
        %v641 = vld [vmem:[#allocation4 + $0x5c] sm:$0xf]
        %v642 = vld [vmem:[#allocation4 + $0x60] sm:$0xf]
        %v643 = vld [vmem:[#allocation4 + $0x64] sm:$0xf]
        %v644 = vld [vmem:[#allocation4 + $0x68] sm:$0xf]
        %v645 = vld [vmem:[#allocation4 + $0x6c] sm:$0xf]
        %v646 = vld [vmem:[#allocation4 + $0x70] sm:$0xf]
        %v647 = vld [vmem:[#allocation4 + $0x74] sm:$0xf]
        %v648 = vld [vmem:[#allocation4 + $0x78] sm:$0xf]
        %v649 = vld [vmem:[#allocation4 + $0x7c] sm:$0xf]
        %v650 = vld [vmem:[#allocation4 + $0x80] sm:$0xf]
        %v651 = vld [vmem:[#allocation4 + $0x84] sm:$0xf]
        %v652 = vld [vmem:[#allocation4 + $0x88] sm:$0xf]
        %v653 = vld [vmem:[#allocation4 + $0x8c] sm:$0xf]
        %v654 = vld [vmem:[#allocation4 + $0x90] sm:$0xf]
        %v655 = vld [vmem:[#allocation4 + $0x94] sm:$0xf]
        %v656 = vld [vmem:[#allocation4 + $0x98] sm:$0xf]
        %v657 = vld [vmem:[#allocation4 + $0x9c] sm:$0xf]
        %v658 = vld [vmem:[#allocation4 + $0xa0] sm:$0xf]
        %v659 = vld [vmem:[#allocation4 + $0xa4] sm:$0xf]
        %v660 = vld [vmem:[#allocation4 + $0xa8] sm:$0xf]
        %v661 = vld [vmem:[#allocation4 + $0xac] sm:$0xf]
        %v662 = vld [vmem:[#allocation4 + $0xb0] sm:$0xf]
        %v663 = vld [vmem:[#allocation4 + $0xb4] sm:$0xf]
        %v664 = vld [vmem:[#allocation4 + $0xb8] sm:$0xf]
        %v665 = vld [vmem:[#allocation4 + $0xbc] sm:$0xf]
        %v666 = vld [vmem:[#allocation4 + $0xc0] sm:$0xf]
        %v667 = vld [vmem:[#allocation4 + $0xc4] sm:$0xf]
        %v668 = vld [vmem:[#allocation4 + $0xc8] sm:$0xf]
        %v669 = vld [vmem:[#allocation4 + $0xcc] sm:$0xf]
        %v670 = vld [vmem:[#allocation4 + $0xd0] sm:$0xf]
        %v671 = vld [vmem:[#allocation4 + $0xd4] sm:$0xf]
        %v672 = vld [vmem:[#allocation4 + $0xd8] sm:$0xf]
        %v673 = vld [vmem:[#allocation4 + $0xdc] sm:$0xf]
        %v674 = vld [vmem:[#allocation4 + $0xe0] sm:$0xf]
        %v675 = vld [vmem:[#allocation4 + $0xe4] sm:$0xf]
        %v676 = vld [vmem:[#allocation4 + $0xe8] sm:$0xf]
        %v677 = vld [vmem:[#allocation4 + $0xec] sm:$0xf]
        %v678 = vld [vmem:[#allocation4 + $0xf0] sm:$0xf]
        %v679 = vld [vmem:[#allocation4 + $0xf4] sm:$0xf]
        %v680 = vld [vmem:[#allocation4 + $0xf8] sm:$0xf]
        %v681 = vld [vmem:[#allocation4 + $0xfc] sm:$0xf]
        %v682 = vld [vmem:[#allocation4 + $0x100] sm:$0xf]
        %v683 = vld [vmem:[#allocation4 + $0x104] sm:$0xf]
        %v684 = vld [vmem:[#allocation4 + $0x108] sm:$0xf]
        %v685 = vld [vmem:[#allocation4 + $0x10c] sm:$0xf]
        %v686 = vld [vmem:[#allocation4 + $0x110] sm:$0xf]
        %v687 = vld [vmem:[#allocation4 + $0x114] sm:$0xf]
        %v688 = vld [vmem:[#allocation4 + $0x118] sm:$0xf]
        %v689 = vld [vmem:[#allocation4 + $0x11c] sm:$0xf]
        %v690 = vld [vmem:[#allocation4 + $0x120] sm:$0xf]
        %v691 = vld [vmem:[#allocation4 + $0x124] sm:$0xf]
        %v692 = vld [vmem:[#allocation4 + $0x128] sm:$0xf]
        %v693 = vld [vmem:[#allocation4 + $0x12c] sm:$0xf]
        %v694 = vld [vmem:[#allocation4 + $0x130] sm:$0xf]
        %v695 = vld [vmem:[#allocation4 + $0x134] sm:$0xf]
        %v696 = vld [vmem:[#allocation4 + $0x138] sm:$0xf]
        %v697 = vld [vmem:[#allocation4 + $0x13c] sm:$0xf]
        %v698 = vld [vmem:[#allocation4 + $0x140] sm:$0xf]
        %v699 = vld [vmem:[#allocation4 + $0x144] sm:$0xf]
        %v700 = vld [vmem:[#allocation4 + $0x148] sm:$0xf]
        %v701 = vld [vmem:[#allocation4 + $0x14c] sm:$0xf]
        %v702 = vld [vmem:[#allocation4 + $0x150] sm:$0xf]
        %v703 = vld [vmem:[#allocation4 + $0x154] sm:$0xf]
        %v704 = vld [vmem:[#allocation4 + $0x158] sm:$0xf]
        %v705 = vld [vmem:[#allocation4 + $0x15c] sm:$0xf]
        %v706 = vld [vmem:[#allocation4 + $0x160] sm:$0xf]
        %v707 = vld [vmem:[#allocation4 + $0x164] sm:$0xf]
        %v708 = vld [vmem:[#allocation4 + $0x168] sm:$0xf]
        %v709 = vld [vmem:[#allocation4 + $0x16c] sm:$0xf]
        %v710 = vld [vmem:[#allocation4 + $0x170] sm:$0xf]
        %v711 = vld [vmem:[#allocation4 + $0x174] sm:$0xf]
        %v712 = vld [vmem:[#allocation4 + $0x178] sm:$0xf]
        %v713 = vld [vmem:[#allocation4 + $0x17c] sm:$0xf]
        %v714 = vld [vmem:[#allocation6] sm:$0x1]
        %v716 = vlaneseq
        %v717 = vshrl.u32 %v716, 7
        %v718 = vsub.s32 0, %v717
        %v719 = vrot.slane %v714, %v718
        %v817 = vunpack.c.l.b16 %v618
        %v818 = vunpack.c.l.b16 %v619
        %v819 = vunpack.c.l.b16 %v620
        %v820 = vunpack.c.l.b16 %v621
        %v821 = vunpack.c.l.b16 %v622
        %v822 = vunpack.c.l.b16 %v623
        %v823 = vunpack.c.l.b16 %v624
        %v824 = vunpack.c.l.b16 %v625
        %v825 = vunpack.c.l.b16 %v626
        %v826 = vunpack.c.l.b16 %v627
        %v827 = vunpack.c.l.b16 %v628
        %v828 = vunpack.c.l.b16 %v629
        %v829 = vunpack.c.l.b16 %v630
        %v830 = vunpack.c.l.b16 %v631
        %v831 = vunpack.c.l.b16 %v632
        %v832 = vunpack.c.l.b16 %v633
        %v833 = vunpack.c.l.b16 %v634
        %v834 = vunpack.c.l.b16 %v635
        %v835 = vunpack.c.l.b16 %v636
        %v836 = vunpack.c.l.b16 %v637
        %v837 = vunpack.c.l.b16 %v638
        %v838 = vunpack.c.l.b16 %v639
        %v839 = vunpack.c.l.b16 %v640
        %v840 = vunpack.c.l.b16 %v641
        %v841 = vunpack.c.l.b16 %v642
        %v842 = vunpack.c.l.b16 %v643
        %v843 = vunpack.c.l.b16 %v644
        %v844 = vunpack.c.l.b16 %v645
        %v845 = vunpack.c.l.b16 %v646
        %v846 = vunpack.c.l.b16 %v647
        %v847 = vunpack.c.l.b16 %v648
        %v848 = vunpack.c.l.b16 %v649
        %v849 = vunpack.c.l.b16 %v650
        %v850 = vunpack.c.l.b16 %v651
        %v851 = vunpack.c.l.b16 %v652
        %v852 = vunpack.c.l.b16 %v653
        %v853 = vunpack.c.l.b16 %v654
        %v854 = vunpack.c.l.b16 %v655
        %v855 = vunpack.c.l.b16 %v656
        %v856 = vunpack.c.l.b16 %v657
        %v857 = vunpack.c.l.b16 %v658
        %v858 = vunpack.c.l.b16 %v659
        %v859 = vunpack.c.l.b16 %v660
        %v860 = vunpack.c.l.b16 %v661
        %v861 = vunpack.c.l.b16 %v662
        %v862 = vunpack.c.l.b16 %v663
        %v863 = vunpack.c.l.b16 %v664
        %v864 = vunpack.c.l.b16 %v665
        %v865 = vunpack.c.l.b16 %v666
        %v866 = vunpack.c.l.b16 %v667
        %v867 = vunpack.c.l.b16 %v668
        %v868 = vunpack.c.l.b16 %v669
        %v869 = vunpack.c.l.b16 %v670
        %v870 = vunpack.c.l.b16 %v671
        %v871 = vunpack.c.l.b16 %v672
        %v872 = vunpack.c.l.b16 %v673
        %v873 = vunpack.c.l.b16 %v674
        %v874 = vunpack.c.l.b16 %v675
        %v875 = vunpack.c.l.b16 %v676
        %v876 = vunpack.c.l.b16 %v677
        %v877 = vunpack.c.l.b16 %v678
        %v878 = vunpack.c.l.b16 %v679
        %v879 = vunpack.c.l.b16 %v680
        %v880 = vunpack.c.l.b16 %v681
        %v881 = vunpack.c.l.b16 %v682
        %v882 = vunpack.c.l.b16 %v683
        %v883 = vunpack.c.l.b16 %v684
        %v884 = vunpack.c.l.b16 %v685
        %v885 = vunpack.c.l.b16 %v686
        %v886 = vunpack.c.l.b16 %v687
        %v887 = vunpack.c.l.b16 %v688
        %v888 = vunpack.c.l.b16 %v689
        %v889 = vunpack.c.l.b16 %v690
        %v890 = vunpack.c.l.b16 %v691
        %v891 = vunpack.c.l.b16 %v692
        %v892 = vunpack.c.l.b16 %v693
        %v893 = vunpack.c.l.b16 %v694
        %v894 = vunpack.c.l.b16 %v695
        %v895 = vunpack.c.l.b16 %v696
        %v896 = vunpack.c.l.b16 %v697
        %v897 = vunpack.c.l.b16 %v698
        %v898 = vunpack.c.l.b16 %v699
        %v899 = vunpack.c.l.b16 %v700
        %v900 = vunpack.c.l.b16 %v701
        %v901 = vunpack.c.l.b16 %v702
        %v902 = vunpack.c.l.b16 %v703
        %v903 = vunpack.c.l.b16 %v704
        %v904 = vunpack.c.l.b16 %v705
        %v905 = vunpack.c.l.b16 %v706
        %v906 = vunpack.c.l.b16 %v707
        %v907 = vunpack.c.l.b16 %v708
        %v908 = vunpack.c.l.b16 %v709
        %v909 = vunpack.c.l.b16 %v710
        %v910 = vunpack.c.l.b16 %v711
        %v911 = vunpack.c.l.b16 %v712
        %v912 = vunpack.c.l.b16 %v713
        %v913 = vpack.c.b16 %v818, %v817
        %v914 = vpack.c.b16 %v820, %v819
        %v915 = vpack.c.b16 %v822, %v821
        %v916 = vpack.c.b16 %v824, %v823
        %v917 = vpack.c.b16 %v826, %v825
        %v918 = vpack.c.b16 %v828, %v827
        %v919 = vpack.c.b16 %v830, %v829
        %v920 = vpack.c.b16 %v832, %v831
        %v921 = vpack.c.b16 %v834, %v833
        %v922 = vpack.c.b16 %v836, %v835
        %v923 = vpack.c.b16 %v838, %v837
        %v924 = vpack.c.b16 %v840, %v839
        %v925 = vpack.c.b16 %v842, %v841
        %v926 = vpack.c.b16 %v844, %v843
        %v927 = vpack.c.b16 %v846, %v845
        %v928 = vpack.c.b16 %v848, %v847
        %v929 = vpack.c.b16 %v850, %v849
        %v930 = vpack.c.b16 %v852, %v851
        %v931 = vpack.c.b16 %v854, %v853
        %v932 = vpack.c.b16 %v856, %v855
        %v933 = vpack.c.b16 %v858, %v857
        %v934 = vpack.c.b16 %v860, %v859
        %v935 = vpack.c.b16 %v862, %v861
        %v936 = vpack.c.b16 %v864, %v863
        %v937 = vpack.c.b16 %v866, %v865
        %v938 = vpack.c.b16 %v868, %v867
        %v939 = vpack.c.b16 %v870, %v869
        %v940 = vpack.c.b16 %v872, %v871
        %v941 = vpack.c.b16 %v874, %v873
        %v942 = vpack.c.b16 %v876, %v875
        %v943 = vpack.c.b16 %v878, %v877
        %v944 = vpack.c.b16 %v880, %v879
        %v945 = vpack.c.b16 %v882, %v881
        %v946 = vpack.c.b16 %v884, %v883
        %v947 = vpack.c.b16 %v886, %v885
        %v948 = vpack.c.b16 %v888, %v887
        %v949 = vpack.c.b16 %v890, %v889
        %v950 = vpack.c.b16 %v892, %v891
        %v951 = vpack.c.b16 %v894, %v893
        %v952 = vpack.c.b16 %v896, %v895
        %v953 = vpack.c.b16 %v898, %v897
        %v954 = vpack.c.b16 %v900, %v899
        %v955 = vpack.c.b16 %v902, %v901
        %v956 = vpack.c.b16 %v904, %v903
        %v957 = vpack.c.b16 %v906, %v905
        %v958 = vpack.c.b16 %v908, %v907
        %v959 = vpack.c.b16 %v910, %v909
        %v960 = vpack.c.b16 %v912, %v911
        %1009 = vmatprep.subr.bf16.mxu0 0
        %1010 = vmatpush1.bf16.msra.mxu0 %v913
        %1011 = vmatprep.subr.bf16.mxu0 0
        %1012 = vmatpush1.bf16.msra.mxu0 %v914
        %1013 = vmatprep.subr.bf16.mxu0 0
        %1014 = vmatpush1.bf16.msra.mxu0 %v915
        %1015 = vmatprep.subr.bf16.mxu0 0
        %1016 = vmatpush1.bf16.msra.mxu0 %v916
        %1017 = vmatprep.subr.bf16.mxu0 0
        %1018 = vmatpush1.bf16.msra.mxu0 %v917
        %1019 = vmatprep.subr.bf16.mxu0 0
        %1020 = vmatpush1.bf16.msra.mxu0 %v918
        %1021 = vmatprep.subr.bf16.mxu0 0
        %1022 = vmatpush1.bf16.msra.mxu0 %v919
        %1023 = vmatprep.subr.bf16.mxu0 0
        %1024 = vmatpush1.bf16.msra.mxu0 %v920
        %1025 = vmatprep.subr.bf16.mxu0 0
        %1026 = vmatpush1.bf16.msra.mxu0 %v921
        %1027 = vmatprep.subr.bf16.mxu0 0
        %1028 = vmatpush1.bf16.msra.mxu0 %v922
        %1029 = vmatprep.subr.bf16.mxu0 0
        %1030 = vmatpush1.bf16.msra.mxu0 %v923
        %1031 = vmatprep.subr.bf16.mxu0 0
        %1032 = vmatpush1.bf16.msra.mxu0 %v924
        %1033 = vmatprep.subr.bf16.mxu0 0
        %1034 = vmatpush1.bf16.msra.mxu0 %v925
        %1035 = vmatprep.subr.bf16.mxu0 0
        %1036 = vmatpush1.bf16.msra.mxu0 %v926
        %1037 = vmatprep.subr.bf16.mxu0 0
        %1038 = vmatpush1.bf16.msra.mxu0 %v927
        %1039 = vmatprep.subr.bf16.mxu0 0
        %1040 = vmatpush1.bf16.msra.mxu0 %v928
        %1041 = vmatprep.mubr.bf16.mxu0 %v427
        %1042 = vmatmul.mubr.bf16.gmra.mrb[0].mxu0 %v426
        %v1043 = vpop.f32.mrb[0].mxu0
        %v1044 = vadd.f32 %v719, %v1043
        %v1045 = vpop.f32.mrb[0].mxu0
        %v1046 = vpop.f32.mrb[0].mxu0
        %v1047 = vadd.f32 %v719, %v1046
        %v1048 = vpop.f32.mrb[0].mxu0
        %1049 = vmatprep.mubr.bf16.mxu0 %v433
        %1050 = vmatmul.mubr.bf16.gmra.mrb[0].mxu0 %v432
        %v1051 = vpop.f32.mrb[0].mxu0
        %v1052 = vadd.f32 %v719, %v1051
        %v1053 = vpop.f32.mrb[0].mxu0
        %v1054 = vpop.f32.mrb[0].mxu0
        %v1055 = vadd.f32 %v719, %v1054
        %v1056 = vpop.f32.mrb[0].mxu0
        %1057 = vmatprep.mubr.bf16.mxu0 %v439
        %1058 = vmatmul.mubr.bf16.gmra.mrb[0].mxu0 %v438
        %v1059 = vpop.f32.mrb[0].mxu0
        %v1060 = vadd.f32 %v719, %v1059
        %v1061 = vpop.f32.mrb[0].mxu0
        %v1062 = vpop.f32.mrb[0].mxu0
        %v1063 = vadd.f32 %v719, %v1062
        %v1064 = vpop.f32.mrb[0].mxu0
        %1065 = vmatprep.mubr.bf16.mxu0 %v445
        %1066 = vmatmul.mubr.bf16.gmra.mrb[0].mxu0 %v444
        %v1067 = vpop.f32.mrb[0].mxu0
        %v1068 = vadd.f32 %v719, %v1067
        %v1069 = vpop.f32.mrb[0].mxu0
        %v1070 = vpop.f32.mrb[0].mxu0
        %v1071 = vadd.f32 %v719, %v1070
        %v1072 = vpop.f32.mrb[0].mxu0
        %1073 = vmatprep.mubr.bf16.mxu0 %v451
        %1074 = vmatmul.mubr.bf16.gmra.mrb[0].mxu0 %v450
        %v1075 = vpop.f32.mrb[0].mxu0
        %v1076 = vadd.f32 %v719, %v1075
        %v1077 = vpop.f32.mrb[0].mxu0
        %v1078 = vpop.f32.mrb[0].mxu0
        %v1079 = vadd.f32 %v719, %v1078
        %v1080 = vpop.f32.mrb[0].mxu0
        %1081 = vmatprep.mubr.bf16.mxu0 %v457
        %1082 = vmatmul.mubr.bf16.gmra.mrb[0].mxu0 %v456
        %v1083 = vpop.f32.mrb[0].mxu0
        %v1084 = vadd.f32 %v719, %v1083
        %v1085 = vpop.f32.mrb[0].mxu0
        %v1086 = vpop.f32.mrb[0].mxu0
        %v1087 = vadd.f32 %v719, %v1086
        %v1088 = vpop.f32.mrb[0].mxu0
        %1089 = vmatprep.mubr.bf16.mxu0 %v463
        %1090 = vmatmul.mubr.bf16.gmra.mrb[0].mxu0 %v462
        %v1091 = vpop.f32.mrb[0].mxu0
        %v1092 = vadd.f32 %v719, %v1091
        %v1093 = vpop.f32.mrb[0].mxu0
        %v1094 = vpop.f32.mrb[0].mxu0
        %v1095 = vadd.f32 %v719, %v1094
        %v1096 = vpop.f32.mrb[0].mxu0
        %1097 = vmatprep.mubr.bf16.mxu0 %v469
        %1098 = vmatmul.mubr.bf16.gmra.mrb[0].mxu0 %v468
        %v1099 = vpop.f32.mrb[0].mxu0
        %v1100 = vadd.f32 %v719, %v1099
        %v1101 = vpop.f32.mrb[0].mxu0
        %v1102 = vpop.f32.mrb[0].mxu0
        %v1103 = vadd.f32 %v719, %v1102
        %v1104 = vpop.f32.mrb[0].mxu0
        %1105 = vmatprep.mubr.bf16.mxu0 %v475
        %1106 = vmatmul.mubr.bf16.gmra.mrb[0].mxu0 %v474
        %v1107 = vpop.f32.mrb[0].mxu0
        %v1108 = vadd.f32 %v719, %v1107
        %v1109 = vpop.f32.mrb[0].mxu0
        %v1110 = vpop.f32.mrb[0].mxu0
        %v1111 = vadd.f32 %v719, %v1110
        %v1112 = vpop.f32.mrb[0].mxu0
        %1113 = vmatprep.mubr.bf16.mxu0 %v481
        %1114 = vmatmul.mubr.bf16.gmra.mrb[0].mxu0 %v480
        %v1115 = vpop.f32.mrb[0].mxu0
        %v1116 = vadd.f32 %v719, %v1115
        %v1117 = vpop.f32.mrb[0].mxu0
        %v1118 = vpop.f32.mrb[0].mxu0
        %v1119 = vadd.f32 %v719, %v1118
        %v1120 = vpop.f32.mrb[0].mxu0
        %1121 = vmatprep.mubr.bf16.mxu0 %v487
        %1122 = vmatmul.mubr.bf16.gmra.mrb[0].mxu0 %v486
        %v1123 = vpop.f32.mrb[0].mxu0
        %v1124 = vadd.f32 %v719, %v1123
        %v1125 = vpop.f32.mrb[0].mxu0
        %v1126 = vpop.f32.mrb[0].mxu0
        %v1127 = vadd.f32 %v719, %v1126
        %v1128 = vpop.f32.mrb[0].mxu0
        %1129 = vmatprep.mubr.bf16.mxu0 %v493
        %1130 = vmatmul.mubr.bf16.gmra.mrb[0].mxu0 %v492
        %v1131 = vpop.f32.mrb[0].mxu0
        %v1132 = vadd.f32 %v719, %v1131
        %v1133 = vpop.f32.mrb[0].mxu0
        %v1134 = vpop.f32.mrb[0].mxu0
        %v1135 = vadd.f32 %v719, %v1134
        %v1136 = vpop.f32.mrb[0].mxu0
        %1137 = vmatprep.mubr.bf16.mxu0 %v499
        %1138 = vmatmul.mubr.bf16.gmra.mrb[0].mxu0 %v498
        %v1139 = vpop.f32.mrb[0].mxu0
        %v1140 = vadd.f32 %v719, %v1139
        %v1141 = vpop.f32.mrb[0].mxu0
        %v1142 = vpop.f32.mrb[0].mxu0
        %v1143 = vadd.f32 %v719, %v1142
        %v1144 = vpop.f32.mrb[0].mxu0
        %1145 = vmatprep.mubr.bf16.mxu0 %v505
        %1146 = vmatmul.mubr.bf16.gmra.mrb[0].mxu0 %v504
        %v1147 = vpop.f32.mrb[0].mxu0
        %v1148 = vadd.f32 %v719, %v1147
        %v1149 = vpop.f32.mrb[0].mxu0
        %v1150 = vpop.f32.mrb[0].mxu0
        %v1151 = vadd.f32 %v719, %v1150
        %v1152 = vpop.f32.mrb[0].mxu0
        %1153 = vmatprep.mubr.bf16.mxu0 %v511
        %1154 = vmatmul.mubr.bf16.gmra.mrb[0].mxu0 %v510
        %v1155 = vpop.f32.mrb[0].mxu0
        %v1156 = vadd.f32 %v719, %v1155
        %v1157 = vpop.f32.mrb[0].mxu0
        %v1158 = vpop.f32.mrb[0].mxu0
        %v1159 = vadd.f32 %v719, %v1158
        %v1160 = vpop.f32.mrb[0].mxu0
        %1161 = vmatprep.mubr.bf16.mxu0 %v517
        %1162 = vmatmul.mubr.bf16.gmra.mrb[0].mxu0 %v516
        %v1163 = vpop.f32.mrb[0].mxu0
        %v1164 = vadd.f32 %v719, %v1163
        %v1165 = vpop.f32.mrb[0].mxu0
        %v1166 = vpop.f32.mrb[0].mxu0
        %v1167 = vadd.f32 %v719, %v1166
        %v1168 = vpop.f32.mrb[0].mxu0
        %1169 = vmatprep.mubr.bf16.mxu0 %v523
        %1170 = vmatmul.mubr.bf16.gmra.mrb[0].mxu0 %v522
        %v1171 = vpop.f32.mrb[0].mxu0
        %v1172 = vadd.f32 %v719, %v1171
        %v1173 = vpop.f32.mrb[0].mxu0
        %v1174 = vpop.f32.mrb[0].mxu0
        %v1175 = vadd.f32 %v719, %v1174
        %v1176 = vpop.f32.mrb[0].mxu0
        %1177 = vmatprep.mubr.bf16.mxu0 %v529
        %1178 = vmatmul.mubr.bf16.gmra.mrb[0].mxu0 %v528
        %v1179 = vpop.f32.mrb[0].mxu0
        %v1180 = vadd.f32 %v719, %v1179
        %v1181 = vpop.f32.mrb[0].mxu0
        %v1182 = vpop.f32.mrb[0].mxu0
        %v1183 = vadd.f32 %v719, %v1182
        %v1184 = vpop.f32.mrb[0].mxu0
        %1185 = vmatprep.mubr.bf16.mxu0 %v535
        %1186 = vmatmul.mubr.bf16.gmra.mrb[0].mxu0 %v534
        %v1187 = vpop.f32.mrb[0].mxu0
        %v1188 = vadd.f32 %v719, %v1187
        %v1189 = vpop.f32.mrb[0].mxu0
        %v1190 = vpop.f32.mrb[0].mxu0
        %v1191 = vadd.f32 %v719, %v1190
        %v1192 = vpop.f32.mrb[0].mxu0
        %1193 = vmatprep.mubr.bf16.mxu0 %v541
        %1194 = vmatmul.mubr.bf16.gmra.mrb[0].mxu0 %v540
        %v1195 = vpop.f32.mrb[0].mxu0
        %v1196 = vadd.f32 %v719, %v1195
        %v1197 = vpop.f32.mrb[0].mxu0
        %v1198 = vpop.f32.mrb[0].mxu0
        %v1199 = vadd.f32 %v719, %v1198
        %v1200 = vpop.f32.mrb[0].mxu0
        %1201 = vmatprep.mubr.bf16.mxu0 %v547
        %1202 = vmatmul.mubr.bf16.gmra.mrb[0].mxu0 %v546
        %v1203 = vpop.f32.mrb[0].mxu0
        %v1204 = vadd.f32 %v719, %v1203
        %v1205 = vpop.f32.mrb[0].mxu0
        %v1206 = vpop.f32.mrb[0].mxu0
        %v1207 = vadd.f32 %v719, %v1206
        %v1208 = vpop.f32.mrb[0].mxu0
        %1209 = vmatprep.mubr.bf16.mxu0 %v553
        %1210 = vmatmul.mubr.bf16.gmra.mrb[0].mxu0 %v552
        %v1211 = vpop.f32.mrb[0].mxu0
        %v1212 = vadd.f32 %v719, %v1211
        %v1213 = vpop.f32.mrb[0].mxu0
        %v1214 = vpop.f32.mrb[0].mxu0
        %v1215 = vadd.f32 %v719, %v1214
        %v1216 = vpop.f32.mrb[0].mxu0
        %1217 = vmatprep.mubr.bf16.mxu0 %v559
        %1218 = vmatmul.mubr.bf16.gmra.mrb[0].mxu0 %v558
        %v1219 = vpop.f32.mrb[0].mxu0
        %v1220 = vadd.f32 %v719, %v1219
        %v1221 = vpop.f32.mrb[0].mxu0
        %v1222 = vpop.f32.mrb[0].mxu0
        %v1223 = vadd.f32 %v719, %v1222
        %v1224 = vpop.f32.mrb[0].mxu0
        %1225 = vmatprep.mubr.bf16.mxu0 %v565
        %1226 = vmatmul.mubr.bf16.gmra.mrb[0].mxu0 %v564
        %v1227 = vpop.f32.mrb[0].mxu0
        %v1228 = vadd.f32 %v719, %v1227
        %v1229 = vpop.f32.mrb[0].mxu0
        %v1230 = vpop.f32.mrb[0].mxu0
        %v1231 = vadd.f32 %v719, %v1230
        %v1232 = vpop.f32.mrb[0].mxu0
        %1233 = vmatprep.mubr.bf16.mxu0 %v571
        %1234 = vmatmul.mubr.bf16.gmra.mrb[0].mxu0 %v570
        %v1235 = vpop.f32.mrb[0].mxu0
        %v1236 = vadd.f32 %v719, %v1235
        %v1237 = vpop.f32.mrb[0].mxu0
        %v1238 = vpop.f32.mrb[0].mxu0
        %v1239 = vadd.f32 %v719, %v1238
        %v1240 = vpop.f32.mrb[0].mxu0
        %1241 = vmatprep.mubr.bf16.mxu0 %v577
        %1242 = vmatmul.mubr.bf16.gmra.mrb[0].mxu0 %v576
        %v1243 = vpop.f32.mrb[0].mxu0
        %v1244 = vadd.f32 %v719, %v1243
        %v1245 = vpop.f32.mrb[0].mxu0
        %v1246 = vpop.f32.mrb[0].mxu0
        %v1247 = vadd.f32 %v719, %v1246
        %v1248 = vpop.f32.mrb[0].mxu0
        %1249 = vmatprep.mubr.bf16.mxu0 %v583
        %1250 = vmatmul.mubr.bf16.gmra.mrb[0].mxu0 %v582
        %v1251 = vpop.f32.mrb[0].mxu0
        %v1252 = vadd.f32 %v719, %v1251
        %v1253 = vpop.f32.mrb[0].mxu0
        %v1254 = vpop.f32.mrb[0].mxu0
        %v1255 = vadd.f32 %v719, %v1254
        %v1256 = vpop.f32.mrb[0].mxu0
        %1257 = vmatprep.mubr.bf16.mxu0 %v589
        %1258 = vmatmul.mubr.bf16.gmra.mrb[0].mxu0 %v588
        %v1259 = vpop.f32.mrb[0].mxu0
        %v1260 = vadd.f32 %v719, %v1259
        %v1261 = vpop.f32.mrb[0].mxu0
        %v1262 = vpop.f32.mrb[0].mxu0
        %v1263 = vadd.f32 %v719, %v1262
        %v1264 = vpop.f32.mrb[0].mxu0
        %1265 = vmatprep.mubr.bf16.mxu0 %v595
        %1266 = vmatmul.mubr.bf16.gmra.mrb[0].mxu0 %v594
        %v1267 = vpop.f32.mrb[0].mxu0
        %v1268 = vadd.f32 %v719, %v1267
        %v1269 = vpop.f32.mrb[0].mxu0
        %v1270 = vpop.f32.mrb[0].mxu0
        %v1271 = vadd.f32 %v719, %v1270
        %v1272 = vpop.f32.mrb[0].mxu0
        %1273 = vmatprep.mubr.bf16.mxu0 %v601
        %1274 = vmatmul.mubr.bf16.gmra.mrb[0].mxu0 %v600
        %v1275 = vpop.f32.mrb[0].mxu0
        %v1276 = vadd.f32 %v719, %v1275
        %v1277 = vpop.f32.mrb[0].mxu0
        %v1278 = vpop.f32.mrb[0].mxu0
        %v1279 = vadd.f32 %v719, %v1278
        %v1280 = vpop.f32.mrb[0].mxu0
        %1281 = vmatprep.mubr.bf16.mxu0 %v607
        %1282 = vmatmul.mubr.bf16.gmra.mrb[0].mxu0 %v606
        %v1283 = vpop.f32.mrb[0].mxu0
        %v1284 = vadd.f32 %v719, %v1283
        %v1285 = vpop.f32.mrb[0].mxu0
        %v1286 = vpop.f32.mrb[0].mxu0
        %v1287 = vadd.f32 %v719, %v1286
        %v1288 = vpop.f32.mrb[0].mxu0
        %1289 = vmatprep.mubr.bf16.mxu0 %v613
        %1290 = vmatmul.mubr.bf16.gmra.mrb[0].mxu0 %v612
        %v1291 = vpop.f32.mrb[0].mxu0
        %v1292 = vadd.f32 %v719, %v1291
        %v1293 = vpop.f32.mrb[0].mxu0
        %v1294 = vpop.f32.mrb[0].mxu0
        %v1295 = vadd.f32 %v719, %v1294
        %v1296 = vpop.f32.mrb[0].mxu0
        %1297 = vdwg.mxu0
        %1298 = vmatprep.subr.bf16.mxu0 0
        %1299 = vmatpush1.bf16.msra.mxu0 %v929
        %1300 = vmatprep.subr.bf16.mxu0 0
        %1301 = vmatpush1.bf16.msra.mxu0 %v930
        %1302 = vmatprep.subr.bf16.mxu0 0
        %1303 = vmatpush1.bf16.msra.mxu0 %v931
        %1304 = vmatprep.subr.bf16.mxu0 0
        %1305 = vmatpush1.bf16.msra.mxu0 %v932
        %1306 = vmatprep.subr.bf16.mxu0 0
        %1307 = vmatpush1.bf16.msra.mxu0 %v933
        %1308 = vmatprep.subr.bf16.mxu0 0
        %1309 = vmatpush1.bf16.msra.mxu0 %v934
        %1310 = vmatprep.subr.bf16.mxu0 0
        %1311 = vmatpush1.bf16.msra.mxu0 %v935
        %1312 = vmatprep.subr.bf16.mxu0 0
        %1313 = vmatpush1.bf16.msra.mxu0 %v936
        %1314 = vmatprep.subr.bf16.mxu0 0
        %1315 = vmatpush1.bf16.msra.mxu0 %v937
        %1316 = vmatprep.subr.bf16.mxu0 0
        %1317 = vmatpush1.bf16.msra.mxu0 %v938
        %1318 = vmatprep.subr.bf16.mxu0 0
        %1319 = vmatpush1.bf16.msra.mxu0 %v939
        %1320 = vmatprep.subr.bf16.mxu0 0
        %1321 = vmatpush1.bf16.msra.mxu0 %v940
        %1322 = vmatprep.subr.bf16.mxu0 0
        %1323 = vmatpush1.bf16.msra.mxu0 %v941
        %1324 = vmatprep.subr.bf16.mxu0 0
        %1325 = vmatpush1.bf16.msra.mxu0 %v942
        %1326 = vmatprep.subr.bf16.mxu0 0
        %1327 = vmatpush1.bf16.msra.mxu0 %v943
        %1328 = vmatprep.subr.bf16.mxu0 0
        %1329 = vmatpush1.bf16.msra.mxu0 %v944
        %1330 = vmatprep.mubr.bf16.mxu0 %v429
        %1331 = vmatmul.mubr.bf16.gmra.mrb[0].mxu0 %v428
        %v1332 = vpop.f32.mrb[0].mxu0
        %v1333 = vadd.f32 %v1044, %v1332
        %v1334 = vpop.f32.mrb[0].mxu0
        %v1335 = vpop.f32.mrb[0].mxu0
        %v1336 = vadd.f32 %v1047, %v1335
        %v1337 = vpop.f32.mrb[0].mxu0
        %1338 = vmatprep.mubr.bf16.mxu0 %v435
        %1339 = vmatmul.mubr.bf16.gmra.mrb[0].mxu0 %v434
        %v1340 = vpop.f32.mrb[0].mxu0
        %v1341 = vadd.f32 %v1052, %v1340
        %v1342 = vpop.f32.mrb[0].mxu0
        %v1343 = vpop.f32.mrb[0].mxu0
        %v1344 = vadd.f32 %v1055, %v1343
        %v1345 = vpop.f32.mrb[0].mxu0
        %1346 = vmatprep.mubr.bf16.mxu0 %v441
        %1347 = vmatmul.mubr.bf16.gmra.mrb[0].mxu0 %v440
        %v1348 = vpop.f32.mrb[0].mxu0
        %v1349 = vadd.f32 %v1060, %v1348
        %v1350 = vpop.f32.mrb[0].mxu0
        %v1351 = vpop.f32.mrb[0].mxu0
        %v1352 = vadd.f32 %v1063, %v1351
        %v1353 = vpop.f32.mrb[0].mxu0
        %1354 = vmatprep.mubr.bf16.mxu0 %v447
        %1355 = vmatmul.mubr.bf16.gmra.mrb[0].mxu0 %v446
        %v1356 = vpop.f32.mrb[0].mxu0
        %v1357 = vadd.f32 %v1068, %v1356
        %v1358 = vpop.f32.mrb[0].mxu0
        %v1359 = vpop.f32.mrb[0].mxu0
        %v1360 = vadd.f32 %v1071, %v1359
        %v1361 = vpop.f32.mrb[0].mxu0
        %1362 = vmatprep.mubr.bf16.mxu0 %v453
        %1363 = vmatmul.mubr.bf16.gmra.mrb[0].mxu0 %v452
        %v1364 = vpop.f32.mrb[0].mxu0
        %v1365 = vadd.f32 %v1076, %v1364
        %v1366 = vpop.f32.mrb[0].mxu0
        %v1367 = vpop.f32.mrb[0].mxu0
        %v1368 = vadd.f32 %v1079, %v1367
        %v1369 = vpop.f32.mrb[0].mxu0
        %1370 = vmatprep.mubr.bf16.mxu0 %v459
        %1371 = vmatmul.mubr.bf16.gmra.mrb[0].mxu0 %v458
        %v1372 = vpop.f32.mrb[0].mxu0
        %v1373 = vadd.f32 %v1084, %v1372
        %v1374 = vpop.f32.mrb[0].mxu0
        %v1375 = vpop.f32.mrb[0].mxu0
        %v1376 = vadd.f32 %v1087, %v1375
        %v1377 = vpop.f32.mrb[0].mxu0
        %1378 = vmatprep.mubr.bf16.mxu0 %v465
        %1379 = vmatmul.mubr.bf16.gmra.mrb[0].mxu0 %v464
        %v1380 = vpop.f32.mrb[0].mxu0
        %v1381 = vadd.f32 %v1092, %v1380
        %v1382 = vpop.f32.mrb[0].mxu0
        %v1383 = vpop.f32.mrb[0].mxu0
        %v1384 = vadd.f32 %v1095, %v1383
        %v1385 = vpop.f32.mrb[0].mxu0
        %1386 = vmatprep.mubr.bf16.mxu0 %v471
        %1387 = vmatmul.mubr.bf16.gmra.mrb[0].mxu0 %v470
        %v1388 = vpop.f32.mrb[0].mxu0
        %v1389 = vadd.f32 %v1100, %v1388
        %v1390 = vpop.f32.mrb[0].mxu0
        %v1391 = vpop.f32.mrb[0].mxu0
        %v1392 = vadd.f32 %v1103, %v1391
        %v1393 = vpop.f32.mrb[0].mxu0
        %1394 = vmatprep.mubr.bf16.mxu0 %v477
        %1395 = vmatmul.mubr.bf16.gmra.mrb[0].mxu0 %v476
        %v1396 = vpop.f32.mrb[0].mxu0
        %v1397 = vadd.f32 %v1108, %v1396
        %v1398 = vpop.f32.mrb[0].mxu0
        %v1399 = vpop.f32.mrb[0].mxu0
        %v1400 = vadd.f32 %v1111, %v1399
        %v1401 = vpop.f32.mrb[0].mxu0
        %1402 = vmatprep.mubr.bf16.mxu0 %v483
        %1403 = vmatmul.mubr.bf16.gmra.mrb[0].mxu0 %v482
        %v1404 = vpop.f32.mrb[0].mxu0
        %v1405 = vadd.f32 %v1116, %v1404
        %v1406 = vpop.f32.mrb[0].mxu0
        %v1407 = vpop.f32.mrb[0].mxu0
        %v1408 = vadd.f32 %v1119, %v1407
        %v1409 = vpop.f32.mrb[0].mxu0
        %1410 = vmatprep.mubr.bf16.mxu0 %v489
        %1411 = vmatmul.mubr.bf16.gmra.mrb[0].mxu0 %v488
        %v1412 = vpop.f32.mrb[0].mxu0
        %v1413 = vadd.f32 %v1124, %v1412
        %v1414 = vpop.f32.mrb[0].mxu0
        %v1415 = vpop.f32.mrb[0].mxu0
        %v1416 = vadd.f32 %v1127, %v1415
        %v1417 = vpop.f32.mrb[0].mxu0
        %1418 = vmatprep.mubr.bf16.mxu0 %v495
        %1419 = vmatmul.mubr.bf16.gmra.mrb[0].mxu0 %v494
        %v1420 = vpop.f32.mrb[0].mxu0
        %v1421 = vadd.f32 %v1132, %v1420
        %v1422 = vpop.f32.mrb[0].mxu0
        %v1423 = vpop.f32.mrb[0].mxu0
        %v1424 = vadd.f32 %v1135, %v1423
        %v1425 = vpop.f32.mrb[0].mxu0
        %1426 = vmatprep.mubr.bf16.mxu0 %v501
        %1427 = vmatmul.mubr.bf16.gmra.mrb[0].mxu0 %v500
        %v1428 = vpop.f32.mrb[0].mxu0
        %v1429 = vadd.f32 %v1140, %v1428
        %v1430 = vpop.f32.mrb[0].mxu0
        %v1431 = vpop.f32.mrb[0].mxu0
        %v1432 = vadd.f32 %v1143, %v1431
        %v1433 = vpop.f32.mrb[0].mxu0
        %1434 = vmatprep.mubr.bf16.mxu0 %v507
        %1435 = vmatmul.mubr.bf16.gmra.mrb[0].mxu0 %v506
        %v1436 = vpop.f32.mrb[0].mxu0
        %v1437 = vadd.f32 %v1148, %v1436
        %v1438 = vpop.f32.mrb[0].mxu0
        %v1439 = vpop.f32.mrb[0].mxu0
        %v1440 = vadd.f32 %v1151, %v1439
        %v1441 = vpop.f32.mrb[0].mxu0
        %1442 = vmatprep.mubr.bf16.mxu0 %v513
        %1443 = vmatmul.mubr.bf16.gmra.mrb[0].mxu0 %v512
        %v1444 = vpop.f32.mrb[0].mxu0
        %v1445 = vadd.f32 %v1156, %v1444
        %v1446 = vpop.f32.mrb[0].mxu0
        %v1447 = vpop.f32.mrb[0].mxu0
        %v1448 = vadd.f32 %v1159, %v1447
        %v1449 = vpop.f32.mrb[0].mxu0
        %1450 = vmatprep.mubr.bf16.mxu0 %v519
        %1451 = vmatmul.mubr.bf16.gmra.mrb[0].mxu0 %v518
        %v1452 = vpop.f32.mrb[0].mxu0
        %v1453 = vadd.f32 %v1164, %v1452
        %v1454 = vpop.f32.mrb[0].mxu0
        %v1455 = vpop.f32.mrb[0].mxu0
        %v1456 = vadd.f32 %v1167, %v1455
        %v1457 = vpop.f32.mrb[0].mxu0
        %1458 = vmatprep.mubr.bf16.mxu0 %v525
        %1459 = vmatmul.mubr.bf16.gmra.mrb[0].mxu0 %v524
        %v1460 = vpop.f32.mrb[0].mxu0
        %v1461 = vadd.f32 %v1172, %v1460
        %v1462 = vpop.f32.mrb[0].mxu0
        %v1463 = vpop.f32.mrb[0].mxu0
        %v1464 = vadd.f32 %v1175, %v1463
        %v1465 = vpop.f32.mrb[0].mxu0
        %1466 = vmatprep.mubr.bf16.mxu0 %v531
        %1467 = vmatmul.mubr.bf16.gmra.mrb[0].mxu0 %v530
        %v1468 = vpop.f32.mrb[0].mxu0
        %v1469 = vadd.f32 %v1180, %v1468
        %v1470 = vpop.f32.mrb[0].mxu0
        %v1471 = vpop.f32.mrb[0].mxu0
        %v1472 = vadd.f32 %v1183, %v1471
        %v1473 = vpop.f32.mrb[0].mxu0
        %1474 = vmatprep.mubr.bf16.mxu0 %v537
        %1475 = vmatmul.mubr.bf16.gmra.mrb[0].mxu0 %v536
        %v1476 = vpop.f32.mrb[0].mxu0
        %v1477 = vadd.f32 %v1188, %v1476
        %v1478 = vpop.f32.mrb[0].mxu0
        %v1479 = vpop.f32.mrb[0].mxu0
        %v1480 = vadd.f32 %v1191, %v1479
        %v1481 = vpop.f32.mrb[0].mxu0
        %1482 = vmatprep.mubr.bf16.mxu0 %v543
        %1483 = vmatmul.mubr.bf16.gmra.mrb[0].mxu0 %v542
        %v1484 = vpop.f32.mrb[0].mxu0
        %v1485 = vadd.f32 %v1196, %v1484
        %v1486 = vpop.f32.mrb[0].mxu0
        %v1487 = vpop.f32.mrb[0].mxu0
        %v1488 = vadd.f32 %v1199, %v1487
        %v1489 = vpop.f32.mrb[0].mxu0
        %1490 = vmatprep.mubr.bf16.mxu0 %v549
        %1491 = vmatmul.mubr.bf16.gmra.mrb[0].mxu0 %v548
        %v1492 = vpop.f32.mrb[0].mxu0
        %v1493 = vadd.f32 %v1204, %v1492
        %v1494 = vpop.f32.mrb[0].mxu0
        %v1495 = vpop.f32.mrb[0].mxu0
        %v1496 = vadd.f32 %v1207, %v1495
        %v1497 = vpop.f32.mrb[0].mxu0
        %1498 = vmatprep.mubr.bf16.mxu0 %v555
        %1499 = vmatmul.mubr.bf16.gmra.mrb[0].mxu0 %v554
        %v1500 = vpop.f32.mrb[0].mxu0
        %v1501 = vadd.f32 %v1212, %v1500
        %v1502 = vpop.f32.mrb[0].mxu0
        %v1503 = vpop.f32.mrb[0].mxu0
        %v1504 = vadd.f32 %v1215, %v1503
        %v1505 = vpop.f32.mrb[0].mxu0
        %1506 = vmatprep.mubr.bf16.mxu0 %v561
        %1507 = vmatmul.mubr.bf16.gmra.mrb[0].mxu0 %v560
        %v1508 = vpop.f32.mrb[0].mxu0
        %v1509 = vadd.f32 %v1220, %v1508
        %v1510 = vpop.f32.mrb[0].mxu0
        %v1511 = vpop.f32.mrb[0].mxu0
        %v1512 = vadd.f32 %v1223, %v1511
        %v1513 = vpop.f32.mrb[0].mxu0
        %1514 = vmatprep.mubr.bf16.mxu0 %v567
        %1515 = vmatmul.mubr.bf16.gmra.mrb[0].mxu0 %v566
        %v1516 = vpop.f32.mrb[0].mxu0
        %v1517 = vadd.f32 %v1228, %v1516
        %v1518 = vpop.f32.mrb[0].mxu0
        %v1519 = vpop.f32.mrb[0].mxu0
        %v1520 = vadd.f32 %v1231, %v1519
        %v1521 = vpop.f32.mrb[0].mxu0
        %1522 = vmatprep.mubr.bf16.mxu0 %v573
        %1523 = vmatmul.mubr.bf16.gmra.mrb[0].mxu0 %v572
        %v1524 = vpop.f32.mrb[0].mxu0
        %v1525 = vadd.f32 %v1236, %v1524
        %v1526 = vpop.f32.mrb[0].mxu0
        %v1527 = vpop.f32.mrb[0].mxu0
        %v1528 = vadd.f32 %v1239, %v1527
        %v1529 = vpop.f32.mrb[0].mxu0
        %1530 = vmatprep.mubr.bf16.mxu0 %v579
        %1531 = vmatmul.mubr.bf16.gmra.mrb[0].mxu0 %v578
        %v1532 = vpop.f32.mrb[0].mxu0
        %v1533 = vadd.f32 %v1244, %v1532
        %v1534 = vpop.f32.mrb[0].mxu0
        %v1535 = vpop.f32.mrb[0].mxu0
        %v1536 = vadd.f32 %v1247, %v1535
        %v1537 = vpop.f32.mrb[0].mxu0
        %1538 = vmatprep.mubr.bf16.mxu0 %v585
        %1539 = vmatmul.mubr.bf16.gmra.mrb[0].mxu0 %v584
        %v1540 = vpop.f32.mrb[0].mxu0
        %v1541 = vadd.f32 %v1252, %v1540
        %v1542 = vpop.f32.mrb[0].mxu0
        %v1543 = vpop.f32.mrb[0].mxu0
        %v1544 = vadd.f32 %v1255, %v1543
        %v1545 = vpop.f32.mrb[0].mxu0
        %1546 = vmatprep.mubr.bf16.mxu0 %v591
        %1547 = vmatmul.mubr.bf16.gmra.mrb[0].mxu0 %v590
        %v1548 = vpop.f32.mrb[0].mxu0
        %v1549 = vadd.f32 %v1260, %v1548
        %v1550 = vpop.f32.mrb[0].mxu0
        %v1551 = vpop.f32.mrb[0].mxu0
        %v1552 = vadd.f32 %v1263, %v1551
        %v1553 = vpop.f32.mrb[0].mxu0
        %1554 = vmatprep.mubr.bf16.mxu0 %v597
        %1555 = vmatmul.mubr.bf16.gmra.mrb[0].mxu0 %v596
        %v1556 = vpop.f32.mrb[0].mxu0
        %v1557 = vadd.f32 %v1268, %v1556
        %v1558 = vpop.f32.mrb[0].mxu0
        %v1559 = vpop.f32.mrb[0].mxu0
        %v1560 = vadd.f32 %v1271, %v1559
        %v1561 = vpop.f32.mrb[0].mxu0
        %1562 = vmatprep.mubr.bf16.mxu0 %v603
        %1563 = vmatmul.mubr.bf16.gmra.mrb[0].mxu0 %v602
        %v1564 = vpop.f32.mrb[0].mxu0
        %v1565 = vadd.f32 %v1276, %v1564
        %v1566 = vpop.f32.mrb[0].mxu0
        %v1567 = vpop.f32.mrb[0].mxu0
        %v1568 = vadd.f32 %v1279, %v1567
        %v1569 = vpop.f32.mrb[0].mxu0
        %1570 = vmatprep.mubr.bf16.mxu0 %v609
        %1571 = vmatmul.mubr.bf16.gmra.mrb[0].mxu0 %v608
        %v1572 = vpop.f32.mrb[0].mxu0
        %v1573 = vadd.f32 %v1284, %v1572
        %v1574 = vpop.f32.mrb[0].mxu0
        %v1575 = vpop.f32.mrb[0].mxu0
        %v1576 = vadd.f32 %v1287, %v1575
        %v1577 = vpop.f32.mrb[0].mxu0
        %1578 = vmatprep.mubr.bf16.mxu0 %v615
        %1579 = vmatmul.mubr.bf16.gmra.mrb[0].mxu0 %v614
        %v1580 = vpop.f32.mrb[0].mxu0
        %v1581 = vadd.f32 %v1292, %v1580
        %v1582 = vpop.f32.mrb[0].mxu0
        %v1583 = vpop.f32.mrb[0].mxu0
        %v1584 = vadd.f32 %v1295, %v1583
        %v1585 = vpop.f32.mrb[0].mxu0
        %1586 = vdwg.mxu0
        %1587 = vmatprep.subr.bf16.mxu0 0
        %1588 = vmatpush1.bf16.msra.mxu0 %v945
        %1589 = vmatprep.subr.bf16.mxu0 0
        %1590 = vmatpush1.bf16.msra.mxu0 %v946
        %1591 = vmatprep.subr.bf16.mxu0 0
        %1592 = vmatpush1.bf16.msra.mxu0 %v947
        %1593 = vmatprep.subr.bf16.mxu0 0
        %1594 = vmatpush1.bf16.msra.mxu0 %v948
        %1595 = vmatprep.subr.bf16.mxu0 0
        %1596 = vmatpush1.bf16.msra.mxu0 %v949
        %1597 = vmatprep.subr.bf16.mxu0 0
        %1598 = vmatpush1.bf16.msra.mxu0 %v950
        %1599 = vmatprep.subr.bf16.mxu0 0
        %1600 = vmatpush1.bf16.msra.mxu0 %v951
        %1601 = vmatprep.subr.bf16.mxu0 0
        %1602 = vmatpush1.bf16.msra.mxu0 %v952
        %1603 = vmatprep.subr.bf16.mxu0 0
        %1604 = vmatpush1.bf16.msra.mxu0 %v953
        %1605 = vmatprep.subr.bf16.mxu0 0
        %1606 = vmatpush1.bf16.msra.mxu0 %v954
        %1607 = vmatprep.subr.bf16.mxu0 0
        %1608 = vmatpush1.bf16.msra.mxu0 %v955
        %1609 = vmatprep.subr.bf16.mxu0 0
        %1610 = vmatpush1.bf16.msra.mxu0 %v956
        %1611 = vmatprep.subr.bf16.mxu0 0
        %1612 = vmatpush1.bf16.msra.mxu0 %v957
        %1613 = vmatprep.subr.bf16.mxu0 0
        %1614 = vmatpush1.bf16.msra.mxu0 %v958
        %1615 = vmatprep.subr.bf16.mxu0 0
        %1616 = vmatpush1.bf16.msra.mxu0 %v959
        %1617 = vmatprep.subr.bf16.mxu0 0
        %1618 = vmatpush1.bf16.msra.mxu0 %v960
        %1619 = vmatprep.mubr.bf16.mxu0 %v431
        %1620 = vmatmul.mubr.bf16.gmra.mrb[0].mxu0 %v430
        %v1621 = vpop.f32.mrb[0].mxu0
        %v1622 = vadd.f32 %v1333, %v1621
        %v1623 = vpop.f32.mrb[0].mxu0
        %v1624 = vpop.f32.mrb[0].mxu0
        %v1625 = vadd.f32 %v1336, %v1624
        %v1626 = vpop.f32.mrb[0].mxu0
        %1627 = vmatprep.mubr.bf16.mxu0 %v437
        %1628 = vmatmul.mubr.bf16.gmra.mrb[0].mxu0 %v436
        %v1629 = vpop.f32.mrb[0].mxu0
        %v1630 = vadd.f32 %v1341, %v1629
        %v1631 = vpop.f32.mrb[0].mxu0
        %v1632 = vpop.f32.mrb[0].mxu0
        %v1633 = vadd.f32 %v1344, %v1632
        %v1634 = vpop.f32.mrb[0].mxu0
        %1635 = vmatprep.mubr.bf16.mxu0 %v443
        %1636 = vmatmul.mubr.bf16.gmra.mrb[0].mxu0 %v442
        %v1637 = vpop.f32.mrb[0].mxu0
        %v1638 = vadd.f32 %v1349, %v1637
        %v1639 = vpop.f32.mrb[0].mxu0
        %v1640 = vpop.f32.mrb[0].mxu0
        %v1641 = vadd.f32 %v1352, %v1640
        %v1642 = vpop.f32.mrb[0].mxu0
        %1643 = vmatprep.mubr.bf16.mxu0 %v449
        %1644 = vmatmul.mubr.bf16.gmra.mrb[0].mxu0 %v448
        %v1645 = vpop.f32.mrb[0].mxu0
        %v1646 = vadd.f32 %v1357, %v1645
        %v1647 = vpop.f32.mrb[0].mxu0
        %v1648 = vpop.f32.mrb[0].mxu0
        %v1649 = vadd.f32 %v1360, %v1648
        %v1650 = vpop.f32.mrb[0].mxu0
        %1651 = vmatprep.mubr.bf16.mxu0 %v455
        %1652 = vmatmul.mubr.bf16.gmra.mrb[0].mxu0 %v454
        %v1653 = vpop.f32.mrb[0].mxu0
        %v1654 = vadd.f32 %v1365, %v1653
        %v1655 = vpop.f32.mrb[0].mxu0
        %v1656 = vpop.f32.mrb[0].mxu0
        %v1657 = vadd.f32 %v1368, %v1656
        %v1658 = vpop.f32.mrb[0].mxu0
        %1659 = vmatprep.mubr.bf16.mxu0 %v461
        %1660 = vmatmul.mubr.bf16.gmra.mrb[0].mxu0 %v460
        %v1661 = vpop.f32.mrb[0].mxu0
        %v1662 = vadd.f32 %v1373, %v1661
        %v1663 = vpop.f32.mrb[0].mxu0
        %v1664 = vpop.f32.mrb[0].mxu0
        %v1665 = vadd.f32 %v1376, %v1664
        %v1666 = vpop.f32.mrb[0].mxu0
        %1667 = vmatprep.mubr.bf16.mxu0 %v467
        %1668 = vmatmul.mubr.bf16.gmra.mrb[0].mxu0 %v466
        %v1669 = vpop.f32.mrb[0].mxu0
        %v1670 = vadd.f32 %v1381, %v1669
        %v1671 = vpop.f32.mrb[0].mxu0
        %v1672 = vpop.f32.mrb[0].mxu0
        %v1673 = vadd.f32 %v1384, %v1672
        %v1674 = vpop.f32.mrb[0].mxu0
        %1675 = vmatprep.mubr.bf16.mxu0 %v473
        %1676 = vmatmul.mubr.bf16.gmra.mrb[0].mxu0 %v472
        %v1677 = vpop.f32.mrb[0].mxu0
        %v1678 = vadd.f32 %v1389, %v1677
        %v1679 = vpop.f32.mrb[0].mxu0
        %v1680 = vpop.f32.mrb[0].mxu0
        %v1681 = vadd.f32 %v1392, %v1680
        %v1682 = vpop.f32.mrb[0].mxu0
        %1683 = vmatprep.mubr.bf16.mxu0 %v479
        %1684 = vmatmul.mubr.bf16.gmra.mrb[0].mxu0 %v478
        %v1685 = vpop.f32.mrb[0].mxu0
        %v1686 = vadd.f32 %v1397, %v1685
        %v1687 = vpop.f32.mrb[0].mxu0
        %v1688 = vpop.f32.mrb[0].mxu0
        %v1689 = vadd.f32 %v1400, %v1688
        %v1690 = vpop.f32.mrb[0].mxu0
        %1691 = vmatprep.mubr.bf16.mxu0 %v485
        %1692 = vmatmul.mubr.bf16.gmra.mrb[0].mxu0 %v484
        %v1693 = vpop.f32.mrb[0].mxu0
        %v1694 = vadd.f32 %v1405, %v1693
        %v1695 = vpop.f32.mrb[0].mxu0
        %v1696 = vpop.f32.mrb[0].mxu0
        %v1697 = vadd.f32 %v1408, %v1696
        %v1698 = vpop.f32.mrb[0].mxu0
        %1699 = vmatprep.mubr.bf16.mxu0 %v491
        %1700 = vmatmul.mubr.bf16.gmra.mrb[0].mxu0 %v490
        %v1701 = vpop.f32.mrb[0].mxu0
        %v1702 = vadd.f32 %v1413, %v1701
        %v1703 = vpop.f32.mrb[0].mxu0
        %v1704 = vpop.f32.mrb[0].mxu0
        %v1705 = vadd.f32 %v1416, %v1704
        %v1706 = vpop.f32.mrb[0].mxu0
        %1707 = vmatprep.mubr.bf16.mxu0 %v497
        %1708 = vmatmul.mubr.bf16.gmra.mrb[0].mxu0 %v496
        %v1709 = vpop.f32.mrb[0].mxu0
        %v1710 = vadd.f32 %v1421, %v1709
        %v1711 = vpop.f32.mrb[0].mxu0
        %v1712 = vpop.f32.mrb[0].mxu0
        %v1713 = vadd.f32 %v1424, %v1712
        %v1714 = vpop.f32.mrb[0].mxu0
        %1715 = vmatprep.mubr.bf16.mxu0 %v503
        %1716 = vmatmul.mubr.bf16.gmra.mrb[0].mxu0 %v502
        %v1717 = vpop.f32.mrb[0].mxu0
        %v1718 = vadd.f32 %v1429, %v1717
        %v1719 = vpop.f32.mrb[0].mxu0
        %v1720 = vpop.f32.mrb[0].mxu0
        %v1721 = vadd.f32 %v1432, %v1720
        %v1722 = vpop.f32.mrb[0].mxu0
        %1723 = vmatprep.mubr.bf16.mxu0 %v509
        %1724 = vmatmul.mubr.bf16.gmra.mrb[0].mxu0 %v508
        %v1725 = vpop.f32.mrb[0].mxu0
        %v1726 = vadd.f32 %v1437, %v1725
        %v1727 = vpop.f32.mrb[0].mxu0
        %v1728 = vpop.f32.mrb[0].mxu0
        %v1729 = vadd.f32 %v1440, %v1728
        %v1730 = vpop.f32.mrb[0].mxu0
        %1731 = vmatprep.mubr.bf16.mxu0 %v515
        %1732 = vmatmul.mubr.bf16.gmra.mrb[0].mxu0 %v514
        %v1733 = vpop.f32.mrb[0].mxu0
        %v1734 = vadd.f32 %v1445, %v1733
        %v1735 = vpop.f32.mrb[0].mxu0
        %v1736 = vpop.f32.mrb[0].mxu0
        %v1737 = vadd.f32 %v1448, %v1736
        %v1738 = vpop.f32.mrb[0].mxu0
        %1739 = vmatprep.mubr.bf16.mxu0 %v521
        %1740 = vmatmul.mubr.bf16.gmra.mrb[0].mxu0 %v520
        %v1741 = vpop.f32.mrb[0].mxu0
        %v1742 = vadd.f32 %v1453, %v1741
        %v1743 = vpop.f32.mrb[0].mxu0
        %v1744 = vpop.f32.mrb[0].mxu0
        %v1745 = vadd.f32 %v1456, %v1744
        %v1746 = vpop.f32.mrb[0].mxu0
        %1747 = vmatprep.mubr.bf16.mxu0 %v527
        %1748 = vmatmul.mubr.bf16.gmra.mrb[0].mxu0 %v526
        %v1749 = vpop.f32.mrb[0].mxu0
        %v1750 = vadd.f32 %v1461, %v1749
        %v1751 = vpop.f32.mrb[0].mxu0
        %v1752 = vpop.f32.mrb[0].mxu0
        %v1753 = vadd.f32 %v1464, %v1752
        %v1754 = vpop.f32.mrb[0].mxu0
        %1755 = vmatprep.mubr.bf16.mxu0 %v533
        %1756 = vmatmul.mubr.bf16.gmra.mrb[0].mxu0 %v532
        %v1757 = vpop.f32.mrb[0].mxu0
        %v1758 = vadd.f32 %v1469, %v1757
        %v1759 = vpop.f32.mrb[0].mxu0
        %v1760 = vpop.f32.mrb[0].mxu0
        %v1761 = vadd.f32 %v1472, %v1760
        %v1762 = vpop.f32.mrb[0].mxu0
        %1763 = vmatprep.mubr.bf16.mxu0 %v539
        %1764 = vmatmul.mubr.bf16.gmra.mrb[0].mxu0 %v538
        %v1765 = vpop.f32.mrb[0].mxu0
        %v1766 = vadd.f32 %v1477, %v1765
        %v1767 = vpop.f32.mrb[0].mxu0
        %v1768 = vpop.f32.mrb[0].mxu0
        %v1769 = vadd.f32 %v1480, %v1768
        %v1770 = vpop.f32.mrb[0].mxu0
        %1771 = vmatprep.mubr.bf16.mxu0 %v545
        %1772 = vmatmul.mubr.bf16.gmra.mrb[0].mxu0 %v544
        %v1773 = vpop.f32.mrb[0].mxu0
        %v1774 = vadd.f32 %v1485, %v1773
        %v1775 = vpop.f32.mrb[0].mxu0
        %v1776 = vpop.f32.mrb[0].mxu0
        %v1777 = vadd.f32 %v1488, %v1776
        %v1778 = vpop.f32.mrb[0].mxu0
        %1779 = vmatprep.mubr.bf16.mxu0 %v551
        %1780 = vmatmul.mubr.bf16.gmra.mrb[0].mxu0 %v550
        %v1781 = vpop.f32.mrb[0].mxu0
        %v1782 = vadd.f32 %v1493, %v1781
        %v1783 = vpop.f32.mrb[0].mxu0
        %v1784 = vpop.f32.mrb[0].mxu0
        %v1785 = vadd.f32 %v1496, %v1784
        %v1786 = vpop.f32.mrb[0].mxu0
        %1787 = vmatprep.mubr.bf16.mxu0 %v557
        %1788 = vmatmul.mubr.bf16.gmra.mrb[0].mxu0 %v556
        %v1789 = vpop.f32.mrb[0].mxu0
        %v1790 = vadd.f32 %v1501, %v1789
        %v1791 = vpop.f32.mrb[0].mxu0
        %v1792 = vpop.f32.mrb[0].mxu0
        %v1793 = vadd.f32 %v1504, %v1792
        %v1794 = vpop.f32.mrb[0].mxu0
        %1795 = vmatprep.mubr.bf16.mxu0 %v563
        %1796 = vmatmul.mubr.bf16.gmra.mrb[0].mxu0 %v562
        %v1797 = vpop.f32.mrb[0].mxu0
        %v1798 = vadd.f32 %v1509, %v1797
        %v1799 = vpop.f32.mrb[0].mxu0
        %v1800 = vpop.f32.mrb[0].mxu0
        %v1801 = vadd.f32 %v1512, %v1800
        %v1802 = vpop.f32.mrb[0].mxu0
        %1803 = vmatprep.mubr.bf16.mxu0 %v569
        %1804 = vmatmul.mubr.bf16.gmra.mrb[0].mxu0 %v568
        %v1805 = vpop.f32.mrb[0].mxu0
        %v1806 = vadd.f32 %v1517, %v1805
        %v1807 = vpop.f32.mrb[0].mxu0
        %v1808 = vpop.f32.mrb[0].mxu0
        %v1809 = vadd.f32 %v1520, %v1808
        %v1810 = vpop.f32.mrb[0].mxu0
        %1811 = vmatprep.mubr.bf16.mxu0 %v575
        %1812 = vmatmul.mubr.bf16.gmra.mrb[0].mxu0 %v574
        %v1813 = vpop.f32.mrb[0].mxu0
        %v1814 = vadd.f32 %v1525, %v1813
        %v1815 = vpop.f32.mrb[0].mxu0
        %v1816 = vpop.f32.mrb[0].mxu0
        %v1817 = vadd.f32 %v1528, %v1816
        %v1818 = vpop.f32.mrb[0].mxu0
        %1819 = vmatprep.mubr.bf16.mxu0 %v581
        %1820 = vmatmul.mubr.bf16.gmra.mrb[0].mxu0 %v580
        %v1821 = vpop.f32.mrb[0].mxu0
        %v1822 = vadd.f32 %v1533, %v1821
        %v1823 = vpop.f32.mrb[0].mxu0
        %v1824 = vpop.f32.mrb[0].mxu0
        %v1825 = vadd.f32 %v1536, %v1824
        %v1826 = vpop.f32.mrb[0].mxu0
        %1827 = vmatprep.mubr.bf16.mxu0 %v587
        %1828 = vmatmul.mubr.bf16.gmra.mrb[0].mxu0 %v586
        %v1829 = vpop.f32.mrb[0].mxu0
        %v1830 = vadd.f32 %v1541, %v1829
        %v1831 = vpop.f32.mrb[0].mxu0
        %v1832 = vpop.f32.mrb[0].mxu0
        %v1833 = vadd.f32 %v1544, %v1832
        %v1834 = vpop.f32.mrb[0].mxu0
        %1835 = vmatprep.mubr.bf16.mxu0 %v593
        %1836 = vmatmul.mubr.bf16.gmra.mrb[0].mxu0 %v592
        %v1837 = vpop.f32.mrb[0].mxu0
        %v1838 = vadd.f32 %v1549, %v1837
        %v1839 = vpop.f32.mrb[0].mxu0
        %v1840 = vpop.f32.mrb[0].mxu0
        %v1841 = vadd.f32 %v1552, %v1840
        %v1842 = vpop.f32.mrb[0].mxu0
        %1843 = vmatprep.mubr.bf16.mxu0 %v599
        %1844 = vmatmul.mubr.bf16.gmra.mrb[0].mxu0 %v598
        %v1845 = vpop.f32.mrb[0].mxu0
        %v1846 = vadd.f32 %v1557, %v1845
        %v1847 = vpop.f32.mrb[0].mxu0
        %v1848 = vpop.f32.mrb[0].mxu0
        %v1849 = vadd.f32 %v1560, %v1848
        %v1850 = vpop.f32.mrb[0].mxu0
        %1851 = vmatprep.mubr.bf16.mxu0 %v605
        %1852 = vmatmul.mubr.bf16.gmra.mrb[0].mxu0 %v604
        %v1853 = vpop.f32.mrb[0].mxu0
        %v1854 = vadd.f32 %v1565, %v1853
        %v1855 = vpop.f32.mrb[0].mxu0
        %v1856 = vpop.f32.mrb[0].mxu0
        %v1857 = vadd.f32 %v1568, %v1856
        %v1858 = vpop.f32.mrb[0].mxu0
        %1859 = vmatprep.mubr.bf16.mxu0 %v611
        %1860 = vmatmul.mubr.bf16.gmra.mrb[0].mxu0 %v610
        %v1861 = vpop.f32.mrb[0].mxu0
        %v1862 = vadd.f32 %v1573, %v1861
        %v1863 = vpop.f32.mrb[0].mxu0
        %v1864 = vpop.f32.mrb[0].mxu0
        %v1865 = vadd.f32 %v1576, %v1864
        %v1866 = vpop.f32.mrb[0].mxu0
        %1867 = vmatprep.mubr.bf16.mxu0 %v617
        %1868 = vmatmul.mubr.bf16.gmra.mrb[0].mxu0 %v616
        %v1869 = vpop.f32.mrb[0].mxu0
        %v1870 = vadd.f32 %v1581, %v1869
        %v1871 = vpop.f32.mrb[0].mxu0
        %v1872 = vpop.f32.mrb[0].mxu0
        %v1873 = vadd.f32 %v1584, %v1872
        %v1874 = vpop.f32.mrb[0].mxu0
        %1875 = vdwg.mxu0
        %v1876 = vmax.f32 %v1622, 0.0
        %v1877 = vmax.f32 %v1625, 0.0
        %v1878 = vmax.f32 %v1630, 0.0
        %v1879 = vmax.f32 %v1633, 0.0
        %v1880 = vmax.f32 %v1638, 0.0
        %v1881 = vmax.f32 %v1641, 0.0
        %v1882 = vmax.f32 %v1646, 0.0
        %v1883 = vmax.f32 %v1649, 0.0
        %v1884 = vmax.f32 %v1654, 0.0
        %v1885 = vmax.f32 %v1657, 0.0
        %v1886 = vmax.f32 %v1662, 0.0
        %v1887 = vmax.f32 %v1665, 0.0
        %v1888 = vmax.f32 %v1670, 0.0
        %v1889 = vmax.f32 %v1673, 0.0
        %v1890 = vmax.f32 %v1678, 0.0
        %v1891 = vmax.f32 %v1681, 0.0
        %v1892 = vmax.f32 %v1686, 0.0
        %v1893 = vmax.f32 %v1689, 0.0
        %v1894 = vmax.f32 %v1694, 0.0
        %v1895 = vmax.f32 %v1697, 0.0
        %v1896 = vmax.f32 %v1702, 0.0
        %v1897 = vmax.f32 %v1705, 0.0
        %v1898 = vmax.f32 %v1710, 0.0
        %v1899 = vmax.f32 %v1713, 0.0
        %v1900 = vmax.f32 %v1718, 0.0
        %v1901 = vmax.f32 %v1721, 0.0
        %v1902 = vmax.f32 %v1726, 0.0
        %v1903 = vmax.f32 %v1729, 0.0
        %v1904 = vmax.f32 %v1734, 0.0
        %v1905 = vmax.f32 %v1737, 0.0
        %v1906 = vmax.f32 %v1742, 0.0
        %v1907 = vmax.f32 %v1745, 0.0
        %v1908 = vmax.f32 %v1750, 0.0
        %v1909 = vmax.f32 %v1753, 0.0
        %v1910 = vmax.f32 %v1758, 0.0
        %v1911 = vmax.f32 %v1761, 0.0
        %v1912 = vmax.f32 %v1766, 0.0
        %v1913 = vmax.f32 %v1769, 0.0
        %v1914 = vmax.f32 %v1774, 0.0
        %v1915 = vmax.f32 %v1777, 0.0
        %v1916 = vmax.f32 %v1782, 0.0
        %v1917 = vmax.f32 %v1785, 0.0
        %v1918 = vmax.f32 %v1790, 0.0
        %v1919 = vmax.f32 %v1793, 0.0
        %v1920 = vmax.f32 %v1798, 0.0
        %v1921 = vmax.f32 %v1801, 0.0
        %v1922 = vmax.f32 %v1806, 0.0
        %v1923 = vmax.f32 %v1809, 0.0
        %v1924 = vmax.f32 %v1814, 0.0
        %v1925 = vmax.f32 %v1817, 0.0
        %v1926 = vmax.f32 %v1822, 0.0
        %v1927 = vmax.f32 %v1825, 0.0
        %v1928 = vmax.f32 %v1830, 0.0
        %v1929 = vmax.f32 %v1833, 0.0
        %v1930 = vmax.f32 %v1838, 0.0
        %v1931 = vmax.f32 %v1841, 0.0
        %v1932 = vmax.f32 %v1846, 0.0
        %v1933 = vmax.f32 %v1849, 0.0
        %v1934 = vmax.f32 %v1854, 0.0
        %v1935 = vmax.f32 %v1857, 0.0
        %v1936 = vmax.f32 %v1862, 0.0
        %v1937 = vmax.f32 %v1865, 0.0
        %v1938 = vmax.f32 %v1870, 0.0
        %v1939 = vmax.f32 %v1873, 0.0
        %v1940 = vmin.f32 %v1876, 127.0
        %v1941 = vmin.f32 %v1877, 127.0
        %v1942 = vmin.f32 %v1878, 127.0
        %v1943 = vmin.f32 %v1879, 127.0
        %v1944 = vmin.f32 %v1880, 127.0
        %v1945 = vmin.f32 %v1881, 127.0
        %v1946 = vmin.f32 %v1882, 127.0
        %v1947 = vmin.f32 %v1883, 127.0
        %v1948 = vmin.f32 %v1884, 127.0
        %v1949 = vmin.f32 %v1885, 127.0
        %v1950 = vmin.f32 %v1886, 127.0
        %v1951 = vmin.f32 %v1887, 127.0
        %v1952 = vmin.f32 %v1888, 127.0
        %v1953 = vmin.f32 %v1889, 127.0
        %v1954 = vmin.f32 %v1890, 127.0
        %v1955 = vmin.f32 %v1891, 127.0
        %v1956 = vmin.f32 %v1892, 127.0
        %v1957 = vmin.f32 %v1893, 127.0
        %v1958 = vmin.f32 %v1894, 127.0
        %v1959 = vmin.f32 %v1895, 127.0
        %v1960 = vmin.f32 %v1896, 127.0
        %v1961 = vmin.f32 %v1897, 127.0
        %v1962 = vmin.f32 %v1898, 127.0
        %v1963 = vmin.f32 %v1899, 127.0
        %v1964 = vmin.f32 %v1900, 127.0
        %v1965 = vmin.f32 %v1901, 127.0
        %v1966 = vmin.f32 %v1902, 127.0
        %v1967 = vmin.f32 %v1903, 127.0
        %v1968 = vmin.f32 %v1904, 127.0
        %v1969 = vmin.f32 %v1905, 127.0
        %v1970 = vmin.f32 %v1906, 127.0
        %v1971 = vmin.f32 %v1907, 127.0
        %v1972 = vmin.f32 %v1908, 127.0
        %v1973 = vmin.f32 %v1909, 127.0
        %v1974 = vmin.f32 %v1910, 127.0
        %v1975 = vmin.f32 %v1911, 127.0
        %v1976 = vmin.f32 %v1912, 127.0
        %v1977 = vmin.f32 %v1913, 127.0
        %v1978 = vmin.f32 %v1914, 127.0
        %v1979 = vmin.f32 %v1915, 127.0
        %v1980 = vmin.f32 %v1916, 127.0
        %v1981 = vmin.f32 %v1917, 127.0
        %v1982 = vmin.f32 %v1918, 127.0
        %v1983 = vmin.f32 %v1919, 127.0
        %v1984 = vmin.f32 %v1920, 127.0
        %v1985 = vmin.f32 %v1921, 127.0
        %v1986 = vmin.f32 %v1922, 127.0
        %v1987 = vmin.f32 %v1923, 127.0
        %v1988 = vmin.f32 %v1924, 127.0
        %v1989 = vmin.f32 %v1925, 127.0
        %v1990 = vmin.f32 %v1926, 127.0
        %v1991 = vmin.f32 %v1927, 127.0
        %v1992 = vmin.f32 %v1928, 127.0
        %v1993 = vmin.f32 %v1929, 127.0
        %v1994 = vmin.f32 %v1930, 127.0
        %v1995 = vmin.f32 %v1931, 127.0
        %v1996 = vmin.f32 %v1932, 127.0
        %v1997 = vmin.f32 %v1933, 127.0
        %v1998 = vmin.f32 %v1934, 127.0
        %v1999 = vmin.f32 %v1935, 127.0
        %v2000 = vmin.f32 %v1936, 127.0
        %v2001 = vmin.f32 %v1937, 127.0
        %v2002 = vmin.f32 %v1938, 127.0
        %v2003 = vmin.f32 %v1939, 127.0
        %v2004 = vpack.c.bf16 %v1941, %v1940
        %v2005 = vpack.c.bf16 %v1943, %v1942
        %v2006 = vpack.c.bf16 %v1945, %v1944
        %v2007 = vpack.c.bf16 %v1947, %v1946
        %v2008 = vpack.c.bf16 %v1949, %v1948
        %v2009 = vpack.c.bf16 %v1951, %v1950
        %v2010 = vpack.c.bf16 %v1953, %v1952
        %v2011 = vpack.c.bf16 %v1955, %v1954
        %v2012 = vpack.c.bf16 %v1957, %v1956
        %v2013 = vpack.c.bf16 %v1959, %v1958
        %v2014 = vpack.c.bf16 %v1961, %v1960
        %v2015 = vpack.c.bf16 %v1963, %v1962
        %v2016 = vpack.c.bf16 %v1965, %v1964
        %v2017 = vpack.c.bf16 %v1967, %v1966
        %v2018 = vpack.c.bf16 %v1969, %v1968
        %v2019 = vpack.c.bf16 %v1971, %v1970
        %v2020 = vpack.c.bf16 %v1973, %v1972
        %v2021 = vpack.c.bf16 %v1975, %v1974
        %v2022 = vpack.c.bf16 %v1977, %v1976
        %v2023 = vpack.c.bf16 %v1979, %v1978
        %v2024 = vpack.c.bf16 %v1981, %v1980
        %v2025 = vpack.c.bf16 %v1983, %v1982
        %v2026 = vpack.c.bf16 %v1985, %v1984
        %v2027 = vpack.c.bf16 %v1987, %v1986
        %v2028 = vpack.c.bf16 %v1989, %v1988
        %v2029 = vpack.c.bf16 %v1991, %v1990
        %v2030 = vpack.c.bf16 %v1993, %v1992
        %v2031 = vpack.c.bf16 %v1995, %v1994
        %v2032 = vpack.c.bf16 %v1997, %v1996
        %v2033 = vpack.c.bf16 %v1999, %v1998
        %v2034 = vpack.c.bf16 %v2001, %v2000
        %v2035 = vpack.c.bf16 %v2003, %v2002
        %v2036 = vld [vmem:[#allocation7] sm:$0xf]
        %v2037 = vld [vmem:[#allocation7 + $0x4] sm:$0xf]
        %v2038 = vld [vmem:[#allocation7 + $0x8] sm:$0xf]
        %v2039 = vld [vmem:[#allocation7 + $0xc] sm:$0xf]
        %v2040 = vld [vmem:[#allocation7 + $0x10] sm:$0xf]
        %v2041 = vld [vmem:[#allocation7 + $0x14] sm:$0xf]
        %v2042 = vld [vmem:[#allocation7 + $0x18] sm:$0xf]
        %v2043 = vld [vmem:[#allocation7 + $0x1c] sm:$0xf]
        %v2044 = vld [vmem:[#allocation7 + $0x20] sm:$0xf]
        %v2045 = vld [vmem:[#allocation7 + $0x24] sm:$0xf]
        %v2046 = vld [vmem:[#allocation7 + $0x28] sm:$0xf]
        %v2047 = vld [vmem:[#allocation7 + $0x2c] sm:$0xf]
        %v2048 = vld [vmem:[#allocation7 + $0x30] sm:$0xf]
        %v2049 = vld [vmem:[#allocation7 + $0x34] sm:$0xf]
        %v2050 = vld [vmem:[#allocation7 + $0x38] sm:$0xf]
        %v2051 = vld [vmem:[#allocation7 + $0x3c] sm:$0xf]
        %v2052 = vld [vmem:[#allocation9] sm:$0x1]
        %v2054 = vlaneseq
        %v2055 = vshrl.u32 %v2054, 7
        %v2056 = vsub.s32 0, %v2055
        %v2057 = vrot.slane %v2052, %v2056
        %v2075 = vunpack.c.l.b16 %v2036
        %v2076 = vunpack.c.l.b16 %v2037
        %v2077 = vunpack.c.l.b16 %v2038
        %v2078 = vunpack.c.l.b16 %v2039
        %v2079 = vunpack.c.l.b16 %v2040
        %v2080 = vunpack.c.l.b16 %v2041
        %v2081 = vunpack.c.l.b16 %v2042
        %v2082 = vunpack.c.l.b16 %v2043
        %v2083 = vunpack.c.l.b16 %v2044
        %v2084 = vunpack.c.l.b16 %v2045
        %v2085 = vunpack.c.l.b16 %v2046
        %v2086 = vunpack.c.l.b16 %v2047
        %v2087 = vunpack.c.l.b16 %v2048
        %v2088 = vunpack.c.l.b16 %v2049
        %v2089 = vunpack.c.l.b16 %v2050
        %v2090 = vunpack.c.l.b16 %v2051
        %v2091 = vpack.c.b16 %v2076, %v2075
        %v2092 = vpack.c.b16 %v2078, %v2077
        %v2093 = vpack.c.b16 %v2080, %v2079
        %v2094 = vpack.c.b16 %v2082, %v2081
        %v2095 = vpack.c.b16 %v2084, %v2083
        %v2096 = vpack.c.b16 %v2086, %v2085
        %v2097 = vpack.c.b16 %v2088, %v2087
        %v2098 = vpack.c.b16 %v2090, %v2089
        %2107 = vmatprep.subr.bf16.mxu0 0
        %2108 = vmatpush1.bf16.msra.mxu0 %v2091
        %2109 = vmatprep.subr.bf16.mxu0 0
        %2110 = vmatpush1.bf16.msra.mxu0 %v2092
        %2111 = vmatprep.subr.bf16.mxu0 0
        %2112 = vmatpush1.bf16.msra.mxu0 %v2093
        %2113 = vmatprep.subr.bf16.mxu0 0
        %2114 = vmatpush1.bf16.msra.mxu0 %v2094
        %2115 = vmatprep.subr.bf16.mxu0 0
        %2116 = vmatpush1.bf16.msra.mxu0 %v2095
        %2117 = vmatprep.subr.bf16.mxu0 0
        %2118 = vmatpush1.bf16.msra.mxu0 %v2096
        %2119 = vmatprep.subr.bf16.mxu0 0
        %2120 = vmatpush1.bf16.msra.mxu0 %v2097
        %2121 = vmatprep.subr.bf16.mxu0 0
        %2122 = vmatpush1.bf16.msra.mxu0 %v2098
        %2123 = vmatprep.subr.bf16.mxu0 0
        %2124 = vmatpush1.bf16.msra.mxu0 0
        %2125 = vmatprep.subr.bf16.mxu0 0
        %2126 = vmatpush1.bf16.msra.mxu0 0
        %2127 = vmatprep.subr.bf16.mxu0 0
        %2128 = vmatpush1.bf16.msra.mxu0 0
        %2129 = vmatprep.subr.bf16.mxu0 0
        %2130 = vmatpush1.bf16.msra.mxu0 0
        %2131 = vmatprep.subr.bf16.mxu0 0
        %2132 = vmatpush1.bf16.msra.mxu0 0
        %2133 = vmatprep.subr.bf16.mxu0 0
        %2134 = vmatpush1.bf16.msra.mxu0 0
        %2135 = vmatprep.subr.bf16.mxu0 0
        %2136 = vmatpush1.bf16.msra.mxu0 0
        %2137 = vmatprep.subr.bf16.mxu0 0
        %2138 = vmatpush1.bf16.msra.mxu0 0
        %2139 = vmatprep.mubr.bf16.mxu0 0
        %2140 = vmatmul.mubr.bf16.gmra.mrb[0].mxu0 %v2004
        %v2141 = vpop.f32.mrb[0].mxu0
        %v2142 = vadd.f32 %v2057, %v2141
        %v2143 = vpop.f32.mrb[0].mxu0
        %v2144 = vpop.f32.mrb[0].mxu0
        %v2145 = vadd.f32 %v2057, %v2144
        %v2146 = vpop.f32.mrb[0].mxu0
        %2147 = vmatprep.mubr.bf16.mxu0 0
        %2148 = vmatmul.mubr.bf16.gmra.mrb[0].mxu0 %v2005
        %v2149 = vpop.f32.mrb[0].mxu0
        %v2150 = vadd.f32 %v2057, %v2149
        %v2151 = vpop.f32.mrb[0].mxu0
        %v2152 = vpop.f32.mrb[0].mxu0
        %v2153 = vadd.f32 %v2057, %v2152
        %v2154 = vpop.f32.mrb[0].mxu0
        %2155 = vmatprep.mubr.bf16.mxu0 0
        %2156 = vmatmul.mubr.bf16.gmra.mrb[0].mxu0 %v2006
        %v2157 = vpop.f32.mrb[0].mxu0
        %v2158 = vadd.f32 %v2057, %v2157
        %v2159 = vpop.f32.mrb[0].mxu0
        %v2160 = vpop.f32.mrb[0].mxu0
        %v2161 = vadd.f32 %v2057, %v2160
        %v2162 = vpop.f32.mrb[0].mxu0
        %2163 = vmatprep.mubr.bf16.mxu0 0
        %2164 = vmatmul.mubr.bf16.gmra.mrb[0].mxu0 %v2007
        %v2165 = vpop.f32.mrb[0].mxu0
        %v2166 = vadd.f32 %v2057, %v2165
        %v2167 = vpop.f32.mrb[0].mxu0
        %v2168 = vpop.f32.mrb[0].mxu0
        %v2169 = vadd.f32 %v2057, %v2168
        %v2170 = vpop.f32.mrb[0].mxu0
        %2171 = vmatprep.mubr.bf16.mxu0 0
        %2172 = vmatmul.mubr.bf16.gmra.mrb[0].mxu0 %v2008
        %v2173 = vpop.f32.mrb[0].mxu0
        %v2174 = vadd.f32 %v2057, %v2173
        %v2175 = vpop.f32.mrb[0].mxu0
        %v2176 = vpop.f32.mrb[0].mxu0
        %v2177 = vadd.f32 %v2057, %v2176
        %v2178 = vpop.f32.mrb[0].mxu0
        %2179 = vmatprep.mubr.bf16.mxu0 0
        %2180 = vmatmul.mubr.bf16.gmra.mrb[0].mxu0 %v2009
        %v2181 = vpop.f32.mrb[0].mxu0
        %v2182 = vadd.f32 %v2057, %v2181
        %v2183 = vpop.f32.mrb[0].mxu0
        %v2184 = vpop.f32.mrb[0].mxu0
        %v2185 = vadd.f32 %v2057, %v2184
        %v2186 = vpop.f32.mrb[0].mxu0
        %2187 = vmatprep.mubr.bf16.mxu0 0
        %2188 = vmatmul.mubr.bf16.gmra.mrb[0].mxu0 %v2010
        %v2189 = vpop.f32.mrb[0].mxu0
        %v2190 = vadd.f32 %v2057, %v2189
        %v2191 = vpop.f32.mrb[0].mxu0
        %v2192 = vpop.f32.mrb[0].mxu0
        %v2193 = vadd.f32 %v2057, %v2192
        %v2194 = vpop.f32.mrb[0].mxu0
        %2195 = vmatprep.mubr.bf16.mxu0 0
        %2196 = vmatmul.mubr.bf16.gmra.mrb[0].mxu0 %v2011
        %v2197 = vpop.f32.mrb[0].mxu0
        %v2198 = vadd.f32 %v2057, %v2197
        %v2199 = vpop.f32.mrb[0].mxu0
        %v2200 = vpop.f32.mrb[0].mxu0
        %v2201 = vadd.f32 %v2057, %v2200
        %v2202 = vpop.f32.mrb[0].mxu0
        %2203 = vmatprep.mubr.bf16.mxu0 0
        %2204 = vmatmul.mubr.bf16.gmra.mrb[0].mxu0 %v2012
        %v2205 = vpop.f32.mrb[0].mxu0
        %v2206 = vadd.f32 %v2057, %v2205
        %v2207 = vpop.f32.mrb[0].mxu0
        %v2208 = vpop.f32.mrb[0].mxu0
        %v2209 = vadd.f32 %v2057, %v2208
        %v2210 = vpop.f32.mrb[0].mxu0
        %2211 = vmatprep.mubr.bf16.mxu0 0
        %2212 = vmatmul.mubr.bf16.gmra.mrb[0].mxu0 %v2013
        %v2213 = vpop.f32.mrb[0].mxu0
        %v2214 = vadd.f32 %v2057, %v2213
        %v2215 = vpop.f32.mrb[0].mxu0
        %v2216 = vpop.f32.mrb[0].mxu0
        %v2217 = vadd.f32 %v2057, %v2216
        %v2218 = vpop.f32.mrb[0].mxu0
        %2219 = vmatprep.mubr.bf16.mxu0 0
        %2220 = vmatmul.mubr.bf16.gmra.mrb[0].mxu0 %v2014
        %v2221 = vpop.f32.mrb[0].mxu0
        %v2222 = vadd.f32 %v2057, %v2221
        %v2223 = vpop.f32.mrb[0].mxu0
        %v2224 = vpop.f32.mrb[0].mxu0
        %v2225 = vadd.f32 %v2057, %v2224
        %v2226 = vpop.f32.mrb[0].mxu0
        %2227 = vmatprep.mubr.bf16.mxu0 0
        %2228 = vmatmul.mubr.bf16.gmra.mrb[0].mxu0 %v2015
        %v2229 = vpop.f32.mrb[0].mxu0
        %v2230 = vadd.f32 %v2057, %v2229
        %v2231 = vpop.f32.mrb[0].mxu0
        %v2232 = vpop.f32.mrb[0].mxu0
        %v2233 = vadd.f32 %v2057, %v2232
        %v2234 = vpop.f32.mrb[0].mxu0
        %2235 = vmatprep.mubr.bf16.mxu0 0
        %2236 = vmatmul.mubr.bf16.gmra.mrb[0].mxu0 %v2016
        %v2237 = vpop.f32.mrb[0].mxu0
        %v2238 = vadd.f32 %v2057, %v2237
        %v2239 = vpop.f32.mrb[0].mxu0
        %v2240 = vpop.f32.mrb[0].mxu0
        %v2241 = vadd.f32 %v2057, %v2240
        %v2242 = vpop.f32.mrb[0].mxu0
        %2243 = vmatprep.mubr.bf16.mxu0 0
        %2244 = vmatmul.mubr.bf16.gmra.mrb[0].mxu0 %v2017
        %v2245 = vpop.f32.mrb[0].mxu0
        %v2246 = vadd.f32 %v2057, %v2245
        %v2247 = vpop.f32.mrb[0].mxu0
        %v2248 = vpop.f32.mrb[0].mxu0
        %v2249 = vadd.f32 %v2057, %v2248
        %v2250 = vpop.f32.mrb[0].mxu0
        %2251 = vmatprep.mubr.bf16.mxu0 0
        %2252 = vmatmul.mubr.bf16.gmra.mrb[0].mxu0 %v2018
        %v2253 = vpop.f32.mrb[0].mxu0
        %v2254 = vadd.f32 %v2057, %v2253
        %v2255 = vpop.f32.mrb[0].mxu0
        %v2256 = vpop.f32.mrb[0].mxu0
        %v2257 = vadd.f32 %v2057, %v2256
        %v2258 = vpop.f32.mrb[0].mxu0
        %2259 = vmatprep.mubr.bf16.mxu0 0
        %2260 = vmatmul.mubr.bf16.gmra.mrb[0].mxu0 %v2019
        %v2261 = vpop.f32.mrb[0].mxu0
        %v2262 = vadd.f32 %v2057, %v2261
        %v2263 = vpop.f32.mrb[0].mxu0
        %v2264 = vpop.f32.mrb[0].mxu0
        %v2265 = vadd.f32 %v2057, %v2264
        %v2266 = vpop.f32.mrb[0].mxu0
        %2267 = vmatprep.mubr.bf16.mxu0 0
        %2268 = vmatmul.mubr.bf16.gmra.mrb[0].mxu0 %v2020
        %v2269 = vpop.f32.mrb[0].mxu0
        %v2270 = vadd.f32 %v2057, %v2269
        %v2271 = vpop.f32.mrb[0].mxu0
        %v2272 = vpop.f32.mrb[0].mxu0
        %v2273 = vadd.f32 %v2057, %v2272
        %v2274 = vpop.f32.mrb[0].mxu0
        %2275 = vmatprep.mubr.bf16.mxu0 0
        %2276 = vmatmul.mubr.bf16.gmra.mrb[0].mxu0 %v2021
        %v2277 = vpop.f32.mrb[0].mxu0
        %v2278 = vadd.f32 %v2057, %v2277
        %v2279 = vpop.f32.mrb[0].mxu0
        %v2280 = vpop.f32.mrb[0].mxu0
        %v2281 = vadd.f32 %v2057, %v2280
        %v2282 = vpop.f32.mrb[0].mxu0
        %2283 = vmatprep.mubr.bf16.mxu0 0
        %2284 = vmatmul.mubr.bf16.gmra.mrb[0].mxu0 %v2022
        %v2285 = vpop.f32.mrb[0].mxu0
        %v2286 = vadd.f32 %v2057, %v2285
        %v2287 = vpop.f32.mrb[0].mxu0
        %v2288 = vpop.f32.mrb[0].mxu0
        %v2289 = vadd.f32 %v2057, %v2288
        %v2290 = vpop.f32.mrb[0].mxu0
        %2291 = vmatprep.mubr.bf16.mxu0 0
        %2292 = vmatmul.mubr.bf16.gmra.mrb[0].mxu0 %v2023
        %v2293 = vpop.f32.mrb[0].mxu0
        %v2294 = vadd.f32 %v2057, %v2293
        %v2295 = vpop.f32.mrb[0].mxu0
        %v2296 = vpop.f32.mrb[0].mxu0
        %v2297 = vadd.f32 %v2057, %v2296
        %v2298 = vpop.f32.mrb[0].mxu0
        %2299 = vmatprep.mubr.bf16.mxu0 0
        %2300 = vmatmul.mubr.bf16.gmra.mrb[0].mxu0 %v2024
        %v2301 = vpop.f32.mrb[0].mxu0
        %v2302 = vadd.f32 %v2057, %v2301
        %v2303 = vpop.f32.mrb[0].mxu0
        %v2304 = vpop.f32.mrb[0].mxu0
        %v2305 = vadd.f32 %v2057, %v2304
        %v2306 = vpop.f32.mrb[0].mxu0
        %2307 = vmatprep.mubr.bf16.mxu0 0
        %2308 = vmatmul.mubr.bf16.gmra.mrb[0].mxu0 %v2025
        %v2309 = vpop.f32.mrb[0].mxu0
        %v2310 = vadd.f32 %v2057, %v2309
        %v2311 = vpop.f32.mrb[0].mxu0
        %v2312 = vpop.f32.mrb[0].mxu0
        %v2313 = vadd.f32 %v2057, %v2312
        %v2314 = vpop.f32.mrb[0].mxu0
        %2315 = vmatprep.mubr.bf16.mxu0 0
        %2316 = vmatmul.mubr.bf16.gmra.mrb[0].mxu0 %v2026
        %v2317 = vpop.f32.mrb[0].mxu0
        %v2318 = vadd.f32 %v2057, %v2317
        %v2319 = vpop.f32.mrb[0].mxu0
        %v2320 = vpop.f32.mrb[0].mxu0
        %v2321 = vadd.f32 %v2057, %v2320
        %v2322 = vpop.f32.mrb[0].mxu0
        %2323 = vmatprep.mubr.bf16.mxu0 0
        %2324 = vmatmul.mubr.bf16.gmra.mrb[0].mxu0 %v2027
        %v2325 = vpop.f32.mrb[0].mxu0
        %v2326 = vadd.f32 %v2057, %v2325
        %v2327 = vpop.f32.mrb[0].mxu0
        %v2328 = vpop.f32.mrb[0].mxu0
        %v2329 = vadd.f32 %v2057, %v2328
        %v2330 = vpop.f32.mrb[0].mxu0
        %2331 = vmatprep.mubr.bf16.mxu0 0
        %2332 = vmatmul.mubr.bf16.gmra.mrb[0].mxu0 %v2028
        %v2333 = vpop.f32.mrb[0].mxu0
        %v2334 = vadd.f32 %v2057, %v2333
        %v2335 = vpop.f32.mrb[0].mxu0
        %v2336 = vpop.f32.mrb[0].mxu0
        %v2337 = vadd.f32 %v2057, %v2336
        %v2338 = vpop.f32.mrb[0].mxu0
        %2339 = vmatprep.mubr.bf16.mxu0 0
        %2340 = vmatmul.mubr.bf16.gmra.mrb[0].mxu0 %v2029
        %v2341 = vpop.f32.mrb[0].mxu0
        %v2342 = vadd.f32 %v2057, %v2341
        %v2343 = vpop.f32.mrb[0].mxu0
        %v2344 = vpop.f32.mrb[0].mxu0
        %v2345 = vadd.f32 %v2057, %v2344
        %v2346 = vpop.f32.mrb[0].mxu0
        %2347 = vmatprep.mubr.bf16.mxu0 0
        %2348 = vmatmul.mubr.bf16.gmra.mrb[0].mxu0 %v2030
        %v2349 = vpop.f32.mrb[0].mxu0
        %v2350 = vadd.f32 %v2057, %v2349
        %v2351 = vpop.f32.mrb[0].mxu0
        %v2352 = vpop.f32.mrb[0].mxu0
        %v2353 = vadd.f32 %v2057, %v2352
        %v2354 = vpop.f32.mrb[0].mxu0
        %2355 = vmatprep.mubr.bf16.mxu0 0
        %2356 = vmatmul.mubr.bf16.gmra.mrb[0].mxu0 %v2031
        %v2357 = vpop.f32.mrb[0].mxu0
        %v2358 = vadd.f32 %v2057, %v2357
        %v2359 = vpop.f32.mrb[0].mxu0
        %v2360 = vpop.f32.mrb[0].mxu0
        %v2361 = vadd.f32 %v2057, %v2360
        %v2362 = vpop.f32.mrb[0].mxu0
        %2363 = vmatprep.mubr.bf16.mxu0 0
        %2364 = vmatmul.mubr.bf16.gmra.mrb[0].mxu0 %v2032
        %v2365 = vpop.f32.mrb[0].mxu0
        %v2366 = vadd.f32 %v2057, %v2365
        %v2367 = vpop.f32.mrb[0].mxu0
        %v2368 = vpop.f32.mrb[0].mxu0
        %v2369 = vadd.f32 %v2057, %v2368
        %v2370 = vpop.f32.mrb[0].mxu0
        %2371 = vmatprep.mubr.bf16.mxu0 0
        %2372 = vmatmul.mubr.bf16.gmra.mrb[0].mxu0 %v2033
        %v2373 = vpop.f32.mrb[0].mxu0
        %v2374 = vadd.f32 %v2057, %v2373
        %v2375 = vpop.f32.mrb[0].mxu0
        %v2376 = vpop.f32.mrb[0].mxu0
        %v2377 = vadd.f32 %v2057, %v2376
        %v2378 = vpop.f32.mrb[0].mxu0
        %2379 = vmatprep.mubr.bf16.mxu0 0
        %2380 = vmatmul.mubr.bf16.gmra.mrb[0].mxu0 %v2034
        %v2381 = vpop.f32.mrb[0].mxu0
        %v2382 = vadd.f32 %v2057, %v2381
        %v2383 = vpop.f32.mrb[0].mxu0
        %v2384 = vpop.f32.mrb[0].mxu0
        %v2385 = vadd.f32 %v2057, %v2384
        %v2386 = vpop.f32.mrb[0].mxu0
        %2387 = vmatprep.mubr.bf16.mxu0 0
        %2388 = vmatmul.mubr.bf16.gmra.mrb[0].mxu0 %v2035
        %v2389 = vpop.f32.mrb[0].mxu0
        %v2390 = vadd.f32 %v2057, %v2389
        %v2391 = vpop.f32.mrb[0].mxu0
        %v2392 = vpop.f32.mrb[0].mxu0
        %v2393 = vadd.f32 %v2057, %v2392
        %v2394 = vpop.f32.mrb[0].mxu0
        %2395 = vdwg.mxu0
        %v2396 = vmax.f32 %v2142, 0.0
        %v2397 = vmax.f32 %v2145, 0.0
        %v2398 = vmax.f32 %v2150, 0.0
        %v2399 = vmax.f32 %v2153, 0.0
        %v2400 = vmax.f32 %v2158, 0.0
        %v2401 = vmax.f32 %v2161, 0.0
        %v2402 = vmax.f32 %v2166, 0.0
        %v2403 = vmax.f32 %v2169, 0.0
        %v2404 = vmax.f32 %v2174, 0.0
        %v2405 = vmax.f32 %v2177, 0.0
        %v2406 = vmax.f32 %v2182, 0.0
        %v2407 = vmax.f32 %v2185, 0.0
        %v2408 = vmax.f32 %v2190, 0.0
        %v2409 = vmax.f32 %v2193, 0.0
        %v2410 = vmax.f32 %v2198, 0.0
        %v2411 = vmax.f32 %v2201, 0.0
        %v2412 = vmax.f32 %v2206, 0.0
        %v2413 = vmax.f32 %v2209, 0.0
        %v2414 = vmax.f32 %v2214, 0.0
        %v2415 = vmax.f32 %v2217, 0.0
        %v2416 = vmax.f32 %v2222, 0.0
        %v2417 = vmax.f32 %v2225, 0.0
        %v2418 = vmax.f32 %v2230, 0.0
        %v2419 = vmax.f32 %v2233, 0.0
        %v2420 = vmax.f32 %v2238, 0.0
        %v2421 = vmax.f32 %v2241, 0.0
        %v2422 = vmax.f32 %v2246, 0.0
        %v2423 = vmax.f32 %v2249, 0.0
        %v2424 = vmax.f32 %v2254, 0.0
        %v2425 = vmax.f32 %v2257, 0.0
        %v2426 = vmax.f32 %v2262, 0.0
        %v2427 = vmax.f32 %v2265, 0.0
        %v2428 = vmax.f32 %v2270, 0.0
        %v2429 = vmax.f32 %v2273, 0.0
        %v2430 = vmax.f32 %v2278, 0.0
        %v2431 = vmax.f32 %v2281, 0.0
        %v2432 = vmax.f32 %v2286, 0.0
        %v2433 = vmax.f32 %v2289, 0.0
        %v2434 = vmax.f32 %v2294, 0.0
        %v2435 = vmax.f32 %v2297, 0.0
        %v2436 = vmax.f32 %v2302, 0.0
        %v2437 = vmax.f32 %v2305, 0.0
        %v2438 = vmax.f32 %v2310, 0.0
        %v2439 = vmax.f32 %v2313, 0.0
        %v2440 = vmax.f32 %v2318, 0.0
        %v2441 = vmax.f32 %v2321, 0.0
        %v2442 = vmax.f32 %v2326, 0.0
        %v2443 = vmax.f32 %v2329, 0.0
        %v2444 = vmax.f32 %v2334, 0.0
        %v2445 = vmax.f32 %v2337, 0.0
        %v2446 = vmax.f32 %v2342, 0.0
        %v2447 = vmax.f32 %v2345, 0.0
        %v2448 = vmax.f32 %v2350, 0.0
        %v2449 = vmax.f32 %v2353, 0.0
        %v2450 = vmax.f32 %v2358, 0.0
        %v2451 = vmax.f32 %v2361, 0.0
        %v2452 = vmax.f32 %v2366, 0.0
        %v2453 = vmax.f32 %v2369, 0.0
        %v2454 = vmax.f32 %v2374, 0.0
        %v2455 = vmax.f32 %v2377, 0.0
        %v2456 = vmax.f32 %v2382, 0.0
        %v2457 = vmax.f32 %v2385, 0.0
        %v2458 = vmax.f32 %v2390, 0.0
        %v2459 = vmax.f32 %v2393, 0.0
        %v2460 = vmin.f32 %v2396, 127.0
        %v2461 = vmin.f32 %v2397, 127.0
        %v2462 = vmin.f32 %v2398, 127.0
        %v2463 = vmin.f32 %v2399, 127.0
        %v2464 = vmin.f32 %v2400, 127.0
        %v2465 = vmin.f32 %v2401, 127.0
        %v2466 = vmin.f32 %v2402, 127.0
        %v2467 = vmin.f32 %v2403, 127.0
        %v2468 = vmin.f32 %v2404, 127.0
        %v2469 = vmin.f32 %v2405, 127.0
        %v2470 = vmin.f32 %v2406, 127.0
        %v2471 = vmin.f32 %v2407, 127.0
        %v2472 = vmin.f32 %v2408, 127.0
        %v2473 = vmin.f32 %v2409, 127.0
        %v2474 = vmin.f32 %v2410, 127.0
        %v2475 = vmin.f32 %v2411, 127.0
        %v2476 = vmin.f32 %v2412, 127.0
        %v2477 = vmin.f32 %v2413, 127.0
        %v2478 = vmin.f32 %v2414, 127.0
        %v2479 = vmin.f32 %v2415, 127.0
        %v2480 = vmin.f32 %v2416, 127.0
        %v2481 = vmin.f32 %v2417, 127.0
        %v2482 = vmin.f32 %v2418, 127.0
        %v2483 = vmin.f32 %v2419, 127.0
        %v2484 = vmin.f32 %v2420, 127.0
        %v2485 = vmin.f32 %v2421, 127.0
        %v2486 = vmin.f32 %v2422, 127.0
        %v2487 = vmin.f32 %v2423, 127.0
        %v2488 = vmin.f32 %v2424, 127.0
        %v2489 = vmin.f32 %v2425, 127.0
        %v2490 = vmin.f32 %v2426, 127.0
        %v2491 = vmin.f32 %v2427, 127.0
        %v2492 = vmin.f32 %v2428, 127.0
        %v2493 = vmin.f32 %v2429, 127.0
        %v2494 = vmin.f32 %v2430, 127.0
        %v2495 = vmin.f32 %v2431, 127.0
        %v2496 = vmin.f32 %v2432, 127.0
        %v2497 = vmin.f32 %v2433, 127.0
        %v2498 = vmin.f32 %v2434, 127.0
        %v2499 = vmin.f32 %v2435, 127.0
        %v2500 = vmin.f32 %v2436, 127.0
        %v2501 = vmin.f32 %v2437, 127.0
        %v2502 = vmin.f32 %v2438, 127.0
        %v2503 = vmin.f32 %v2439, 127.0
        %v2504 = vmin.f32 %v2440, 127.0
        %v2505 = vmin.f32 %v2441, 127.0
        %v2506 = vmin.f32 %v2442, 127.0
        %v2507 = vmin.f32 %v2443, 127.0
        %v2508 = vmin.f32 %v2444, 127.0
        %v2509 = vmin.f32 %v2445, 127.0
        %v2510 = vmin.f32 %v2446, 127.0
        %v2511 = vmin.f32 %v2447, 127.0
        %v2512 = vmin.f32 %v2448, 127.0
        %v2513 = vmin.f32 %v2449, 127.0
        %v2514 = vmin.f32 %v2450, 127.0
        %v2515 = vmin.f32 %v2451, 127.0
        %v2516 = vmin.f32 %v2452, 127.0
        %v2517 = vmin.f32 %v2453, 127.0
        %v2518 = vmin.f32 %v2454, 127.0
        %v2519 = vmin.f32 %v2455, 127.0
        %v2520 = vmin.f32 %v2456, 127.0
        %v2521 = vmin.f32 %v2457, 127.0
        %v2522 = vmin.f32 %v2458, 127.0
        %v2523 = vmin.f32 %v2459, 127.0
        %v2524 = vpack.c.bf16 %v2461, %v2460
        %v2525 = vpack.c.bf16 %v2463, %v2462
        %v2526 = vpack.c.bf16 %v2465, %v2464
        %v2527 = vpack.c.bf16 %v2467, %v2466
        %v2528 = vpack.c.bf16 %v2469, %v2468
        %v2529 = vpack.c.bf16 %v2471, %v2470
        %v2530 = vpack.c.bf16 %v2473, %v2472
        %v2531 = vpack.c.bf16 %v2475, %v2474
        %v2532 = vpack.c.bf16 %v2477, %v2476
        %v2533 = vpack.c.bf16 %v2479, %v2478
        %v2534 = vpack.c.bf16 %v2481, %v2480
        %v2535 = vpack.c.bf16 %v2483, %v2482
        %v2536 = vpack.c.bf16 %v2485, %v2484
        %v2537 = vpack.c.bf16 %v2487, %v2486
        %v2538 = vpack.c.bf16 %v2489, %v2488
        %v2539 = vpack.c.bf16 %v2491, %v2490
        %v2540 = vpack.c.bf16 %v2493, %v2492
        %v2541 = vpack.c.bf16 %v2495, %v2494
        %v2542 = vpack.c.bf16 %v2497, %v2496
        %v2543 = vpack.c.bf16 %v2499, %v2498
        %v2544 = vpack.c.bf16 %v2501, %v2500
        %v2545 = vpack.c.bf16 %v2503, %v2502
        %v2546 = vpack.c.bf16 %v2505, %v2504
        %v2547 = vpack.c.bf16 %v2507, %v2506
        %v2548 = vpack.c.bf16 %v2509, %v2508
        %v2549 = vpack.c.bf16 %v2511, %v2510
        %v2550 = vpack.c.bf16 %v2513, %v2512
        %v2551 = vpack.c.bf16 %v2515, %v2514
        %v2552 = vpack.c.bf16 %v2517, %v2516
        %v2553 = vpack.c.bf16 %v2519, %v2518
        %v2554 = vpack.c.bf16 %v2521, %v2520
        %v2555 = vpack.c.bf16 %v2523, %v2522
        %v2556 = vld [vmem:[%s5] sm:$0xf]
        %v2557 = vld [vmem:[%s5 + $0x4] sm:$0xf]
        %v2558 = vld [vmem:[%s5 + $0x8] sm:$0xf]
        %v2559 = vld [vmem:[%s5 + $0xc] sm:$0xf]
        %v2560 = vld [vmem:[%s5 + $0x10] sm:$0xf]
        %v2561 = vld [vmem:[%s5 + $0x14] sm:$0xf]
        %v2562 = vld [vmem:[%s5 + $0x18] sm:$0xf]
        %v2563 = vld [vmem:[%s5 + $0x1c] sm:$0xf]
        %v2564 = vld [vmem:[%s5 + $0x20] sm:$0xf]
        %v2565 = vld [vmem:[%s5 + $0x24] sm:$0xf]
        %v2566 = vld [vmem:[%s5 + $0x28] sm:$0xf]
        %v2567 = vld [vmem:[%s5 + $0x2c] sm:$0xf]
        %v2568 = vld [vmem:[%s5 + $0x30] sm:$0xf]
        %v2569 = vld [vmem:[%s5 + $0x34] sm:$0xf]
        %v2570 = vld [vmem:[%s5 + $0x38] sm:$0xf]
        %v2571 = vld [vmem:[%s5 + $0x3c] sm:$0xf]
        %v2588 = vunpack.c.l.b16 %v2556
        %v2589 = vunpack.c.l.b16 %v2557
        %v2590 = vunpack.c.l.b16 %v2558
        %v2591 = vunpack.c.l.b16 %v2559
        %v2592 = vunpack.c.l.b16 %v2560
        %v2593 = vunpack.c.l.b16 %v2561
        %v2594 = vunpack.c.l.b16 %v2562
        %v2595 = vunpack.c.l.b16 %v2563
        %v2596 = vunpack.c.l.b16 %v2564
        %v2597 = vunpack.c.l.b16 %v2565
        %v2598 = vunpack.c.l.b16 %v2566
        %v2599 = vunpack.c.l.b16 %v2567
        %v2600 = vunpack.c.l.b16 %v2568
        %v2601 = vunpack.c.l.b16 %v2569
        %v2602 = vunpack.c.l.b16 %v2570
        %v2603 = vunpack.c.l.b16 %v2571
        %v2604 = vpack.c.b16 %v2589, %v2588
        %v2605 = vpack.c.b16 %v2591, %v2590
        %v2606 = vpack.c.b16 %v2593, %v2592
        %v2607 = vpack.c.b16 %v2595, %v2594
        %v2608 = vpack.c.b16 %v2597, %v2596
        %v2609 = vpack.c.b16 %v2599, %v2598
        %v2610 = vpack.c.b16 %v2601, %v2600
        %v2611 = vpack.c.b16 %v2603, %v2602
        %2620 = vmatprep.subr.bf16.mxu0 0
        %2621 = vmatpush1.bf16.msra.mxu0 %v2604
        %2622 = vmatprep.subr.bf16.mxu0 0
        %2623 = vmatpush1.bf16.msra.mxu0 %v2605
        %2624 = vmatprep.subr.bf16.mxu0 0
        %2625 = vmatpush1.bf16.msra.mxu0 %v2606
        %2626 = vmatprep.subr.bf16.mxu0 0
        %2627 = vmatpush1.bf16.msra.mxu0 %v2607
        %2628 = vmatprep.subr.bf16.mxu0 0
        %2629 = vmatpush1.bf16.msra.mxu0 %v2608
        %2630 = vmatprep.subr.bf16.mxu0 0
        %2631 = vmatpush1.bf16.msra.mxu0 %v2609
        %2632 = vmatprep.subr.bf16.mxu0 0
        %2633 = vmatpush1.bf16.msra.mxu0 %v2610
        %2634 = vmatprep.subr.bf16.mxu0 0
        %2635 = vmatpush1.bf16.msra.mxu0 %v2611
        %2636 = vmatprep.subr.bf16.mxu0 0
        %2637 = vmatpush1.bf16.msra.mxu0 0
        %2638 = vmatprep.subr.bf16.mxu0 0
        %2639 = vmatpush1.bf16.msra.mxu0 0
        %2640 = vmatprep.subr.bf16.mxu0 0
        %2641 = vmatpush1.bf16.msra.mxu0 0
        %2642 = vmatprep.subr.bf16.mxu0 0
        %2643 = vmatpush1.bf16.msra.mxu0 0
        %2644 = vmatprep.subr.bf16.mxu0 0
        %2645 = vmatpush1.bf16.msra.mxu0 0
        %2646 = vmatprep.subr.bf16.mxu0 0
        %2647 = vmatpush1.bf16.msra.mxu0 0
        %2648 = vmatprep.subr.bf16.mxu0 0
        %2649 = vmatpush1.bf16.msra.mxu0 0
        %2650 = vmatprep.subr.bf16.mxu0 0
        %2651 = vmatpush1.bf16.msra.mxu0 0
        %2652 = vmatprep.mubr.bf16.mxu0 0
        %2653 = vmatmul.mubr.bf16.gmra.mrb[0].mxu0 %v2524
        %v2654 = vpop.f32.mrb[0].mxu0
        %v2655 = vadd.f32 0.0, %v2654
        %v2656 = vpop.f32.mrb[0].mxu0
        %v2657 = vpop.f32.mrb[0].mxu0
        %v2658 = vadd.f32 0.0, %v2657
        %v2659 = vpop.f32.mrb[0].mxu0
        %2660 = vmatprep.mubr.bf16.mxu0 0
        %2661 = vmatmul.mubr.bf16.gmra.mrb[0].mxu0 %v2525
        %v2662 = vpop.f32.mrb[0].mxu0
        %v2663 = vadd.f32 0.0, %v2662
        %v2664 = vpop.f32.mrb[0].mxu0
        %v2665 = vpop.f32.mrb[0].mxu0
        %v2666 = vadd.f32 0.0, %v2665
        %v2667 = vpop.f32.mrb[0].mxu0
        %2668 = vmatprep.mubr.bf16.mxu0 0
        %2669 = vmatmul.mubr.bf16.gmra.mrb[0].mxu0 %v2526
        %v2670 = vpop.f32.mrb[0].mxu0
        %v2671 = vadd.f32 0.0, %v2670
        %v2672 = vpop.f32.mrb[0].mxu0
        %v2673 = vpop.f32.mrb[0].mxu0
        %v2674 = vadd.f32 0.0, %v2673
        %v2675 = vpop.f32.mrb[0].mxu0
        %2676 = vmatprep.mubr.bf16.mxu0 0
        %2677 = vmatmul.mubr.bf16.gmra.mrb[0].mxu0 %v2527
        %v2678 = vpop.f32.mrb[0].mxu0
        %v2679 = vadd.f32 0.0, %v2678
        %v2680 = vpop.f32.mrb[0].mxu0
        %v2681 = vpop.f32.mrb[0].mxu0
        %v2682 = vadd.f32 0.0, %v2681
        %v2683 = vpop.f32.mrb[0].mxu0
        %2684 = vmatprep.mubr.bf16.mxu0 0
        %2685 = vmatmul.mubr.bf16.gmra.mrb[0].mxu0 %v2528
        %v2686 = vpop.f32.mrb[0].mxu0
        %v2687 = vadd.f32 0.0, %v2686
        %v2688 = vpop.f32.mrb[0].mxu0
        %v2689 = vpop.f32.mrb[0].mxu0
        %v2690 = vadd.f32 0.0, %v2689
        %v2691 = vpop.f32.mrb[0].mxu0
        %2692 = vmatprep.mubr.bf16.mxu0 0
        %2693 = vmatmul.mubr.bf16.gmra.mrb[0].mxu0 %v2529
        %v2694 = vpop.f32.mrb[0].mxu0
        %v2695 = vadd.f32 0.0, %v2694
        %v2696 = vpop.f32.mrb[0].mxu0
        %v2697 = vpop.f32.mrb[0].mxu0
        %v2698 = vadd.f32 0.0, %v2697
        %v2699 = vpop.f32.mrb[0].mxu0
        %2700 = vmatprep.mubr.bf16.mxu0 0
        %2701 = vmatmul.mubr.bf16.gmra.mrb[0].mxu0 %v2530
        %v2702 = vpop.f32.mrb[0].mxu0
        %v2703 = vadd.f32 0.0, %v2702
        %v2704 = vpop.f32.mrb[0].mxu0
        %v2705 = vpop.f32.mrb[0].mxu0
        %v2706 = vadd.f32 0.0, %v2705
        %v2707 = vpop.f32.mrb[0].mxu0
        %2708 = vmatprep.mubr.bf16.mxu0 0
        %2709 = vmatmul.mubr.bf16.gmra.mrb[0].mxu0 %v2531
        %v2710 = vpop.f32.mrb[0].mxu0
        %v2711 = vadd.f32 0.0, %v2710
        %v2712 = vpop.f32.mrb[0].mxu0
        %v2713 = vpop.f32.mrb[0].mxu0
        %v2714 = vadd.f32 0.0, %v2713
        %v2715 = vpop.f32.mrb[0].mxu0
        %2716 = vmatprep.mubr.bf16.mxu0 0
        %2717 = vmatmul.mubr.bf16.gmra.mrb[0].mxu0 %v2532
        %v2718 = vpop.f32.mrb[0].mxu0
        %v2719 = vadd.f32 0.0, %v2718
        %v2720 = vpop.f32.mrb[0].mxu0
        %v2721 = vpop.f32.mrb[0].mxu0
        %v2722 = vadd.f32 0.0, %v2721
        %v2723 = vpop.f32.mrb[0].mxu0
        %2724 = vmatprep.mubr.bf16.mxu0 0
        %2725 = vmatmul.mubr.bf16.gmra.mrb[0].mxu0 %v2533
        %v2726 = vpop.f32.mrb[0].mxu0
        %v2727 = vadd.f32 0.0, %v2726
        %v2728 = vpop.f32.mrb[0].mxu0
        %v2729 = vpop.f32.mrb[0].mxu0
        %v2730 = vadd.f32 0.0, %v2729
        %v2731 = vpop.f32.mrb[0].mxu0
        %2732 = vmatprep.mubr.bf16.mxu0 0
        %2733 = vmatmul.mubr.bf16.gmra.mrb[0].mxu0 %v2534
        %v2734 = vpop.f32.mrb[0].mxu0
        %v2735 = vadd.f32 0.0, %v2734
        %v2736 = vpop.f32.mrb[0].mxu0
        %v2737 = vpop.f32.mrb[0].mxu0
        %v2738 = vadd.f32 0.0, %v2737
        %v2739 = vpop.f32.mrb[0].mxu0
        %2740 = vmatprep.mubr.bf16.mxu0 0
        %2741 = vmatmul.mubr.bf16.gmra.mrb[0].mxu0 %v2535
        %v2742 = vpop.f32.mrb[0].mxu0
        %v2743 = vadd.f32 0.0, %v2742
        %v2744 = vpop.f32.mrb[0].mxu0
        %v2745 = vpop.f32.mrb[0].mxu0
        %v2746 = vadd.f32 0.0, %v2745
        %v2747 = vpop.f32.mrb[0].mxu0
        %2748 = vmatprep.mubr.bf16.mxu0 0
        %2749 = vmatmul.mubr.bf16.gmra.mrb[0].mxu0 %v2536
        %v2750 = vpop.f32.mrb[0].mxu0
        %v2751 = vadd.f32 0.0, %v2750
        %v2752 = vpop.f32.mrb[0].mxu0
        %v2753 = vpop.f32.mrb[0].mxu0
        %v2754 = vadd.f32 0.0, %v2753
        %v2755 = vpop.f32.mrb[0].mxu0
        %2756 = vmatprep.mubr.bf16.mxu0 0
        %2757 = vmatmul.mubr.bf16.gmra.mrb[0].mxu0 %v2537
        %v2758 = vpop.f32.mrb[0].mxu0
        %v2759 = vadd.f32 0.0, %v2758
        %v2760 = vpop.f32.mrb[0].mxu0
        %v2761 = vpop.f32.mrb[0].mxu0
        %v2762 = vadd.f32 0.0, %v2761
        %v2763 = vpop.f32.mrb[0].mxu0
        %2764 = vmatprep.mubr.bf16.mxu0 0
        %2765 = vmatmul.mubr.bf16.gmra.mrb[0].mxu0 %v2538
        %v2766 = vpop.f32.mrb[0].mxu0
        %v2767 = vadd.f32 0.0, %v2766
        %v2768 = vpop.f32.mrb[0].mxu0
        %v2769 = vpop.f32.mrb[0].mxu0
        %v2770 = vadd.f32 0.0, %v2769
        %v2771 = vpop.f32.mrb[0].mxu0
        %2772 = vmatprep.mubr.bf16.mxu0 0
        %2773 = vmatmul.mubr.bf16.gmra.mrb[0].mxu0 %v2539
        %v2774 = vpop.f32.mrb[0].mxu0
        %v2775 = vadd.f32 0.0, %v2774
        %v2776 = vpop.f32.mrb[0].mxu0
        %v2777 = vpop.f32.mrb[0].mxu0
        %v2778 = vadd.f32 0.0, %v2777
        %v2779 = vpop.f32.mrb[0].mxu0
        %2780 = vmatprep.mubr.bf16.mxu0 0
        %2781 = vmatmul.mubr.bf16.gmra.mrb[0].mxu0 %v2540
        %v2782 = vpop.f32.mrb[0].mxu0
        %v2783 = vadd.f32 0.0, %v2782
        %v2784 = vpop.f32.mrb[0].mxu0
        %v2785 = vpop.f32.mrb[0].mxu0
        %v2786 = vadd.f32 0.0, %v2785
        %v2787 = vpop.f32.mrb[0].mxu0
        %2788 = vmatprep.mubr.bf16.mxu0 0
        %2789 = vmatmul.mubr.bf16.gmra.mrb[0].mxu0 %v2541
        %v2790 = vpop.f32.mrb[0].mxu0
        %v2791 = vadd.f32 0.0, %v2790
        %v2792 = vpop.f32.mrb[0].mxu0
        %v2793 = vpop.f32.mrb[0].mxu0
        %v2794 = vadd.f32 0.0, %v2793
        %v2795 = vpop.f32.mrb[0].mxu0
        %2796 = vmatprep.mubr.bf16.mxu0 0
        %2797 = vmatmul.mubr.bf16.gmra.mrb[0].mxu0 %v2542
        %v2798 = vpop.f32.mrb[0].mxu0
        %v2799 = vadd.f32 0.0, %v2798
        %v2800 = vpop.f32.mrb[0].mxu0
        %v2801 = vpop.f32.mrb[0].mxu0
        %v2802 = vadd.f32 0.0, %v2801
        %v2803 = vpop.f32.mrb[0].mxu0
        %2804 = vmatprep.mubr.bf16.mxu0 0
        %2805 = vmatmul.mubr.bf16.gmra.mrb[0].mxu0 %v2543
        %v2806 = vpop.f32.mrb[0].mxu0
        %v2807 = vadd.f32 0.0, %v2806
        %v2808 = vpop.f32.mrb[0].mxu0
        %v2809 = vpop.f32.mrb[0].mxu0
        %v2810 = vadd.f32 0.0, %v2809
        %v2811 = vpop.f32.mrb[0].mxu0
        %2812 = vmatprep.mubr.bf16.mxu0 0
        %2813 = vmatmul.mubr.bf16.gmra.mrb[0].mxu0 %v2544
        %v2814 = vpop.f32.mrb[0].mxu0
        %v2815 = vadd.f32 0.0, %v2814
        %v2816 = vpop.f32.mrb[0].mxu0
        %v2817 = vpop.f32.mrb[0].mxu0
        %v2818 = vadd.f32 0.0, %v2817
        %v2819 = vpop.f32.mrb[0].mxu0
        %2820 = vmatprep.mubr.bf16.mxu0 0
        %2821 = vmatmul.mubr.bf16.gmra.mrb[0].mxu0 %v2545
        %v2822 = vpop.f32.mrb[0].mxu0
        %v2823 = vadd.f32 0.0, %v2822
        %v2824 = vpop.f32.mrb[0].mxu0
        %v2825 = vpop.f32.mrb[0].mxu0
        %v2826 = vadd.f32 0.0, %v2825
        %v2827 = vpop.f32.mrb[0].mxu0
        %2828 = vmatprep.mubr.bf16.mxu0 0
        %2829 = vmatmul.mubr.bf16.gmra.mrb[0].mxu0 %v2546
        %v2830 = vpop.f32.mrb[0].mxu0
        %v2831 = vadd.f32 0.0, %v2830
        %v2832 = vpop.f32.mrb[0].mxu0
        %v2833 = vpop.f32.mrb[0].mxu0
        %v2834 = vadd.f32 0.0, %v2833
        %v2835 = vpop.f32.mrb[0].mxu0
        %2836 = vmatprep.mubr.bf16.mxu0 0
        %2837 = vmatmul.mubr.bf16.gmra.mrb[0].mxu0 %v2547
        %v2838 = vpop.f32.mrb[0].mxu0
        %v2839 = vadd.f32 0.0, %v2838
        %v2840 = vpop.f32.mrb[0].mxu0
        %v2841 = vpop.f32.mrb[0].mxu0
        %v2842 = vadd.f32 0.0, %v2841
        %v2843 = vpop.f32.mrb[0].mxu0
        %2844 = vmatprep.mubr.bf16.mxu0 0
        %2845 = vmatmul.mubr.bf16.gmra.mrb[0].mxu0 %v2548
        %v2846 = vpop.f32.mrb[0].mxu0
        %v2847 = vadd.f32 0.0, %v2846
        %v2848 = vpop.f32.mrb[0].mxu0
        %v2849 = vpop.f32.mrb[0].mxu0
        %v2850 = vadd.f32 0.0, %v2849
        %v2851 = vpop.f32.mrb[0].mxu0
        %2852 = vmatprep.mubr.bf16.mxu0 0
        %2853 = vmatmul.mubr.bf16.gmra.mrb[0].mxu0 %v2549
        %v2854 = vpop.f32.mrb[0].mxu0
        %v2855 = vadd.f32 0.0, %v2854
        %v2856 = vpop.f32.mrb[0].mxu0
        %v2857 = vpop.f32.mrb[0].mxu0
        %v2858 = vadd.f32 0.0, %v2857
        %v2859 = vpop.f32.mrb[0].mxu0
        %2860 = vmatprep.mubr.bf16.mxu0 0
        %2861 = vmatmul.mubr.bf16.gmra.mrb[0].mxu0 %v2550
        %v2862 = vpop.f32.mrb[0].mxu0
        %v2863 = vadd.f32 0.0, %v2862
        %v2864 = vpop.f32.mrb[0].mxu0
        %v2865 = vpop.f32.mrb[0].mxu0
        %v2866 = vadd.f32 0.0, %v2865
        %v2867 = vpop.f32.mrb[0].mxu0
        %2868 = vmatprep.mubr.bf16.mxu0 0
        %2869 = vmatmul.mubr.bf16.gmra.mrb[0].mxu0 %v2551
        %v2870 = vpop.f32.mrb[0].mxu0
        %v2871 = vadd.f32 0.0, %v2870
        %v2872 = vpop.f32.mrb[0].mxu0
        %v2873 = vpop.f32.mrb[0].mxu0
        %v2874 = vadd.f32 0.0, %v2873
        %v2875 = vpop.f32.mrb[0].mxu0
        %2876 = vmatprep.mubr.bf16.mxu0 0
        %2877 = vmatmul.mubr.bf16.gmra.mrb[0].mxu0 %v2552
        %v2878 = vpop.f32.mrb[0].mxu0
        %v2879 = vadd.f32 0.0, %v2878
        %v2880 = vpop.f32.mrb[0].mxu0
        %v2881 = vpop.f32.mrb[0].mxu0
        %v2882 = vadd.f32 0.0, %v2881
        %v2883 = vpop.f32.mrb[0].mxu0
        %2884 = vmatprep.mubr.bf16.mxu0 0
        %2885 = vmatmul.mubr.bf16.gmra.mrb[0].mxu0 %v2553
        %v2886 = vpop.f32.mrb[0].mxu0
        %v2887 = vadd.f32 0.0, %v2886
        %v2888 = vpop.f32.mrb[0].mxu0
        %v2889 = vpop.f32.mrb[0].mxu0
        %v2890 = vadd.f32 0.0, %v2889
        %v2891 = vpop.f32.mrb[0].mxu0
        %2892 = vmatprep.mubr.bf16.mxu0 0
        %2893 = vmatmul.mubr.bf16.gmra.mrb[0].mxu0 %v2554
        %v2894 = vpop.f32.mrb[0].mxu0
        %v2895 = vadd.f32 0.0, %v2894
        %v2896 = vpop.f32.mrb[0].mxu0
        %v2897 = vpop.f32.mrb[0].mxu0
        %v2898 = vadd.f32 0.0, %v2897
        %v2899 = vpop.f32.mrb[0].mxu0
        %2900 = vmatprep.mubr.bf16.mxu0 0
        %2901 = vmatmul.mubr.bf16.gmra.mrb[0].mxu0 %v2555
        %v2902 = vpop.f32.mrb[0].mxu0
        %v2903 = vadd.f32 0.0, %v2902
        %v2904 = vpop.f32.mrb[0].mxu0
        %v2905 = vpop.f32.mrb[0].mxu0
        %v2906 = vadd.f32 0.0, %v2905
        %v2907 = vpop.f32.mrb[0].mxu0
        %2908 = vdwg.mxu0
        %vm2909 = vcmask 7168
        %2910 = vst.msk [vmem:[%s327] sm:$0xff] %vm2909, %v2655
        %2911 = vst.msk [vmem:[%s327 + $0x8] sm:$0xff] %vm2909, %v2658
        %2912 = vst.msk [vmem:[%s327 + $0x10] sm:$0xff] %vm2909, %v2663
        %2913 = vst.msk [vmem:[%s327 + $0x18] sm:$0xff] %vm2909, %v2666
        %2914 = vst.msk [vmem:[%s327 + $0x20] sm:$0xff] %vm2909, %v2671
        %2915 = vst.msk [vmem:[%s327 + $0x28] sm:$0xff] %vm2909, %v2674
        %2916 = vst.msk [vmem:[%s327 + $0x30] sm:$0xff] %vm2909, %v2679
        %2917 = vst.msk [vmem:[%s327 + $0x38] sm:$0xff] %vm2909, %v2682
        %2918 = vst.msk [vmem:[%s327 + $0x40] sm:$0xff] %vm2909, %v2687
        %2919 = vst.msk [vmem:[%s327 + $0x48] sm:$0xff] %vm2909, %v2690
        %2920 = vst.msk [vmem:[%s327 + $0x50] sm:$0xff] %vm2909, %v2695
        %2921 = vst.msk [vmem:[%s327 + $0x58] sm:$0xff] %vm2909, %v2698
        %2922 = vst.msk [vmem:[%s327 + $0x60] sm:$0xff] %vm2909, %v2703
        %2923 = vst.msk [vmem:[%s327 + $0x68] sm:$0xff] %vm2909, %v2706
        %2924 = vst.msk [vmem:[%s327 + $0x70] sm:$0xff] %vm2909, %v2711
        %2925 = vst.msk [vmem:[%s327 + $0x78] sm:$0xff] %vm2909, %v2714
        %2926 = vst.msk [vmem:[%s327 + $0x80] sm:$0xff] %vm2909, %v2719
        %2927 = vst.msk [vmem:[%s327 + $0x88] sm:$0xff] %vm2909, %v2722
        %2928 = vst.msk [vmem:[%s327 + $0x90] sm:$0xff] %vm2909, %v2727
        %2929 = vst.msk [vmem:[%s327 + $0x98] sm:$0xff] %vm2909, %v2730
        %2930 = vst.msk [vmem:[%s327 + $0xa0] sm:$0xff] %vm2909, %v2735
        %2931 = vst.msk [vmem:[%s327 + $0xa8] sm:$0xff] %vm2909, %v2738
        %2932 = vst.msk [vmem:[%s327 + $0xb0] sm:$0xff] %vm2909, %v2743
        %2933 = vst.msk [vmem:[%s327 + $0xb8] sm:$0xff] %vm2909, %v2746
        %2934 = vst.msk [vmem:[%s327 + $0xc0] sm:$0xff] %vm2909, %v2751
        %2935 = vst.msk [vmem:[%s327 + $0xc8] sm:$0xff] %vm2909, %v2754
        %2936 = vst.msk [vmem:[%s327 + $0xd0] sm:$0xff] %vm2909, %v2759
        %2937 = vst.msk [vmem:[%s327 + $0xd8] sm:$0xff] %vm2909, %v2762
        %2938 = vst.msk [vmem:[%s327 + $0xe0] sm:$0xff] %vm2909, %v2767
        %2939 = vst.msk [vmem:[%s327 + $0xe8] sm:$0xff] %vm2909, %v2770
        %2940 = vst.msk [vmem:[%s327 + $0xf0] sm:$0xff] %vm2909, %v2775
        %2941 = vst.msk [vmem:[%s327 + $0xf8] sm:$0xff] %vm2909, %v2778
        %2942 = vst.msk [vmem:[%s327 + $0x100] sm:$0xff] %vm2909, %v2783
        %2943 = vst.msk [vmem:[%s327 + $0x108] sm:$0xff] %vm2909, %v2786
        %2944 = vst.msk [vmem:[%s327 + $0x110] sm:$0xff] %vm2909, %v2791
        %2945 = vst.msk [vmem:[%s327 + $0x118] sm:$0xff] %vm2909, %v2794
        %2946 = vst.msk [vmem:[%s327 + $0x120] sm:$0xff] %vm2909, %v2799
        %2947 = vst.msk [vmem:[%s327 + $0x128] sm:$0xff] %vm2909, %v2802
        %2948 = vst.msk [vmem:[%s327 + $0x130] sm:$0xff] %vm2909, %v2807
        %2949 = vst.msk [vmem:[%s327 + $0x138] sm:$0xff] %vm2909, %v2810
        %2950 = vst.msk [vmem:[%s327 + $0x140] sm:$0xff] %vm2909, %v2815
        %2951 = vst.msk [vmem:[%s327 + $0x148] sm:$0xff] %vm2909, %v2818
        %2952 = vst.msk [vmem:[%s327 + $0x150] sm:$0xff] %vm2909, %v2823
        %2953 = vst.msk [vmem:[%s327 + $0x158] sm:$0xff] %vm2909, %v2826
        %2954 = vst.msk [vmem:[%s327 + $0x160] sm:$0xff] %vm2909, %v2831
        %2955 = vst.msk [vmem:[%s327 + $0x168] sm:$0xff] %vm2909, %v2834
        %2956 = vst.msk [vmem:[%s327 + $0x170] sm:$0xff] %vm2909, %v2839
        %2957 = vst.msk [vmem:[%s327 + $0x178] sm:$0xff] %vm2909, %v2842
        %2958 = vst.msk [vmem:[%s327 + $0x180] sm:$0xff] %vm2909, %v2847
        %2959 = vst.msk [vmem:[%s327 + $0x188] sm:$0xff] %vm2909, %v2850
        %2960 = vst.msk [vmem:[%s327 + $0x190] sm:$0xff] %vm2909, %v2855
        %2961 = vst.msk [vmem:[%s327 + $0x198] sm:$0xff] %vm2909, %v2858
        %2962 = vst.msk [vmem:[%s327 + $0x1a0] sm:$0xff] %vm2909, %v2863
        %2963 = vst.msk [vmem:[%s327 + $0x1a8] sm:$0xff] %vm2909, %v2866
        %2964 = vst.msk [vmem:[%s327 + $0x1b0] sm:$0xff] %vm2909, %v2871
        %2965 = vst.msk [vmem:[%s327 + $0x1b8] sm:$0xff] %vm2909, %v2874
        %2966 = vst.msk [vmem:[%s327 + $0x1c0] sm:$0xff] %vm2909, %v2879
        %2967 = vst.msk [vmem:[%s327 + $0x1c8] sm:$0xff] %vm2909, %v2882
        %2968 = vst.msk [vmem:[%s327 + $0x1d0] sm:$0xff] %vm2909, %v2887
        %2969 = vst.msk [vmem:[%s327 + $0x1d8] sm:$0xff] %vm2909, %v2890
        %2970 = vst.msk [vmem:[%s327 + $0x1e0] sm:$0xff] %vm2909, %v2895
        %2971 = vst.msk [vmem:[%s327 + $0x1e8] sm:$0xff] %vm2909, %v2898
        %2972 = vst.msk [vmem:[%s327 + $0x1f0] sm:$0xff] %vm2909, %v2903
        %2973 = vst.msk [vmem:[%s327 + $0x1f8] sm:$0xff] %vm2909, %v2906
        %s2974 = smul.u32 64, %s22
        %p2975 = scmp.lt.s32.totalorder %s2974, 255
        %s2976 = scalar_select %p2975, %s2974, 255
        %s2977 = smul.addr %s2976, 8
        %s2978 = scalar_lea.vmem %s6, %s2977
        // Predicated region
        $region65: #{tpu_custom_call.1} parent=43 // pred_check
          %p2979 = pneg %p171
        $region66: #{tpu_custom_call.1} parent=43 // pred_check_branch
          %2981 = sbr.rel (%p2979) target = $region68
        $region67: #{tpu_custom_call.1} parent=43 // pred_region
          %s2982 = smul.u32 64, %s22
        $region68: #{tpu_custom_call.1} parent=43 // pred_fallthru
          _
      $region44: #{tpu_custom_call.1} parent=5 // pred_fallthru
        _
      %p2983 = scmp.le.s32.totalorder 2, %s17
      // Predicated region
      $region69: #{tpu_custom_call.1} parent=5 // pred_check
        %p2984 = pneg %p2983
      $region70: #{tpu_custom_call.1} parent=5 // pred_check_branch
        %2986 = sbr.rel (%p2984) target = $region72
      $region71: #{tpu_custom_call.1} parent=5 // pred_region
        %s2987 = ssub.s32 %s17, 2
        // Predicated region
        $region73: #{tpu_custom_call.1} parent=71 // pred_check
          %p2988 = pneg %p177
        $region74: #{tpu_custom_call.1} parent=71 // pred_check_branch
          %2990 = sbr.rel (%p2988) target = $region76
        $region75: #{tpu_custom_call.1} parent=71 // pred_region
          %s2991 = smul.u32 64, %s23
          %p2992 = scmp.lt.s32.totalorder %s2991, 255
          %s2993 = scalar_select %p2992, %s2991, 255
          %s2994 = smul.addr %s2993, 8
          %s2995 = scalar_lea.vmem %s6, %s2994
        $region76: #{tpu_custom_call.1} parent=71 // pred_fallthru
          _
      $region72: #{tpu_custom_call.1} parent=5 // pred_fallthru
        _
    $region6: #{tpu_custom_call.1} parent=1 // loop_footer
      %s21 = sadd.s32 1, %s17
    $region7: #{tpu_custom_call.1} parent=1 // loop_footer_branch
      %16 = sbr.rel target = $region3
    $region8: #{tpu_custom_call.1} parent=1 // loop_exit
      _
    %2996 = vsyncpa [#allocation3], 1
    %s2997 = scalar_lea.sflag [#allocation3], 1
    %2998 = vsyncpa %s2997, 1
    %2999 = vsyncpa [#allocation5], 1
    %3000 = vsyncpa [#allocation8], 1

</llo_original>
